<compile_context>
chip_gen: v5e
topology: v5e:2x2
jax: 0.10.0
libtpu: 0.0.40
codegen_flags: <defaults>
</compile_context>

<pallas_src>
import functools

import jax
import jax.numpy as jnp
from jax.experimental import pallas as pl
from jax.experimental.pallas import tpu as pltpu

_LANE = 128


def _round_up(n, m):
    return ((n + m - 1) // m) * m


def _pad2d(a, rows, cols):
    r, c = a.shape
    return jnp.pad(a, ((0, rows - r), (0, cols - c)))


def _mlp_kernel(x_ref,
                w1_ref, b1_ref,
                w2_ref, b2_ref,
                w3_ref, b3_ref,
                w4_ref, b4_ref,
                w5_ref, b5_ref,
                w6_ref, b6_ref,
                o_ref):
    """One batch tile of the fused 6-layer MLP.  Weights/biases live in VMEM
    for the whole grid (constant BlockSpec index_maps)."""
    compute_dtype = w1_ref.dtype  # bf16 on the fast path, f32 otherwise

    def dense(h, w_ref, b_ref, relu=True):
        # MXU matmul in the weight dtype (bf16/f32), f32 accumulation.
        y = jnp.dot(h, w_ref[...], preferred_element_type=jnp.float32)
        # Bias add + ReLU stay in f32 (cheap on all generations, incl. v5e).
        y = y + b_ref[...].astype(jnp.float32)
        if relu:
            # Cast the activation once here: the next layer's MXU operand is
            # already in the weight dtype and the carried tile is half-width.
            return jnp.maximum(y, 0.0).astype(compute_dtype)
        return y

    h = x_ref[...].astype(compute_dtype)
    h = dense(h, w1_ref, b1_ref)            # l1 + relu
    h = dense(h, w2_ref, b2_ref)            # l2 + relu2
    # dropo: nn.Dropout(p=0.4) -> identity at inference (eval) time.
    h = dense(h, w3_ref, b3_ref)            # l3 + relu3
    h = dense(h, w4_ref, b4_ref)            # l4 + relu4
    h = dense(h, w5_ref, b5_ref)            # l5 + relu5
    out = dense(h, w6_ref, b6_ref, relu=False)   # l6 (logits, f32)
    o_ref[...] = out.astype(o_ref.dtype)


def init_params(key, input_size, hidden_size, num_classes, dtype=jnp.float32):
    """Deterministic init mimicking nn.Linear default (uniform +-1/sqrt(fan_in)).
    Weights stored as (in_features, out_features) for x @ W."""
    dims = [input_size] + [hidden_size] * 5 + [num_classes]
    params = []
    for i in range(6):
        fan_in, fan_out = dims[i], dims[i + 1]
        key, kw, kb = jax.random.split(key, 3)
        bound = 1.0 / (fan_in ** 0.5)
        w = jax.random.uniform(kw, (fan_in, fan_out), jnp.float32, -bound, bound)
        b = jax.random.uniform(kb, (1, fan_out), jnp.float32, -bound, bound)
        params.append((w.astype(dtype), b.astype(dtype)))
    return params


def prepare_params(params, weight_dtype=jnp.bfloat16):
    """Pad + cast weights/biases ONCE (outside the jitted forward).

    Output feature dims are padded to multiples of 128 (lane-dense, exact for
    Linear+ReLU stacks since padded units get zero pre-activation and zero
    outgoing weights).  The layer-1 contraction dim is only padded to a
    multiple of 16 (sublane packing), not 128."""
    dims = [params[0][0].shape[0]] + [w.shape[1] for w, _ in params]
    pdims = [_round_up(dims[0], 16)] + [_round_up(d, _LANE) for d in dims[1:]]
    padded = []
    for i, (w, b) in enumerate(params):
        wp = _pad2d(w.astype(weight_dtype), pdims[i], pdims[i + 1])
        bp = _pad2d(b.astype(weight_dtype).reshape(1, -1), 1, pdims[i + 1])
        padded.append((wp, bp))
    return padded


@functools.partial(jax.jit,
                   static_argnames=("num_classes", "block_m", "out_dtype"))
def mlp_forward(x, padded_params, num_classes, *, block_m=512,
                out_dtype=jnp.float32):
    """x: (batch, in_features) f32.  padded_params: output of prepare_params.
    Returns (batch, num_classes) logits in out_dtype (f32 accumulation)."""
    batch, in_features = x.shape
    k_in = padded_params[0][0].shape[0]
    pdims = [k_in] + [w.shape[1] for w, _ in padded_params]

    # Batch tile: multiple of 128 (MXU-aligned), capped at block_m.  If the
    # whole batch fits one tile >= 256 rows, halve the tile so the grid has
    # >= 2 steps and can shard across the two v7x TensorCores.
    block_m = max(128, _round_up(block_m, 128))
    pbatch = _round_up(batch, 128)
    tm = min(block_m, pbatch)
    if pbatch // tm < 2 and tm >= 256:
        tm = _round_up(tm // 2, 128)
    pbatch = _round_up(batch, tm)
    grid = (pbatch // tm,)

    # Only x is padded per call (batch rows + tiny K pad); weights are already
    # padded/cast in prepare_params.
    xp = jnp.pad(x, ((0, pbatch - batch), (0, k_in - in_features)))

    # x/out tiles march over the batch; weights/biases use a constant block
    # index so they are fetched once and stay resident across all grid steps.
    in_specs = [pl.BlockSpec((tm, k_in), lambda i: (i, 0))]
    flat_args = [xp]
    for li, (w, b) in enumerate(padded_params):
        flat_args.append(w)
        flat_args.append(b)
        in_specs.append(pl.BlockSpec((pdims[li], pdims[li + 1]),
                                     lambda i: (0, 0)))
        in_specs.append(pl.BlockSpec((1, pdims[li + 1]), lambda i: (0, 0)))
    out_spec = pl.BlockSpec((tm, pdims[-1]), lambda i: (i, 0))

    out_padded = pl.pallas_call(
        _mlp_kernel,
        out_shape=jax.ShapeDtypeStruct((pbatch, pdims[-1]), out_dtype),
        grid=grid,
        in_specs=in_specs,
        out_specs=out_spec,
        compiler_params=pltpu.CompilerParams(
            dimension_semantics=("parallel",)),
    )(*flat_args)

    return out_padded[:batch, :num_classes]


def mlp_reference(x, params, compute_dtype=jnp.float32):
    """Plain-JAX reference with the same dtype scheme as the kernel
    (compute_dtype MXU operands, f32 accumulation / bias / ReLU)."""
    h = x.astype(jnp.float32)
    for i, (w, b) in enumerate(params):
        y = jnp.dot(h.astype(compute_dtype), w.astype(compute_dtype),
                    preferred_element_type=jnp.float32)
        y = y + b.astype(jnp.float32).reshape(1, -1)
        h = jnp.maximum(y, 0.0) if i < len(params) - 1 else y
    return h


if __name__ == "__main__":
    # Small but representative shapes: hidden_size matches the module (350 ->
    # padded 384); batch chosen so the grid has 2 steps at block_m=128.
    batch = 200
    input_size = 16
    hidden_size = 350
    num_classes = 4

    key = jax.random.PRNGKey(0)
    key, kx = jax.random.split(key)
    x = jax.random.normal(kx, (batch, input_size), jnp.float32)
    params = init_params(key, input_size, hidden_size, num_classes)

    # f32 path (exactness check vs reference).
    prepared_f32 = prepare_params(params, weight_dtype=jnp.float32)
    out_f32 = jax.block_until_ready(
        mlp_forward(x, prepared_f32, num_classes, block_m=128))
    ref_f32 = mlp_reference(x, params, jnp.float32)
    assert out_f32.shape == (batch, num_classes)
    assert jnp.allclose(out_f32, ref_f32, atol=1e-3, rtol=1e-3), \
        "f32 mismatch vs reference"

    # bf16 fast path (default for deployment): bf16 MXU operands + bf16
    # activation chain, f32 accumulation / bias / ReLU.
    params_bf16 = [(w.astype(jnp.bfloat16), b.astype(jnp.bfloat16))
                   for (w, b) in params]
    prepared_bf16 = prepare_params(params_bf16, weight_dtype=jnp.bfloat16)
    out_bf16 = jax.block_until_ready(
        mlp_forward(x, prepared_bf16, num_classes, block_m=128))
    ref_bf16 = mlp_reference(x, params_bf16, jnp.bfloat16)
    assert out_bf16.shape == (batch, num_classes)
    assert jnp.allclose(out_bf16, ref_bf16, atol=2e-2, rtol=2e-2), \
        "bf16 mismatch vs reference"

    # TODO(synk): training-mode Dropout(p=0.4) masking (pltpu.prng_*) not
    # implemented; forward here matches model.eval() semantics.
    print("KERNEL_OK")
</pallas_src>

<mosaic_0001>
module attributes {stable_mosaic.version = 11 : i64} {
  func.func @_mlp_kernel(%arg0: i32, %arg1: memref<128x16xf32, #tpu.memory_space<vmem>>, %arg2: memref<16x384xf32, #tpu.memory_space<vmem>>, %arg3: memref<1x384xf32, #tpu.memory_space<vmem>>, %arg4: memref<384x384xf32, #tpu.memory_space<vmem>>, %arg5: memref<1x384xf32, #tpu.memory_space<vmem>>, %arg6: memref<384x384xf32, #tpu.memory_space<vmem>>, %arg7: memref<1x384xf32, #tpu.memory_space<vmem>>, %arg8: memref<384x384xf32, #tpu.memory_space<vmem>>, %arg9: memref<1x384xf32, #tpu.memory_space<vmem>>, %arg10: memref<384x384xf32, #tpu.memory_space<vmem>>, %arg11: memref<1x384xf32, #tpu.memory_space<vmem>>, %arg12: memref<384x128xf32, #tpu.memory_space<vmem>>, %arg13: memref<1x128xf32, #tpu.memory_space<vmem>>, %arg14: memref<128x128xf32, #tpu.memory_space<vmem>>) attributes {dimension_semantics = [#tpu.dimension_semantics<parallel>], iteration_bounds = array<i64: 2>, scalar_prefetch = 0 : i64, scratch_operands = 0 : i64, tpu.core_type = #tpu.core_type<tc>, window_params = [{transform_indices = @transform_0, window_bounds = array<i64: 128, 16>}, {pipeline_mode = #tpu.pipeline_mode<synchronous>, transform_indices = @transform_1, window_bounds = array<i64: 16, 384>}, {pipeline_mode = #tpu.pipeline_mode<synchronous>, transform_indices = @transform_2, window_bounds = array<i64: 1, 384>}, {pipeline_mode = #tpu.pipeline_mode<synchronous>, transform_indices = @transform_3, window_bounds = array<i64: 384, 384>}, {pipeline_mode = #tpu.pipeline_mode<synchronous>, transform_indices = @transform_4, window_bounds = array<i64: 1, 384>}, {pipeline_mode = #tpu.pipeline_mode<synchronous>, transform_indices = @transform_5, window_bounds = array<i64: 384, 384>}, {pipeline_mode = #tpu.pipeline_mode<synchronous>, transform_indices = @transform_6, window_bounds = array<i64: 1, 384>}, {pipeline_mode = #tpu.pipeline_mode<synchronous>, transform_indices = @transform_7, window_bounds = array<i64: 384, 384>}, {pipeline_mode = #tpu.pipeline_mode<synchronous>, transform_indices = @transform_8, window_bounds = array<i64: 1, 384>}, {pipeline_mode = #tpu.pipeline_mode<synchronous>, transform_indices = @transform_9, window_bounds = array<i64: 384, 384>}, {pipeline_mode = #tpu.pipeline_mode<synchronous>, transform_indices = @transform_10, window_bounds = array<i64: 1, 384>}, {pipeline_mode = #tpu.pipeline_mode<synchronous>, transform_indices = @transform_11, window_bounds = array<i64: 384, 128>}, {pipeline_mode = #tpu.pipeline_mode<synchronous>, transform_indices = @transform_12, window_bounds = array<i64: 1, 128>}, {transform_indices = @transform_13, window_bounds = array<i64: 128, 128>}]} {
    %c0 = arith.constant 0 : index
    %c0_0 = arith.constant 0 : index
    %0 = vector.load %arg1[%c0, %c0_0] : memref<128x16xf32, #tpu.memory_space<vmem>>, vector<128x16xf32>
    %c0_1 = arith.constant 0 : index
    %c0_2 = arith.constant 0 : index
    %1 = vector.load %arg2[%c0_1, %c0_2] : memref<16x384xf32, #tpu.memory_space<vmem>>, vector<16x384xf32>
    %cst = arith.constant dense<0.000000e+00> : vector<128x384xf32>
    %2 = tpu.matmul %0, %1, %cst {dimension_numbers = #tpu.dot_dimension_numbers<[1], [0], [0], [1], [0, 0, 1, 1], [], []>} : vector<128x16xf32>, vector<16x384xf32>, vector<128x384xf32> -> vector<128x384xf32>
    %c0_3 = arith.constant 0 : index
    %c0_4 = arith.constant 0 : index
    %3 = vector.load %arg3[%c0_3, %c0_4] : memref<1x384xf32, #tpu.memory_space<vmem>>, vector<1x384xf32>
    %4 = vector.broadcast %3 : vector<1x384xf32> to vector<128x384xf32>
    %5 = arith.addf %2, %4 : vector<128x384xf32>
    %cst_5 = arith.constant 0.000000e+00 : f32
    %6 = vector.broadcast %cst_5 : f32 to vector<128x384xf32>
    %7 = arith.maximumf %5, %6 : vector<128x384xf32>
    %c0_6 = arith.constant 0 : index
    %c0_7 = arith.constant 0 : index
    %8 = vector.load %arg4[%c0_6, %c0_7] : memref<384x384xf32, #tpu.memory_space<vmem>>, vector<384x384xf32>
    %cst_8 = arith.constant dense<0.000000e+00> : vector<128x384xf32>
    %9 = tpu.matmul %7, %8, %cst_8 {dimension_numbers = #tpu.dot_dimension_numbers<[1], [0], [0], [1], [0, 0, 1, 1], [], []>} : vector<128x384xf32>, vector<384x384xf32>, vector<128x384xf32> -> vector<128x384xf32>
    %c0_9 = arith.constant 0 : index
    %c0_10 = arith.constant 0 : index
    %10 = vector.load %arg5[%c0_9, %c0_10] : memref<1x384xf32, #tpu.memory_space<vmem>>, vector<1x384xf32>
    %11 = vector.broadcast %10 : vector<1x384xf32> to vector<128x384xf32>
    %12 = arith.addf %9, %11 : vector<128x384xf32>
    %cst_11 = arith.constant 0.000000e+00 : f32
    %13 = vector.broadcast %cst_11 : f32 to vector<128x384xf32>
    %14 = arith.maximumf %12, %13 : vector<128x384xf32>
    %c0_12 = arith.constant 0 : index
    %c0_13 = arith.constant 0 : index
    %15 = vector.load %arg6[%c0_12, %c0_13] : memref<384x384xf32, #tpu.memory_space<vmem>>, vector<384x384xf32>
    %cst_14 = arith.constant dense<0.000000e+00> : vector<128x384xf32>
    %16 = tpu.matmul %14, %15, %cst_14 {dimension_numbers = #tpu.dot_dimension_numbers<[1], [0], [0], [1], [0, 0, 1, 1], [], []>} : vector<128x384xf32>, vector<384x384xf32>, vector<128x384xf32> -> vector<128x384xf32>
    %c0_15 = arith.constant 0 : index
    %c0_16 = arith.constant 0 : index
    %17 = vector.load %arg7[%c0_15, %c0_16] : memref<1x384xf32, #tpu.memory_space<vmem>>, vector<1x384xf32>
    %18 = vector.broadcast %17 : vector<1x384xf32> to vector<128x384xf32>
    %19 = arith.addf %16, %18 : vector<128x384xf32>
    %cst_17 = arith.constant 0.000000e+00 : f32
    %20 = vector.broadcast %cst_17 : f32 to vector<128x384xf32>
    %21 = arith.maximumf %19, %20 : vector<128x384xf32>
    %c0_18 = arith.constant 0 : index
    %c0_19 = arith.constant 0 : index
    %22 = vector.load %arg8[%c0_18, %c0_19] : memref<384x384xf32, #tpu.memory_space<vmem>>, vector<384x384xf32>
    %cst_20 = arith.constant dense<0.000000e+00> : vector<128x384xf32>
    %23 = tpu.matmul %21, %22, %cst_20 {dimension_numbers = #tpu.dot_dimension_numbers<[1], [0], [0], [1], [0, 0, 1, 1], [], []>} : vector<128x384xf32>, vector<384x384xf32>, vector<128x384xf32> -> vector<128x384xf32>
    %c0_21 = arith.constant 0 : index
    %c0_22 = arith.constant 0 : index
    %24 = vector.load %arg9[%c0_21, %c0_22] : memref<1x384xf32, #tpu.memory_space<vmem>>, vector<1x384xf32>
    %25 = vector.broadcast %24 : vector<1x384xf32> to vector<128x384xf32>
    %26 = arith.addf %23, %25 : vector<128x384xf32>
    %cst_23 = arith.constant 0.000000e+00 : f32
    %27 = vector.broadcast %cst_23 : f32 to vector<128x384xf32>
    %28 = arith.maximumf %26, %27 : vector<128x384xf32>
    %c0_24 = arith.constant 0 : index
    %c0_25 = arith.constant 0 : index
    %29 = vector.load %arg10[%c0_24, %c0_25] : memref<384x384xf32, #tpu.memory_space<vmem>>, vector<384x384xf32>
    %cst_26 = arith.constant dense<0.000000e+00> : vector<128x384xf32>
    %30 = tpu.matmul %28, %29, %cst_26 {dimension_numbers = #tpu.dot_dimension_numbers<[1], [0], [0], [1], [0, 0, 1, 1], [], []>} : vector<128x384xf32>, vector<384x384xf32>, vector<128x384xf32> -> vector<128x384xf32>
    %c0_27 = arith.constant 0 : index
    %c0_28 = arith.constant 0 : index
    %31 = vector.load %arg11[%c0_27, %c0_28] : memref<1x384xf32, #tpu.memory_space<vmem>>, vector<1x384xf32>
    %32 = vector.broadcast %31 : vector<1x384xf32> to vector<128x384xf32>
    %33 = arith.addf %30, %32 : vector<128x384xf32>
    %cst_29 = arith.constant 0.000000e+00 : f32
    %34 = vector.broadcast %cst_29 : f32 to vector<128x384xf32>
    %35 = arith.maximumf %33, %34 : vector<128x384xf32>
    %c0_30 = arith.constant 0 : index
    %c0_31 = arith.constant 0 : index
    %36 = vector.load %arg12[%c0_30, %c0_31] : memref<384x128xf32, #tpu.memory_space<vmem>>, vector<384x128xf32>
    %cst_32 = arith.constant dense<0.000000e+00> : vector<128x128xf32>
    %37 = tpu.matmul %35, %36, %cst_32 {dimension_numbers = #tpu.dot_dimension_numbers<[1], [0], [0], [1], [0, 0, 1, 1], [], []>} : vector<128x384xf32>, vector<384x128xf32>, vector<128x128xf32> -> vector<128x128xf32>
    %c0_33 = arith.constant 0 : index
    %c0_34 = arith.constant 0 : index
    %38 = vector.load %arg13[%c0_33, %c0_34] : memref<1x128xf32, #tpu.memory_space<vmem>>, vector<1x128xf32>
    %39 = vector.broadcast %38 : vector<1x128xf32> to vector<128x128xf32>
    %40 = arith.addf %37, %39 : vector<128x128xf32>
    %c0_35 = arith.constant 0 : index
    %c0_36 = arith.constant 0 : index
    %41 = vector.load %arg14[%c0_35, %c0_36] : memref<128x128xf32, #tpu.memory_space<vmem>>, vector<128x128xf32>
    tpu.vector_store %arg14[%c0_35, %c0_36], %40 {strides = array<i32>} : memref<128x128xf32, #tpu.memory_space<vmem>>, vector<128x128xf32>,
    return
  }
  func.func @transform_0(%arg0: i32) -> (i32, i32) {
    %c0_i32 = arith.constant 0 : i32
    %c0_i32_0 = arith.constant 0 : i32
    return %arg0, %c0_i32 : i32, i32
  }
  func.func @transform_1(%arg0: i32) -> (i32, i32) {
    %c0_i32 = arith.constant 0 : i32
    %c0_i32_0 = arith.constant 0 : i32
    %c0_i32_1 = arith.constant 0 : i32
    return %c0_i32, %c0_i32_0 : i32, i32
  }
  func.func @transform_2(%arg0: i32) -> (i32, i32) {
    %c0_i32 = arith.constant 0 : i32
    %c0_i32_0 = arith.constant 0 : i32
    %c0_i32_1 = arith.constant 0 : i32
    return %c0_i32, %c0_i32_0 : i32, i32
  }
  func.func @transform_3(%arg0: i32) -> (i32, i32) {
    %c0_i32 = arith.constant 0 : i32
    %c0_i32_0 = arith.constant 0 : i32
    %c0_i32_1 = arith.constant 0 : i32
    return %c0_i32, %c0_i32_0 : i32, i32
  }
  func.func @transform_4(%arg0: i32) -> (i32, i32) {
    %c0_i32 = arith.constant 0 : i32
    %c0_i32_0 = arith.constant 0 : i32
    %c0_i32_1 = arith.constant 0 : i32
    return %c0_i32, %c0_i32_0 : i32, i32
  }
  func.func @transform_5(%arg0: i32) -> (i32, i32) {
    %c0_i32 = arith.constant 0 : i32
    %c0_i32_0 = arith.constant 0 : i32
    %c0_i32_1 = arith.constant 0 : i32
    return %c0_i32, %c0_i32_0 : i32, i32
  }
  func.func @transform_6(%arg0: i32) -> (i32, i32) {
    %c0_i32 = arith.constant 0 : i32
    %c0_i32_0 = arith.constant 0 : i32
    %c0_i32_1 = arith.constant 0 : i32
    return %c0_i32, %c0_i32_0 : i32, i32
  }
  func.func @transform_7(%arg0: i32) -> (i32, i32) {
    %c0_i32 = arith.constant 0 : i32
    %c0_i32_0 = arith.constant 0 : i32
    %c0_i32_1 = arith.constant 0 : i32
    return %c0_i32, %c0_i32_0 : i32, i32
  }
  func.func @transform_8(%arg0: i32) -> (i32, i32) {
    %c0_i32 = arith.constant 0 : i32
    %c0_i32_0 = arith.constant 0 : i32
    %c0_i32_1 = arith.constant 0 : i32
    return %c0_i32, %c0_i32_0 : i32, i32
  }
  func.func @transform_9(%arg0: i32) -> (i32, i32) {
    %c0_i32 = arith.constant 0 : i32
    %c0_i32_0 = arith.constant 0 : i32
    %c0_i32_1 = arith.constant 0 : i32
    return %c0_i32, %c0_i32_0 : i32, i32
  }
  func.func @transform_10(%arg0: i32) -> (i32, i32) {
    %c0_i32 = arith.constant 0 : i32
    %c0_i32_0 = arith.constant 0 : i32
    %c0_i32_1 = arith.constant 0 : i32
    return %c0_i32, %c0_i32_0 : i32, i32
  }
  func.func @transform_11(%arg0: i32) -> (i32, i32) {
    %c0_i32 = arith.constant 0 : i32
    %c0_i32_0 = arith.constant 0 : i32
    %c0_i32_1 = arith.constant 0 : i32
    return %c0_i32, %c0_i32_0 : i32, i32
  }
  func.func @transform_12(%arg0: i32) -> (i32, i32) {
    %c0_i32 = arith.constant 0 : i32
    %c0_i32_0 = arith.constant 0 : i32
    %c0_i32_1 = arith.constant 0 : i32
    return %c0_i32, %c0_i32_0 : i32, i32
  }
  func.func @transform_13(%arg0: i32) -> (i32, i32) {
    %c0_i32 = arith.constant 0 : i32
    %c0_i32_0 = arith.constant 0 : i32
    return %arg0, %c0_i32 : i32, i32
  }
}

</mosaic_0001>

<llo_original>
// kernel: mlp_forward.1
$region0: #{mlp_forward.1}
  #allocation0 [shape = 'u32[]', space=smem, size = 0x4, offset = 0x4, fixed_abs, tag = 'smem constant byte address 0x4 - core index']
  #allocation1 [shape = 'u32[72,128]{1,0:T(1,128)}', space=vmem, size = 0x9000, scoped, tag = 'internal scratch']
  %s0 = inlined_call_operand.vmem [shape: f32[256,16], index: 0, kind: input, shape index: {}]
  %s1 = inlined_call_operand.vmem [shape: f32[16,384], index: 1, kind: input, shape index: {}]
  %s2 = inlined_call_operand.vmem [shape: f32[1,384], index: 2, kind: input, shape index: {}]
  %s3 = inlined_call_operand.hbm [shape: f32[384,384], index: 3, kind: input, shape index: {}]
  %s4 = inlined_call_operand.vmem [shape: f32[1,384], index: 4, kind: input, shape index: {}]
  %s5 = inlined_call_operand.hbm [shape: f32[384,384], index: 5, kind: input, shape index: {}]
  %s6 = inlined_call_operand.vmem [shape: f32[1,384], index: 6, kind: input, shape index: {}]
  %s7 = inlined_call_operand.hbm [shape: f32[384,384], index: 7, kind: input, shape index: {}]
  %s8 = inlined_call_operand.vmem [shape: f32[1,384], index: 8, kind: input, shape index: {}]
  %s9 = inlined_call_operand.hbm [shape: f32[384,384], index: 9, kind: input, shape index: {}]
  %s10 = inlined_call_operand.vmem [shape: f32[1,384], index: 10, kind: input, shape index: {}]
  %s11 = inlined_call_operand.vmem [shape: f32[384,128], index: 11, kind: input, shape index: {}]
  %s12 = inlined_call_operand.vmem [shape: f32[1,128], index: 12, kind: input, shape index: {}]
  %s13 = inlined_call_operand.vmem [shape: f32[256,128], index: 13, kind: output, shape index: {}]
  %s14 = sld [smem:[#allocation0]]
  $region101: #{mlp_forward.1} parent=0
    _
  %s16 = ssub.s32 1, %s14
  %s17 = scalar_select 0, %s16, %s14
  $region1: #{mlp_forward.1} parent=0
    #allocation2 [shape = 'u8[589824]{0}', space=vmem, size = 0x90000, scoped, tag = 'input window, operand 3, single buffered']
    #allocation3 [shape = 's32[2]{0}', space=sflag, size = 0x8, scoped, tag = 'scoped memory for mlp_forward.1']
    #allocation4 [shape = 'u8[589824]{0}', space=vmem, size = 0x90000, scoped, tag = 'input window, operand 5, single buffered']
    #allocation5 [shape = 's32[1]{0}', space=sflag, size = 0x4, scoped, tag = 'scoped memory for mlp_forward.1']
    #allocation6 [shape = 'u8[589824]{0}', space=vmem, size = 0x90000, scoped, tag = 'input window, operand 7, single buffered']
    #allocation7 [shape = 'u8[589824]{0}', space=vmem, size = 0x90000, scoped, tag = 'input window, operand 9, single buffered']
    #allocation8 [shape = 's32[1]{0}', space=sflag, size = 0x4, scoped, tag = 'scoped memory for mlp_forward.1']
    %18 = vsyncpa [#allocation3], 0
    %19 = vsyncpa [#allocation5], 0
    %20 = vsyncpa [#allocation8], 0
    loop: start=0, step=1, limit=4
    $region2: #{mlp_forward.1} parent=1 // loop_pre_header
      _
    $region3: #{mlp_forward.1} parent=1 // loop_header
      %s22 = sphi 0, %s26
      %p23 = scmp.ge.s32.totalorder %s22, 4
      %s32 = sphi 0, %s34
      %s35 = sphi 0, %s32
      %s36 = sphi 0, %s35
      %s52 = sphi 0, %s36
      %s56 = sphi 0, %s56
      %s58 = sphi 0, %s56
      %s59 = sphi 0, %s58
      %s73 = sphi 0, %s59
      %s77 = sphi 0, %s77
      %s79 = sphi 0, %s77
      %s80 = sphi 0, %s79
      %s94 = sphi 0, %s80
      %s98 = sphi 0, %s98
      %s100 = sphi 0, %s98
      %s101 = sphi 0, %s100
      %s115 = sphi 0, %s101
      %s119 = sphi 0, %s119
      %s121 = sphi 0, %s119
      %s122 = sphi 0, %s121
      %s136 = sphi 0, %s122
      %s140 = sphi 0, %s140
      %s142 = sphi 0, %s140
      %s143 = sphi 0, %s142
      %s157 = sphi 0, %s143
      %s161 = sphi 0, %s161
      %s163 = sphi 0, %s161
      %s164 = sphi 0, %s163
      %s178 = sphi 0, %s164
      %s182 = sphi 0, %s182
      %s184 = sphi 0, %s182
      %s185 = sphi 0, %s184
      %s199 = sphi 0, %s185
      %s203 = sphi 0, %s203
      %s205 = sphi 0, %s203
      %s206 = sphi 0, %s205
      %s220 = sphi 0, %s206
      %s224 = sphi 0, %s224
      %s226 = sphi 0, %s224
      %s227 = sphi 0, %s226
      %s241 = sphi 0, %s227
      %s245 = sphi 0, %s245
      %s247 = sphi 0, %s245
      %s248 = sphi 0, %s247
      %s262 = sphi 0, %s248
      %s266 = sphi 0, %s266
      %s268 = sphi 0, %s266
      %s269 = sphi 0, %s268
      %s283 = sphi 0, %s269
      %s287 = sphi 0, %s287
      %s289 = sphi 0, %s287
      %s290 = sphi 0, %s289
      %s304 = sphi 0, %s290
      %s310 = sphi 0, %s312
      %s313 = sphi 0, %s310
      %s314 = sphi 0, %s313
      %s330 = sphi 0, %s314
    $region4: #{mlp_forward.1} parent=1 // loop_header_branch
      %25 = sbr.rel (%p23) target = $region8
    $region5: #{mlp_forward.1} parent=1 // loop_body
      %s27 = ssub.s32 %s22, 1
      %s28 = ssub.s32 %s22, 2
      %s29 = sadd.s32 %s22, 1
      %s30 = ssub.s32 %s22, %s29
      %p31 = scmp.eq.s32.totalorder %s30, 0
      %s33 = sadd.s32 %s32, 1
      %s34 = scalar_select %p31, %s32, %s33
      %p37 = pneg %p31
      %p38 = scmp.eq.s32.totalorder %s22, 1
      %p39 = por %p37, %p38
      %p40 = scmp.ne.s32.totalorder %s32, %s35
      %p41 = scmp.eq.s32.totalorder %s22, 0
      %p42 = por %p40, %p41
      %p43 = scmp.ne.s32.totalorder %s32, %s35
      %p44 = scmp.eq.s32.totalorder %s27, 1
      %p45 = por %p43, %p44
      %p46 = scmp.ne.s32.totalorder %s35, %s36
      %p47 = scmp.eq.s32.totalorder %s27, 0
      %p48 = por %p46, %p47
      %p49 = scmp.ne.s32.totalorder %s35, %s36
      %p50 = scmp.eq.s32.totalorder %s28, 1
      %p51 = por %p49, %p50
      %p53 = scmp.ne.s32.totalorder %s36, %s52
      %p54 = scmp.eq.s32.totalorder %s28, 0
      %p55 = por %p53, %p54
      %s57 = sadd.s32 %s56, 1
      %p60 = scmp.eq.s32.totalorder %s22, 1
      %p61 = scmp.ne.s32.totalorder %s56, %s58
      %p62 = scmp.eq.s32.totalorder %s22, 0
      %p63 = por %p61, %p62
      %p64 = scmp.ne.s32.totalorder %s56, %s58
      %p65 = scmp.eq.s32.totalorder %s27, 1
      %p66 = por %p64, %p65
      %p67 = scmp.ne.s32.totalorder %s58, %s59
      %p68 = scmp.eq.s32.totalorder %s27, 0
      %p69 = por %p67, %p68
      %p70 = scmp.ne.s32.totalorder %s58, %s59
      %p71 = scmp.eq.s32.totalorder %s28, 1
      %p72 = por %p70, %p71
      %p74 = scmp.ne.s32.totalorder %s59, %s73
      %p75 = scmp.eq.s32.totalorder %s28, 0
      %p76 = por %p74, %p75
      %s78 = sadd.s32 %s77, 1
      %p81 = scmp.eq.s32.totalorder %s22, 1
      %p82 = scmp.ne.s32.totalorder %s77, %s79
      %p83 = scmp.eq.s32.totalorder %s22, 0
      %p84 = por %p82, %p83
      %p85 = scmp.ne.s32.totalorder %s77, %s79
      %p86 = scmp.eq.s32.totalorder %s27, 1
      %p87 = por %p85, %p86
      %p88 = scmp.ne.s32.totalorder %s79, %s80
      %p89 = scmp.eq.s32.totalorder %s27, 0
      %p90 = por %p88, %p89
      %p91 = scmp.ne.s32.totalorder %s79, %s80
      %p92 = scmp.eq.s32.totalorder %s28, 1
      %p93 = por %p91, %p92
      %p95 = scmp.ne.s32.totalorder %s80, %s94
      %p96 = scmp.eq.s32.totalorder %s28, 0
      %p97 = por %p95, %p96
      %s99 = sadd.s32 %s98, 1
      %p102 = scmp.eq.s32.totalorder %s22, 1
      %p103 = scmp.ne.s32.totalorder %s98, %s100
      %p104 = scmp.eq.s32.totalorder %s22, 0
      %p105 = por %p103, %p104
      %p106 = scmp.ne.s32.totalorder %s98, %s100
      %p107 = scmp.eq.s32.totalorder %s27, 1
      %p108 = por %p106, %p107
      %p109 = scmp.ne.s32.totalorder %s100, %s101
      %p110 = scmp.eq.s32.totalorder %s27, 0
      %p111 = por %p109, %p110
      %p112 = scmp.ne.s32.totalorder %s100, %s101
      %p113 = scmp.eq.s32.totalorder %s28, 1
      %p114 = por %p112, %p113
      %p116 = scmp.ne.s32.totalorder %s101, %s115
      %p117 = scmp.eq.s32.totalorder %s28, 0
      %p118 = por %p116, %p117
      %s120 = sadd.s32 %s119, 1
      %p123 = scmp.eq.s32.totalorder %s22, 1
      %p124 = scmp.ne.s32.totalorder %s119, %s121
      %p125 = scmp.eq.s32.totalorder %s22, 0
      %p126 = por %p124, %p125
      %p127 = scmp.ne.s32.totalorder %s119, %s121
      %p128 = scmp.eq.s32.totalorder %s27, 1
      %p129 = por %p127, %p128
      %p130 = scmp.ne.s32.totalorder %s121, %s122
      %p131 = scmp.eq.s32.totalorder %s27, 0
      %p132 = por %p130, %p131
      %p133 = scmp.ne.s32.totalorder %s121, %s122
      %p134 = scmp.eq.s32.totalorder %s28, 1
      %p135 = por %p133, %p134
      %p137 = scmp.ne.s32.totalorder %s122, %s136
      %p138 = scmp.eq.s32.totalorder %s28, 0
      %p139 = por %p137, %p138
      %s141 = sadd.s32 %s140, 1
      %p144 = scmp.eq.s32.totalorder %s22, 1
      %p145 = scmp.ne.s32.totalorder %s140, %s142
      %p146 = scmp.eq.s32.totalorder %s22, 0
      %p147 = por %p145, %p146
      %p148 = scmp.ne.s32.totalorder %s140, %s142
      %p149 = scmp.eq.s32.totalorder %s27, 1
      %p150 = por %p148, %p149
      %p151 = scmp.ne.s32.totalorder %s142, %s143
      %p152 = scmp.eq.s32.totalorder %s27, 0
      %p153 = por %p151, %p152
      %p154 = scmp.ne.s32.totalorder %s142, %s143
      %p155 = scmp.eq.s32.totalorder %s28, 1
      %p156 = por %p154, %p155
      %p158 = scmp.ne.s32.totalorder %s143, %s157
      %p159 = scmp.eq.s32.totalorder %s28, 0
      %p160 = por %p158, %p159
      %s162 = sadd.s32 %s161, 1
      %p165 = scmp.eq.s32.totalorder %s22, 1
      %p166 = scmp.ne.s32.totalorder %s161, %s163
      %p167 = scmp.eq.s32.totalorder %s22, 0
      %p168 = por %p166, %p167
      %p169 = scmp.ne.s32.totalorder %s161, %s163
      %p170 = scmp.eq.s32.totalorder %s27, 1
      %p171 = por %p169, %p170
      %p172 = scmp.ne.s32.totalorder %s163, %s164
      %p173 = scmp.eq.s32.totalorder %s27, 0
      %p174 = por %p172, %p173
      %p175 = scmp.ne.s32.totalorder %s163, %s164
      %p176 = scmp.eq.s32.totalorder %s28, 1
      %p177 = por %p175, %p176
      %p179 = scmp.ne.s32.totalorder %s164, %s178
      %p180 = scmp.eq.s32.totalorder %s28, 0
      %p181 = por %p179, %p180
      %s183 = sadd.s32 %s182, 1
      %p186 = scmp.eq.s32.totalorder %s22, 1
      %p187 = scmp.ne.s32.totalorder %s182, %s184
      %p188 = scmp.eq.s32.totalorder %s22, 0
      %p189 = por %p187, %p188
      %p190 = scmp.ne.s32.totalorder %s182, %s184
      %p191 = scmp.eq.s32.totalorder %s27, 1
      %p192 = por %p190, %p191
      %p193 = scmp.ne.s32.totalorder %s184, %s185
      %p194 = scmp.eq.s32.totalorder %s27, 0
      %p195 = por %p193, %p194
      %p196 = scmp.ne.s32.totalorder %s184, %s185
      %p197 = scmp.eq.s32.totalorder %s28, 1
      %p198 = por %p196, %p197
      %p200 = scmp.ne.s32.totalorder %s185, %s199
      %p201 = scmp.eq.s32.totalorder %s28, 0
      %p202 = por %p200, %p201
      %s204 = sadd.s32 %s203, 1
      %p207 = scmp.eq.s32.totalorder %s22, 1
      %p208 = scmp.ne.s32.totalorder %s203, %s205
      %p209 = scmp.eq.s32.totalorder %s22, 0
      %p210 = por %p208, %p209
      %p211 = scmp.ne.s32.totalorder %s203, %s205
      %p212 = scmp.eq.s32.totalorder %s27, 1
      %p213 = por %p211, %p212
      %p214 = scmp.ne.s32.totalorder %s205, %s206
      %p215 = scmp.eq.s32.totalorder %s27, 0
      %p216 = por %p214, %p215
      %p217 = scmp.ne.s32.totalorder %s205, %s206
      %p218 = scmp.eq.s32.totalorder %s28, 1
      %p219 = por %p217, %p218
      %p221 = scmp.ne.s32.totalorder %s206, %s220
      %p222 = scmp.eq.s32.totalorder %s28, 0
      %p223 = por %p221, %p222
      %s225 = sadd.s32 %s224, 1
      %p228 = scmp.eq.s32.totalorder %s22, 1
      %p229 = scmp.ne.s32.totalorder %s224, %s226
      %p230 = scmp.eq.s32.totalorder %s22, 0
      %p231 = por %p229, %p230
      %p232 = scmp.ne.s32.totalorder %s224, %s226
      %p233 = scmp.eq.s32.totalorder %s27, 1
      %p234 = por %p232, %p233
      %p235 = scmp.ne.s32.totalorder %s226, %s227
      %p236 = scmp.eq.s32.totalorder %s27, 0
      %p237 = por %p235, %p236
      %p238 = scmp.ne.s32.totalorder %s226, %s227
      %p239 = scmp.eq.s32.totalorder %s28, 1
      %p240 = por %p238, %p239
      %p242 = scmp.ne.s32.totalorder %s227, %s241
      %p243 = scmp.eq.s32.totalorder %s28, 0
      %p244 = por %p242, %p243
      %s246 = sadd.s32 %s245, 1
      %p249 = scmp.eq.s32.totalorder %s22, 1
      %p250 = scmp.ne.s32.totalorder %s245, %s247
      %p251 = scmp.eq.s32.totalorder %s22, 0
      %p252 = por %p250, %p251
      %p253 = scmp.ne.s32.totalorder %s245, %s247
      %p254 = scmp.eq.s32.totalorder %s27, 1
      %p255 = por %p253, %p254
      %p256 = scmp.ne.s32.totalorder %s247, %s248
      %p257 = scmp.eq.s32.totalorder %s27, 0
      %p258 = por %p256, %p257
      %p259 = scmp.ne.s32.totalorder %s247, %s248
      %p260 = scmp.eq.s32.totalorder %s28, 1
      %p261 = por %p259, %p260
      %p263 = scmp.ne.s32.totalorder %s248, %s262
      %p264 = scmp.eq.s32.totalorder %s28, 0
      %p265 = por %p263, %p264
      %s267 = sadd.s32 %s266, 1
      %p270 = scmp.eq.s32.totalorder %s22, 1
      %p271 = scmp.ne.s32.totalorder %s266, %s268
      %p272 = scmp.eq.s32.totalorder %s22, 0
      %p273 = por %p271, %p272
      %p274 = scmp.ne.s32.totalorder %s266, %s268
      %p275 = scmp.eq.s32.totalorder %s27, 1
      %p276 = por %p274, %p275
      %p277 = scmp.ne.s32.totalorder %s268, %s269
      %p278 = scmp.eq.s32.totalorder %s27, 0
      %p279 = por %p277, %p278
      %p280 = scmp.ne.s32.totalorder %s268, %s269
      %p281 = scmp.eq.s32.totalorder %s28, 1
      %p282 = por %p280, %p281
      %p284 = scmp.ne.s32.totalorder %s269, %s283
      %p285 = scmp.eq.s32.totalorder %s28, 0
      %p286 = por %p284, %p285
      %s288 = sadd.s32 %s287, 1
      %p291 = scmp.eq.s32.totalorder %s22, 1
      %p292 = scmp.ne.s32.totalorder %s287, %s289
      %p293 = scmp.eq.s32.totalorder %s22, 0
      %p294 = por %p292, %p293
      %p295 = scmp.ne.s32.totalorder %s287, %s289
      %p296 = scmp.eq.s32.totalorder %s27, 1
      %p297 = por %p295, %p296
      %p298 = scmp.ne.s32.totalorder %s289, %s290
      %p299 = scmp.eq.s32.totalorder %s27, 0
      %p300 = por %p298, %p299
      %p301 = scmp.ne.s32.totalorder %s289, %s290
      %p302 = scmp.eq.s32.totalorder %s28, 1
      %p303 = por %p301, %p302
      %p305 = scmp.ne.s32.totalorder %s290, %s304
      %p306 = scmp.eq.s32.totalorder %s28, 0
      %p307 = por %p305, %p306
      %s308 = ssub.s32 %s22, %s29
      %p309 = scmp.eq.s32.totalorder %s308, 0
      %s311 = sadd.s32 %s310, 1
      %s312 = scalar_select %p309, %s310, %s311
      %p315 = pneg %p309
      %p316 = scmp.eq.s32.totalorder %s22, 1
      %p317 = por %p315, %p316
      %p318 = scmp.ne.s32.totalorder %s310, %s313
      %p319 = scmp.eq.s32.totalorder %s22, 0
      %p320 = por %p318, %p319
      %p321 = scmp.ne.s32.totalorder %s310, %s313
      %p322 = scmp.eq.s32.totalorder %s27, 1
      %p323 = por %p321, %p322
      %p324 = scmp.ne.s32.totalorder %s313, %s314
      %p325 = scmp.eq.s32.totalorder %s27, 0
      %p326 = por %p324, %p325
      %p327 = scmp.ne.s32.totalorder %s313, %s314
      %p328 = scmp.eq.s32.totalorder %s28, 1
      %p329 = por %p327, %p328
      %p331 = scmp.ne.s32.totalorder %s314, %s330
      %p332 = scmp.eq.s32.totalorder %s28, 0
      %p333 = por %p331, %p332
      %p334 = scmp.le.s32.totalorder 1, %s22
      %p335 = scmp.lt.s32.totalorder %s22, 3
      %p336 = pnand %p334, %p335
      %p337 = pneg %p336
      // Predicated region
      $region9: #{mlp_forward.1} parent=5 // pred_check
        _
      $region10: #{mlp_forward.1} parent=5 // pred_check_branch
        %339 = sbr.rel (%p336) target = $region12
      $region11: #{mlp_forward.1} parent=5 // pred_region
        %s340 = ssub.s32 %s22, 1
        // Predicated region
        $region13: #{mlp_forward.1} parent=11 // pred_check
          %p341 = pneg %p69
        $region14: #{mlp_forward.1} parent=11 // pred_check_branch
          %343 = sbr.rel (%p341) target = $region16
        $region15: #{mlp_forward.1} parent=11 // pred_region
          _
        $region16: #{mlp_forward.1} parent=11 // pred_fallthru
          _
        // Predicated region
        $region17: #{mlp_forward.1} parent=11 // pred_check
          %p344 = pneg %p90
        $region18: #{mlp_forward.1} parent=11 // pred_check_branch
          %346 = sbr.rel (%p344) target = $region20
        $region19: #{mlp_forward.1} parent=11 // pred_region
          _
        $region20: #{mlp_forward.1} parent=11 // pred_fallthru
          _
        // Predicated region
        $region21: #{mlp_forward.1} parent=11 // pred_check
          %p347 = pneg %p111
        $region22: #{mlp_forward.1} parent=11 // pred_check_branch
          %349 = sbr.rel (%p347) target = $region24
        $region23: #{mlp_forward.1} parent=11 // pred_region
          %351 = vsyncadd [#allocation3], 0
          %s352 = sshll.u32 %s3, 4
          %s353 = int_to_ptr.hbm [resolvable:$true] %s352
          %s354 = sshll.u32 [#allocation2], 4
          %s355 = int_to_ptr.vmem [resolvable:$true] %s354
          %360 = dma.hbm_to_vmem [thread:$0]  %s353, 18432, %s355, [#allocation3], 384, 384, 24
        $region24: #{mlp_forward.1} parent=11 // pred_fallthru
          _
        // Predicated region
        $region25: #{mlp_forward.1} parent=11 // pred_check
          %p361 = pneg %p132
        $region26: #{mlp_forward.1} parent=11 // pred_check_branch
          %363 = sbr.rel (%p361) target = $region28
        $region27: #{mlp_forward.1} parent=11 // pred_region
          _
        $region28: #{mlp_forward.1} parent=11 // pred_fallthru
          _
        // Predicated region
        $region29: #{mlp_forward.1} parent=11 // pred_check
          %p364 = pneg %p153
        $region30: #{mlp_forward.1} parent=11 // pred_check_branch
          %366 = sbr.rel (%p364) target = $region32
        $region31: #{mlp_forward.1} parent=11 // pred_region
          %368 = vsyncadd [#allocation5], 0
          %s369 = sshll.u32 %s5, 4
          %s370 = int_to_ptr.hbm [resolvable:$true] %s369
          %s371 = sshll.u32 [#allocation4], 4
          %s372 = int_to_ptr.vmem [resolvable:$true] %s371
          %377 = dma.hbm_to_vmem [thread:$0]  %s370, 18432, %s372, [#allocation5], 384, 384, 24
        $region32: #{mlp_forward.1} parent=11 // pred_fallthru
          _
        // Predicated region
        $region33: #{mlp_forward.1} parent=11 // pred_check
          %p378 = pneg %p174
        $region34: #{mlp_forward.1} parent=11 // pred_check_branch
          %380 = sbr.rel (%p378) target = $region36
        $region35: #{mlp_forward.1} parent=11 // pred_region
          _
        $region36: #{mlp_forward.1} parent=11 // pred_fallthru
          _
        // Predicated region
        $region37: #{mlp_forward.1} parent=11 // pred_check
          %p381 = pneg %p195
        $region38: #{mlp_forward.1} parent=11 // pred_check_branch
          %383 = sbr.rel (%p381) target = $region40
        $region39: #{mlp_forward.1} parent=11 // pred_region
          %385 = vsyncadd [#allocation5], 0
          %s386 = sshll.u32 %s7, 4
          %s387 = int_to_ptr.hbm [resolvable:$true] %s386
          %s388 = sshll.u32 [#allocation6], 4
          %s389 = int_to_ptr.vmem [resolvable:$true] %s388
          %394 = dma.hbm_to_vmem [thread:$0]  %s387, 18432, %s389, [#allocation5], 384, 384, 24
        $region40: #{mlp_forward.1} parent=11 // pred_fallthru
          _
        // Predicated region
        $region41: #{mlp_forward.1} parent=11 // pred_check
          %p395 = pneg %p216
        $region42: #{mlp_forward.1} parent=11 // pred_check_branch
          %397 = sbr.rel (%p395) target = $region44
        $region43: #{mlp_forward.1} parent=11 // pred_region
          _
        $region44: #{mlp_forward.1} parent=11 // pred_fallthru
          _
        // Predicated region
        $region45: #{mlp_forward.1} parent=11 // pred_check
          %p398 = pneg %p237
        $region46: #{mlp_forward.1} parent=11 // pred_check_branch
          %400 = sbr.rel (%p398) target = $region48
        $region47: #{mlp_forward.1} parent=11 // pred_region
          %402 = vsyncadd [#allocation8], 0
          %s403 = sshll.u32 %s9, 4
          %s404 = int_to_ptr.hbm [resolvable:$true] %s403
          %s405 = sshll.u32 [#allocation7], 4
          %s406 = int_to_ptr.vmem [resolvable:$true] %s405
          %411 = dma.hbm_to_vmem [thread:$0]  %s404, 18432, %s406, [#allocation8], 384, 384, 24
        $region48: #{mlp_forward.1} parent=11 // pred_fallthru
          _
        // Predicated region
        $region49: #{mlp_forward.1} parent=11 // pred_check
          %p412 = pneg %p258
        $region50: #{mlp_forward.1} parent=11 // pred_check_branch
          %414 = sbr.rel (%p412) target = $region52
        $region51: #{mlp_forward.1} parent=11 // pred_region
          _
        $region52: #{mlp_forward.1} parent=11 // pred_fallthru
          _
        // Predicated region
        $region53: #{mlp_forward.1} parent=11 // pred_check
          %p415 = pneg %p279
        $region54: #{mlp_forward.1} parent=11 // pred_check_branch
          %417 = sbr.rel (%p415) target = $region56
        $region55: #{mlp_forward.1} parent=11 // pred_region
          _
        $region56: #{mlp_forward.1} parent=11 // pred_fallthru
          _
        // Predicated region
        $region57: #{mlp_forward.1} parent=11 // pred_check
          %p418 = pneg %p300
        $region58: #{mlp_forward.1} parent=11 // pred_check_branch
          %420 = sbr.rel (%p418) target = $region60
        $region59: #{mlp_forward.1} parent=11 // pred_region
          _
        $region60: #{mlp_forward.1} parent=11 // pred_fallthru
          _
      $region12: #{mlp_forward.1} parent=5 // pred_fallthru
        _
      %p421 = scmp.lt.s32.totalorder %s22, 2
      // Predicated region
      $region61: #{mlp_forward.1} parent=5 // pred_check
        %p422 = pneg %p421
      $region62: #{mlp_forward.1} parent=5 // pred_check_branch
        %424 = sbr.rel (%p422) target = $region64
      $region63: #{mlp_forward.1} parent=5 // pred_region
        // Predicated region
        $region65: #{mlp_forward.1} parent=63 // pred_check
          %p425 = pneg %p42
        $region66: #{mlp_forward.1} parent=63 // pred_check_branch
          %427 = sbr.rel (%p425) target = $region68
        $region67: #{mlp_forward.1} parent=63 // pred_region
          %s428 = smul.u32 16, %s22
          %p429 = scmp.lt.s32.totalorder %s428, 31
          %s430 = scalar_select %p429, %s428, 31
          %s431 = smul.addr %s430, 8
          %s432 = scalar_lea.vmem %s0, %s431
          %s433 = smul.u32 16, %s22
        $region68: #{mlp_forward.1} parent=63 // pred_fallthru
          _
      $region64: #{mlp_forward.1} parent=5 // pred_fallthru
        _
      %p434 = scmp.le.s32.totalorder 1, %s22
      %p435 = scmp.lt.s32.totalorder %s22, 3
      %p436 = pnand %p434, %p435
      %p437 = pneg %p436
      // Predicated region
      $region69: #{mlp_forward.1} parent=5 // pred_check
        _
      $region70: #{mlp_forward.1} parent=5 // pred_check_branch
        %439 = sbr.rel (%p436) target = $region72
      $region71: #{mlp_forward.1} parent=5 // pred_region
        %s440 = ssub.s32 %s22, 1
        // Predicated region
        $region73: #{mlp_forward.1} parent=71 // pred_check
          %p441 = pneg %p111
        $region74: #{mlp_forward.1} parent=71 // pred_check_branch
          %443 = sbr.rel (%p441) target = $region76
        $region75: #{mlp_forward.1} parent=71 // pred_region
          %445 = dma.done [#allocation3], 18432
        $region76: #{mlp_forward.1} parent=71 // pred_fallthru
          _
        // Predicated region
        $region77: #{mlp_forward.1} parent=71 // pred_check
          %p446 = pneg %p153
        $region78: #{mlp_forward.1} parent=71 // pred_check_branch
          %448 = sbr.rel (%p446) target = $region80
        $region79: #{mlp_forward.1} parent=71 // pred_region
          %450 = dma.done [#allocation5], 18432
        $region80: #{mlp_forward.1} parent=71 // pred_fallthru
          _
        // Predicated region
        $region81: #{mlp_forward.1} parent=71 // pred_check
          %p451 = pneg %p195
        $region82: #{mlp_forward.1} parent=71 // pred_check_branch
          %453 = sbr.rel (%p451) target = $region84
        $region83: #{mlp_forward.1} parent=71 // pred_region
          %455 = dma.done [#allocation5], 18432
        $region84: #{mlp_forward.1} parent=71 // pred_fallthru
          _
        // Predicated region
        $region85: #{mlp_forward.1} parent=71 // pred_check
          %p456 = pneg %p237
        $region86: #{mlp_forward.1} parent=71 // pred_check_branch
          %458 = sbr.rel (%p456) target = $region88
        $region87: #{mlp_forward.1} parent=71 // pred_region
          %460 = dma.done [#allocation8], 18432
        $region88: #{mlp_forward.1} parent=71 // pred_fallthru
          _
        %s461 = smul.u32 16, %s27
        %p462 = scmp.lt.s32.totalorder %s461, 31
        %s463 = scalar_select %p462, %s461, 31
        %s464 = smul.addr %s463, 8
        %s465 = scalar_lea.vmem %s0, %s464
        %p466 = pneg %p48
        %p467 = pneg %p45
        %p468 = pneg %p69
        %p469 = pneg %p66
        %p470 = pneg %p90
        %p471 = pneg %p87
        %p472 = pneg %p111
        %p473 = pneg %p108
        %p474 = pneg %p132
        %p475 = pneg %p129
        %p476 = pneg %p153
        %p477 = pneg %p150
        %p478 = pneg %p174
        %p479 = pneg %p171
        %p480 = pneg %p195
        %p481 = pneg %p192
        %p482 = pneg %p216
        %p483 = pneg %p213
        %p484 = pneg %p237
        %p485 = pneg %p234
        %p486 = pneg %p258
        %p487 = pneg %p255
        %p488 = pneg %p279
        %p489 = pneg %p276
        %p490 = pneg %p300
        %p491 = pneg %p297
        %p492 = pneg %p326
        %p493 = pneg %p323
        %s494 = smul.u32 16, %s27
        %p495 = scmp.lt.s32.totalorder %s494, 31
        %s496 = scalar_select %p495, %s494, 31
        %s497 = smul.addr %s496, 8
        %s498 = scalar_lea.vmem %s13, %s497
        %s499 = smul.u32 16, %s27
        %p500 = scmp.lt.s32.totalorder %s499, 31
        %s501 = scalar_select %p500, %s499, 31
        %s502 = smul.addr %s501, 8
        %s503 = scalar_lea.vmem %s0, %s502
        %s504 = smul.u32 16, %s27
        %s505 = smul.u32 16, %s27
        %p506 = scmp.lt.s32.totalorder %s505, 31
        %s507 = scalar_select %p506, %s505, 31
        %s508 = smul.addr %s507, 8
        %s509 = scalar_lea.vmem %s13, %s508
        %s510 = smul.u32 16, %s27
        %v511 = vld [vmem:[%s503] sm:$0xff]
        %v512 = vld [vmem:[%s503 + $0x8] sm:$0xff]
        %v513 = vld [vmem:[%s503 + $0x10] sm:$0xff]
        %v514 = vld [vmem:[%s503 + $0x18] sm:$0xff]
        %v515 = vld [vmem:[%s503 + $0x20] sm:$0xff]
        %v516 = vld [vmem:[%s503 + $0x28] sm:$0xff]
        %v517 = vld [vmem:[%s503 + $0x30] sm:$0xff]
        %v518 = vld [vmem:[%s503 + $0x38] sm:$0xff]
        %v519 = vld [vmem:[%s503 + $0x40] sm:$0xff]
        %v520 = vld [vmem:[%s503 + $0x48] sm:$0xff]
        %v521 = vld [vmem:[%s503 + $0x50] sm:$0xff]
        %v522 = vld [vmem:[%s503 + $0x58] sm:$0xff]
        %v523 = vld [vmem:[%s503 + $0x60] sm:$0xff]
        %v524 = vld [vmem:[%s503 + $0x68] sm:$0xff]
        %v525 = vld [vmem:[%s503 + $0x70] sm:$0xff]
        %v526 = vld [vmem:[%s503 + $0x78] sm:$0xff]
        %v527 = vld [vmem:[%s1] sm:$0xff]
        %v528 = vld [vmem:[%s1 + $0x8] sm:$0xff]
        %v529 = vld [vmem:[%s1 + $0x10] sm:$0xff]
        %v530 = vld [vmem:[%s1 + $0x18] sm:$0xff]
        %v531 = vld [vmem:[%s1 + $0x20] sm:$0xff]
        %v532 = vld [vmem:[%s1 + $0x28] sm:$0xff]
        %v533 = vld [vmem:[%s2] sm:$0x7]
        %v535 = vperm.slane %v533, 0
        %v536 = vperm.slane %v533, 1
        %v537 = vperm.slane %v533, 2
        %vm541 = vcmask 130048
        %v543 = vsel %vm541, %v511, 0
        %v546 = vsel %vm541, %v512, 0
        %v549 = vsel %vm541, %v513, 0
        %v552 = vsel %vm541, %v514, 0
        %v555 = vsel %vm541, %v515, 0
        %v558 = vsel %vm541, %v516, 0
        %v561 = vsel %vm541, %v517, 0
        %v564 = vsel %vm541, %v518, 0
        %v567 = vsel %vm541, %v519, 0
        %v570 = vsel %vm541, %v520, 0
        %v573 = vsel %vm541, %v521, 0
        %v576 = vsel %vm541, %v522, 0
        %v579 = vsel %vm541, %v523, 0
        %v582 = vsel %vm541, %v524, 0
        %v585 = vsel %vm541, %v525, 0
        %v588 = vsel %vm541, %v526, 0
        %590 = vmatpush.msra.mxu0 0.0
        %591 = vmatpush.msra.mxu0 0.0
        %592 = vmatpush.msra.mxu0 0.0
        %593 = vmatpush.msra.mxu0 0.0
        %594 = vmatpush.msra.mxu0 0.0
        %595 = vmatpush.msra.mxu0 0.0
        %596 = vmatpush.msra.mxu0 0.0
        %597 = vmatpush.msra.mxu0 0.0
        %598 = vmatpush.msra.mxu0 0.0
        %599 = vmatpush.msra.mxu0 0.0
        %600 = vmatpush.msra.mxu0 0.0
        %601 = vmatpush.msra.mxu0 0.0
        %602 = vmatpush.msra.mxu0 0.0
        %603 = vmatpush.msra.mxu0 0.0
        %604 = vmatpush.msra.mxu0 %v530
        %605 = vmatpush.msra.mxu0 %v527
        %606 = vmatmul.f32.gmra.mxu0 %v543
        %v607 = vpop.f32.mrf.mxu0
        %v608 = vadd.f32 %v535, %v607
        %609 = vmatmul.f32.gmra.mxu0 %v546
        %v610 = vpop.f32.mrf.mxu0
        %v611 = vadd.f32 %v535, %v610
        %612 = vmatmul.f32.gmra.mxu0 %v549
        %v613 = vpop.f32.mrf.mxu0
        %v614 = vadd.f32 %v535, %v613
        %615 = vmatmul.f32.gmra.mxu0 %v552
        %v616 = vpop.f32.mrf.mxu0
        %v617 = vadd.f32 %v535, %v616
        %618 = vmatmul.f32.gmra.mxu0 %v555
        %v619 = vpop.f32.mrf.mxu0
        %v620 = vadd.f32 %v535, %v619
        %621 = vmatmul.f32.gmra.mxu0 %v558
        %v622 = vpop.f32.mrf.mxu0
        %v623 = vadd.f32 %v535, %v622
        %624 = vmatmul.f32.gmra.mxu0 %v561
        %v625 = vpop.f32.mrf.mxu0
        %v626 = vadd.f32 %v535, %v625
        %627 = vmatmul.f32.gmra.mxu0 %v564
        %v628 = vpop.f32.mrf.mxu0
        %v629 = vadd.f32 %v535, %v628
        %630 = vmatmul.f32.gmra.mxu0 %v567
        %v631 = vpop.f32.mrf.mxu0
        %v632 = vadd.f32 %v535, %v631
        %633 = vmatmul.f32.gmra.mxu0 %v570
        %v634 = vpop.f32.mrf.mxu0
        %v635 = vadd.f32 %v535, %v634
        %636 = vmatmul.f32.gmra.mxu0 %v573
        %v637 = vpop.f32.mrf.mxu0
        %v638 = vadd.f32 %v535, %v637
        %639 = vmatmul.f32.gmra.mxu0 %v576
        %v640 = vpop.f32.mrf.mxu0
        %v641 = vadd.f32 %v535, %v640
        %642 = vmatmul.f32.gmra.mxu0 %v579
        %v643 = vpop.f32.mrf.mxu0
        %v644 = vadd.f32 %v535, %v643
        %645 = vmatmul.f32.gmra.mxu0 %v582
        %v646 = vpop.f32.mrf.mxu0
        %v647 = vadd.f32 %v535, %v646
        %648 = vmatmul.f32.gmra.mxu0 %v585
        %v649 = vpop.f32.mrf.mxu0
        %v650 = vadd.f32 %v535, %v649
        %651 = vmatmul.f32.gmra.mxu0 %v588
        %v652 = vpop.f32.mrf.mxu0
        %v653 = vadd.f32 %v535, %v652
        %654 = vdwg.mxu0
        %655 = vmatpush.msra.mxu0 0.0
        %656 = vmatpush.msra.mxu0 0.0
        %657 = vmatpush.msra.mxu0 0.0
        %658 = vmatpush.msra.mxu0 0.0
        %659 = vmatpush.msra.mxu0 0.0
        %660 = vmatpush.msra.mxu0 0.0
        %661 = vmatpush.msra.mxu0 0.0
        %662 = vmatpush.msra.mxu0 0.0
        %663 = vmatpush.msra.mxu0 0.0
        %664 = vmatpush.msra.mxu0 0.0
        %665 = vmatpush.msra.mxu0 0.0
        %666 = vmatpush.msra.mxu0 0.0
        %667 = vmatpush.msra.mxu0 0.0
        %668 = vmatpush.msra.mxu0 0.0
        %669 = vmatpush.msra.mxu0 %v531
        %670 = vmatpush.msra.mxu0 %v528
        %671 = vmatmul.f32.gmra.mxu0 %v543
        %v672 = vpop.f32.mrf.mxu0
        %v673 = vadd.f32 %v536, %v672
        %674 = vmatmul.f32.gmra.mxu0 %v546
        %v675 = vpop.f32.mrf.mxu0
        %v676 = vadd.f32 %v536, %v675
        %677 = vmatmul.f32.gmra.mxu0 %v549
        %v678 = vpop.f32.mrf.mxu0
        %v679 = vadd.f32 %v536, %v678
        %680 = vmatmul.f32.gmra.mxu0 %v552
        %v681 = vpop.f32.mrf.mxu0
        %v682 = vadd.f32 %v536, %v681
        %683 = vmatmul.f32.gmra.mxu0 %v555
        %v684 = vpop.f32.mrf.mxu0
        %v685 = vadd.f32 %v536, %v684
        %686 = vmatmul.f32.gmra.mxu0 %v558
        %v687 = vpop.f32.mrf.mxu0
        %v688 = vadd.f32 %v536, %v687
        %689 = vmatmul.f32.gmra.mxu0 %v561
        %v690 = vpop.f32.mrf.mxu0
        %v691 = vadd.f32 %v536, %v690
        %692 = vmatmul.f32.gmra.mxu0 %v564
        %v693 = vpop.f32.mrf.mxu0
        %v694 = vadd.f32 %v536, %v693
        %695 = vmatmul.f32.gmra.mxu0 %v567
        %v696 = vpop.f32.mrf.mxu0
        %v697 = vadd.f32 %v536, %v696
        %698 = vmatmul.f32.gmra.mxu0 %v570
        %v699 = vpop.f32.mrf.mxu0
        %v700 = vadd.f32 %v536, %v699
        %701 = vmatmul.f32.gmra.mxu0 %v573
        %v702 = vpop.f32.mrf.mxu0
        %v703 = vadd.f32 %v536, %v702
        %704 = vmatmul.f32.gmra.mxu0 %v576
        %v705 = vpop.f32.mrf.mxu0
        %v706 = vadd.f32 %v536, %v705
        %707 = vmatmul.f32.gmra.mxu0 %v579
        %v708 = vpop.f32.mrf.mxu0
        %v709 = vadd.f32 %v536, %v708
        %710 = vmatmul.f32.gmra.mxu0 %v582
        %v711 = vpop.f32.mrf.mxu0
        %v712 = vadd.f32 %v536, %v711
        %713 = vmatmul.f32.gmra.mxu0 %v585
        %v714 = vpop.f32.mrf.mxu0
        %v715 = vadd.f32 %v536, %v714
        %716 = vmatmul.f32.gmra.mxu0 %v588
        %v717 = vpop.f32.mrf.mxu0
        %v718 = vadd.f32 %v536, %v717
        %719 = vdwg.mxu0
        %720 = vmatpush.msra.mxu0 0.0
        %721 = vmatpush.msra.mxu0 0.0
        %722 = vmatpush.msra.mxu0 0.0
        %723 = vmatpush.msra.mxu0 0.0
        %724 = vmatpush.msra.mxu0 0.0
        %725 = vmatpush.msra.mxu0 0.0
        %726 = vmatpush.msra.mxu0 0.0
        %727 = vmatpush.msra.mxu0 0.0
        %728 = vmatpush.msra.mxu0 0.0
        %729 = vmatpush.msra.mxu0 0.0
        %730 = vmatpush.msra.mxu0 0.0
        %731 = vmatpush.msra.mxu0 0.0
        %732 = vmatpush.msra.mxu0 0.0
        %733 = vmatpush.msra.mxu0 0.0
        %734 = vmatpush.msra.mxu0 %v532
        %735 = vmatpush.msra.mxu0 %v529
        %736 = vmatmul.f32.gmra.mxu0 %v543
        %v737 = vpop.f32.mrf.mxu0
        %v738 = vadd.f32 %v537, %v737
        %739 = vmatmul.f32.gmra.mxu0 %v546
        %v740 = vpop.f32.mrf.mxu0
        %v741 = vadd.f32 %v537, %v740
        %742 = vmatmul.f32.gmra.mxu0 %v549
        %v743 = vpop.f32.mrf.mxu0
        %v744 = vadd.f32 %v537, %v743
        %745 = vmatmul.f32.gmra.mxu0 %v552
        %v746 = vpop.f32.mrf.mxu0
        %v747 = vadd.f32 %v537, %v746
        %748 = vmatmul.f32.gmra.mxu0 %v555
        %v749 = vpop.f32.mrf.mxu0
        %v750 = vadd.f32 %v537, %v749
        %751 = vmatmul.f32.gmra.mxu0 %v558
        %v752 = vpop.f32.mrf.mxu0
        %v753 = vadd.f32 %v537, %v752
        %754 = vmatmul.f32.gmra.mxu0 %v561
        %v755 = vpop.f32.mrf.mxu0
        %v756 = vadd.f32 %v537, %v755
        %757 = vmatmul.f32.gmra.mxu0 %v564
        %v758 = vpop.f32.mrf.mxu0
        %v759 = vadd.f32 %v537, %v758
        %760 = vmatmul.f32.gmra.mxu0 %v567
        %v761 = vpop.f32.mrf.mxu0
        %v762 = vadd.f32 %v537, %v761
        %763 = vmatmul.f32.gmra.mxu0 %v570
        %v764 = vpop.f32.mrf.mxu0
        %v765 = vadd.f32 %v537, %v764
        %766 = vmatmul.f32.gmra.mxu0 %v573
        %v767 = vpop.f32.mrf.mxu0
        %v768 = vadd.f32 %v537, %v767
        %769 = vmatmul.f32.gmra.mxu0 %v576
        %v770 = vpop.f32.mrf.mxu0
        %v771 = vadd.f32 %v537, %v770
        %772 = vmatmul.f32.gmra.mxu0 %v579
        %v773 = vpop.f32.mrf.mxu0
        %v774 = vadd.f32 %v537, %v773
        %775 = vmatmul.f32.gmra.mxu0 %v582
        %v776 = vpop.f32.mrf.mxu0
        %v777 = vadd.f32 %v537, %v776
        %778 = vmatmul.f32.gmra.mxu0 %v585
        %v779 = vpop.f32.mrf.mxu0
        %v780 = vadd.f32 %v537, %v779
        %781 = vmatmul.f32.gmra.mxu0 %v588
        %v782 = vpop.f32.mrf.mxu0
        %v783 = vadd.f32 %v537, %v782
        %784 = vdwg.mxu0
        %v785 = vmax.f32 %v608, 0.0
        %v786 = vmax.f32 %v673, 0.0
        %v787 = vmax.f32 %v738, 0.0
        %v788 = vmax.f32 %v611, 0.0
        %v789 = vmax.f32 %v676, 0.0
        %v790 = vmax.f32 %v741, 0.0
        %v791 = vmax.f32 %v614, 0.0
        %v792 = vmax.f32 %v679, 0.0
        %v793 = vmax.f32 %v744, 0.0
        %v794 = vmax.f32 %v617, 0.0
        %v795 = vmax.f32 %v682, 0.0
        %v796 = vmax.f32 %v747, 0.0
        %v797 = vmax.f32 %v620, 0.0
        %v798 = vmax.f32 %v685, 0.0
        %v799 = vmax.f32 %v750, 0.0
        %v800 = vmax.f32 %v623, 0.0
        %v801 = vmax.f32 %v688, 0.0
        %v802 = vmax.f32 %v753, 0.0
        %v803 = vmax.f32 %v626, 0.0
        %v804 = vmax.f32 %v691, 0.0
        %v805 = vmax.f32 %v756, 0.0
        %v806 = vmax.f32 %v629, 0.0
        %v807 = vmax.f32 %v694, 0.0
        %v808 = vmax.f32 %v759, 0.0
        %v809 = vmax.f32 %v632, 0.0
        %v810 = vmax.f32 %v697, 0.0
        %v811 = vmax.f32 %v762, 0.0
        %v812 = vmax.f32 %v635, 0.0
        %v813 = vmax.f32 %v700, 0.0
        %v814 = vmax.f32 %v765, 0.0
        %v815 = vmax.f32 %v638, 0.0
        %v816 = vmax.f32 %v703, 0.0
        %v817 = vmax.f32 %v768, 0.0
        %v818 = vmax.f32 %v641, 0.0
        %v819 = vmax.f32 %v706, 0.0
        %v820 = vmax.f32 %v771, 0.0
        %v821 = vmax.f32 %v644, 0.0
        %v822 = vmax.f32 %v709, 0.0
        %v823 = vmax.f32 %v774, 0.0
        %v824 = vmax.f32 %v647, 0.0
        %v825 = vmax.f32 %v712, 0.0
        %v826 = vmax.f32 %v777, 0.0
        %v827 = vmax.f32 %v650, 0.0
        %v828 = vmax.f32 %v715, 0.0
        %v829 = vmax.f32 %v780, 0.0
        %v830 = vmax.f32 %v653, 0.0
        %v831 = vmax.f32 %v718, 0.0
        %v832 = vmax.f32 %v783, 0.0
        %v833 = vld [vmem:[#allocation2] sm:$0xff]
        %v834 = vld [vmem:[#allocation2 + $0x8] sm:$0xff]
        %v835 = vld [vmem:[#allocation2 + $0x10] sm:$0xff]
        %v836 = vld [vmem:[#allocation2 + $0x18] sm:$0xff]
        %v837 = vld [vmem:[#allocation2 + $0x20] sm:$0xff]
        %v838 = vld [vmem:[#allocation2 + $0x28] sm:$0xff]
        %v839 = vld [vmem:[#allocation2 + $0x30] sm:$0xff]
        %v840 = vld [vmem:[#allocation2 + $0x38] sm:$0xff]
        %v841 = vld [vmem:[#allocation2 + $0x40] sm:$0xff]
        %v842 = vld [vmem:[#allocation2 + $0x48] sm:$0xff]
        %v843 = vld [vmem:[#allocation2 + $0x50] sm:$0xff]
        %v844 = vld [vmem:[#allocation2 + $0x58] sm:$0xff]
        %v845 = vld [vmem:[#allocation2 + $0x60] sm:$0xff]
        %v846 = vld [vmem:[#allocation2 + $0x68] sm:$0xff]
        %v847 = vld [vmem:[#allocation2 + $0x70] sm:$0xff]
        %v848 = vld [vmem:[#allocation2 + $0x78] sm:$0xff]
        %v849 = vld [vmem:[#allocation2 + $0x80] sm:$0xff]
        %v850 = vld [vmem:[#allocation2 + $0x88] sm:$0xff]
        %v851 = vld [vmem:[#allocation2 + $0x90] sm:$0xff]
        %v852 = vld [vmem:[#allocation2 + $0x98] sm:$0xff]
        %v853 = vld [vmem:[#allocation2 + $0xa0] sm:$0xff]
        %v854 = vld [vmem:[#allocation2 + $0xa8] sm:$0xff]
        %v855 = vld [vmem:[#allocation2 + $0xb0] sm:$0xff]
        %v856 = vld [vmem:[#allocation2 + $0xb8] sm:$0xff]
        %v857 = vld [vmem:[#allocation2 + $0xc0] sm:$0xff]
        %v858 = vld [vmem:[#allocation2 + $0xc8] sm:$0xff]
        %v859 = vld [vmem:[#allocation2 + $0xd0] sm:$0xff]
        %v860 = vld [vmem:[#allocation2 + $0xd8] sm:$0xff]
        %v861 = vld [vmem:[#allocation2 + $0xe0] sm:$0xff]
        %v862 = vld [vmem:[#allocation2 + $0xe8] sm:$0xff]
        %v863 = vld [vmem:[#allocation2 + $0xf0] sm:$0xff]
        %v864 = vld [vmem:[#allocation2 + $0xf8] sm:$0xff]
        %v865 = vld [vmem:[#allocation2 + $0x100] sm:$0xff]
        %v866 = vld [vmem:[#allocation2 + $0x108] sm:$0xff]
        %v867 = vld [vmem:[#allocation2 + $0x110] sm:$0xff]
        %v868 = vld [vmem:[#allocation2 + $0x118] sm:$0xff]
        %v869 = vld [vmem:[#allocation2 + $0x120] sm:$0xff]
        %v870 = vld [vmem:[#allocation2 + $0x128] sm:$0xff]
        %v871 = vld [vmem:[#allocation2 + $0x130] sm:$0xff]
        %v872 = vld [vmem:[#allocation2 + $0x138] sm:$0xff]
        %v873 = vld [vmem:[#allocation2 + $0x140] sm:$0xff]
        %v874 = vld [vmem:[#allocation2 + $0x148] sm:$0xff]
        %v875 = vld [vmem:[#allocation2 + $0x150] sm:$0xff]
        %v876 = vld [vmem:[#allocation2 + $0x158] sm:$0xff]
        %v877 = vld [vmem:[#allocation2 + $0x160] sm:$0xff]
        %v878 = vld [vmem:[#allocation2 + $0x168] sm:$0xff]
        %v879 = vld [vmem:[#allocation2 + $0x170] sm:$0xff]
        %v880 = vld [vmem:[#allocation2 + $0x178] sm:$0xff]
        %v881 = vld [vmem:[#allocation2 + $0x180] sm:$0xff]
        %v882 = vld [vmem:[#allocation2 + $0x188] sm:$0xff]
        %v883 = vld [vmem:[#allocation2 + $0x190] sm:$0xff]
        %v884 = vld [vmem:[#allocation2 + $0x198] sm:$0xff]
        %v885 = vld [vmem:[#allocation2 + $0x1a0] sm:$0xff]
        %v886 = vld [vmem:[#allocation2 + $0x1a8] sm:$0xff]
        %v887 = vld [vmem:[#allocation2 + $0x1b0] sm:$0xff]
        %v888 = vld [vmem:[#allocation2 + $0x1b8] sm:$0xff]
        %v889 = vld [vmem:[#allocation2 + $0x1c0] sm:$0xff]
        %v890 = vld [vmem:[#allocation2 + $0x1c8] sm:$0xff]
        %v891 = vld [vmem:[#allocation2 + $0x1d0] sm:$0xff]
        %v892 = vld [vmem:[#allocation2 + $0x1d8] sm:$0xff]
        %v893 = vld [vmem:[#allocation2 + $0x1e0] sm:$0xff]
        %v894 = vld [vmem:[#allocation2 + $0x1e8] sm:$0xff]
        %v895 = vld [vmem:[#allocation2 + $0x1f0] sm:$0xff]
        %v896 = vld [vmem:[#allocation2 + $0x1f8] sm:$0xff]
        %v897 = vld [vmem:[#allocation2 + $0x200] sm:$0xff]
        %v898 = vld [vmem:[#allocation2 + $0x208] sm:$0xff]
        %v899 = vld [vmem:[#allocation2 + $0x210] sm:$0xff]
        %v900 = vld [vmem:[#allocation2 + $0x218] sm:$0xff]
        %v901 = vld [vmem:[#allocation2 + $0x220] sm:$0xff]
        %v902 = vld [vmem:[#allocation2 + $0x228] sm:$0xff]
        %v903 = vld [vmem:[#allocation2 + $0x230] sm:$0xff]
        %v904 = vld [vmem:[#allocation2 + $0x238] sm:$0xff]
        %v905 = vld [vmem:[#allocation2 + $0x240] sm:$0xff]
        %v906 = vld [vmem:[#allocation2 + $0x248] sm:$0xff]
        %v907 = vld [vmem:[#allocation2 + $0x250] sm:$0xff]
        %v908 = vld [vmem:[#allocation2 + $0x258] sm:$0xff]
        %v909 = vld [vmem:[#allocation2 + $0x260] sm:$0xff]
        %v910 = vld [vmem:[#allocation2 + $0x268] sm:$0xff]
        %v911 = vld [vmem:[#allocation2 + $0x270] sm:$0xff]
        %v912 = vld [vmem:[#allocation2 + $0x278] sm:$0xff]
        %v913 = vld [vmem:[#allocation2 + $0x280] sm:$0xff]
        %v914 = vld [vmem:[#allocation2 + $0x288] sm:$0xff]
        %v915 = vld [vmem:[#allocation2 + $0x290] sm:$0xff]
        %v916 = vld [vmem:[#allocation2 + $0x298] sm:$0xff]
        %v917 = vld [vmem:[#allocation2 + $0x2a0] sm:$0xff]
        %v918 = vld [vmem:[#allocation2 + $0x2a8] sm:$0xff]
        %v919 = vld [vmem:[#allocation2 + $0x2b0] sm:$0xff]
        %v920 = vld [vmem:[#allocation2 + $0x2b8] sm:$0xff]
        %v921 = vld [vmem:[#allocation2 + $0x2c0] sm:$0xff]
        %v922 = vld [vmem:[#allocation2 + $0x2c8] sm:$0xff]
        %v923 = vld [vmem:[#allocation2 + $0x2d0] sm:$0xff]
        %v924 = vld [vmem:[#allocation2 + $0x2d8] sm:$0xff]
        %v925 = vld [vmem:[#allocation2 + $0x2e0] sm:$0xff]
        %v926 = vld [vmem:[#allocation2 + $0x2e8] sm:$0xff]
        %v927 = vld [vmem:[#allocation2 + $0x2f0] sm:$0xff]
        %v928 = vld [vmem:[#allocation2 + $0x2f8] sm:$0xff]
        %v929 = vld [vmem:[#allocation2 + $0x300] sm:$0xff]
        %v930 = vld [vmem:[#allocation2 + $0x308] sm:$0xff]
        %v931 = vld [vmem:[#allocation2 + $0x310] sm:$0xff]
        %v932 = vld [vmem:[#allocation2 + $0x318] sm:$0xff]
        %v933 = vld [vmem:[#allocation2 + $0x320] sm:$0xff]
        %v934 = vld [vmem:[#allocation2 + $0x328] sm:$0xff]
        %v935 = vld [vmem:[#allocation2 + $0x330] sm:$0xff]
        %v936 = vld [vmem:[#allocation2 + $0x338] sm:$0xff]
        %v937 = vld [vmem:[#allocation2 + $0x340] sm:$0xff]
        %v938 = vld [vmem:[#allocation2 + $0x348] sm:$0xff]
        %v939 = vld [vmem:[#allocation2 + $0x350] sm:$0xff]
        %v940 = vld [vmem:[#allocation2 + $0x358] sm:$0xff]
        %v941 = vld [vmem:[#allocation2 + $0x360] sm:$0xff]
        %v942 = vld [vmem:[#allocation2 + $0x368] sm:$0xff]
        %v943 = vld [vmem:[#allocation2 + $0x370] sm:$0xff]
        %v944 = vld [vmem:[#allocation2 + $0x378] sm:$0xff]
        %v945 = vld [vmem:[#allocation2 + $0x380] sm:$0xff]
        %v946 = vld [vmem:[#allocation2 + $0x388] sm:$0xff]
        %v947 = vld [vmem:[#allocation2 + $0x390] sm:$0xff]
        %v948 = vld [vmem:[#allocation2 + $0x398] sm:$0xff]
        %v949 = vld [vmem:[#allocation2 + $0x3a0] sm:$0xff]
        %v950 = vld [vmem:[#allocation2 + $0x3a8] sm:$0xff]
        %v951 = vld [vmem:[#allocation2 + $0x3b0] sm:$0xff]
        %v952 = vld [vmem:[#allocation2 + $0x3b8] sm:$0xff]
        %v953 = vld [vmem:[#allocation2 + $0x3c0] sm:$0xff]
        %v954 = vld [vmem:[#allocation2 + $0x3c8] sm:$0xff]
        %v955 = vld [vmem:[#allocation2 + $0x3d0] sm:$0xff]
        %v956 = vld [vmem:[#allocation2 + $0x3d8] sm:$0xff]
        %v957 = vld [vmem:[#allocation2 + $0x3e0] sm:$0xff]
        %v958 = vld [vmem:[#allocation2 + $0x3e8] sm:$0xff]
        %v959 = vld [vmem:[#allocation2 + $0x3f0] sm:$0xff]
        %v960 = vld [vmem:[#allocation2 + $0x3f8] sm:$0xff]
        %v961 = vld [vmem:[#allocation2 + $0x400] sm:$0xff]
        %v962 = vld [vmem:[#allocation2 + $0x408] sm:$0xff]
        %v963 = vld [vmem:[#allocation2 + $0x410] sm:$0xff]
        %v964 = vld [vmem:[#allocation2 + $0x418] sm:$0xff]
        %v965 = vld [vmem:[#allocation2 + $0x420] sm:$0xff]
        %v966 = vld [vmem:[#allocation2 + $0x428] sm:$0xff]
        %v967 = vld [vmem:[#allocation2 + $0x430] sm:$0xff]
        %v968 = vld [vmem:[#allocation2 + $0x438] sm:$0xff]
        %v969 = vld [vmem:[#allocation2 + $0x440] sm:$0xff]
        %v970 = vld [vmem:[#allocation2 + $0x448] sm:$0xff]
        %v971 = vld [vmem:[#allocation2 + $0x450] sm:$0xff]
        %v972 = vld [vmem:[#allocation2 + $0x458] sm:$0xff]
        %v973 = vld [vmem:[#allocation2 + $0x460] sm:$0xff]
        %v974 = vld [vmem:[#allocation2 + $0x468] sm:$0xff]
        %v975 = vld [vmem:[#allocation2 + $0x470] sm:$0xff]
        %v976 = vld [vmem:[#allocation2 + $0x478] sm:$0xff]
        %v977 = vld [vmem:[%s4] sm:$0x7]
        %v979 = vperm.slane %v977, 0
        %v980 = vperm.slane %v977, 1
        %v981 = vperm.slane %v977, 2
        %985 = vmatpush.msra.mxu0 %v878
        %986 = vmatpush.msra.mxu0 %v875
        %987 = vmatpush.msra.mxu0 %v872
        %988 = vmatpush.msra.mxu0 %v869
        %989 = vmatpush.msra.mxu0 %v866
        %990 = vmatpush.msra.mxu0 %v863
        %991 = vmatpush.msra.mxu0 %v860
        %992 = vmatpush.msra.mxu0 %v857
        %993 = vmatpush.msra.mxu0 %v854
        %994 = vmatpush.msra.mxu0 %v851
        %995 = vmatpush.msra.mxu0 %v848
        %996 = vmatpush.msra.mxu0 %v845
        %997 = vmatpush.msra.mxu0 %v842
        %998 = vmatpush.msra.mxu0 %v839
        %999 = vmatpush.msra.mxu0 %v836
        %1000 = vmatpush.msra.mxu0 %v833
        %1001 = vmatmul.f32.gmra.mxu0 %v785
        %v1002 = vpop.f32.mrf.mxu0
        %v1003 = vadd.f32 %v979, %v1002
        %1004 = vmatmul.f32.gmra.mxu0 %v788
        %v1005 = vpop.f32.mrf.mxu0
        %v1006 = vadd.f32 %v979, %v1005
        %1007 = vmatmul.f32.gmra.mxu0 %v791
        %v1008 = vpop.f32.mrf.mxu0
        %v1009 = vadd.f32 %v979, %v1008
        %1010 = vmatmul.f32.gmra.mxu0 %v794
        %v1011 = vpop.f32.mrf.mxu0
        %v1012 = vadd.f32 %v979, %v1011
        %1013 = vmatmul.f32.gmra.mxu0 %v797
        %v1014 = vpop.f32.mrf.mxu0
        %v1015 = vadd.f32 %v979, %v1014
        %1016 = vmatmul.f32.gmra.mxu0 %v800
        %v1017 = vpop.f32.mrf.mxu0
        %v1018 = vadd.f32 %v979, %v1017
        %1019 = vmatmul.f32.gmra.mxu0 %v803
        %v1020 = vpop.f32.mrf.mxu0
        %v1021 = vadd.f32 %v979, %v1020
        %1022 = vmatmul.f32.gmra.mxu0 %v806
        %v1023 = vpop.f32.mrf.mxu0
        %v1024 = vadd.f32 %v979, %v1023
        %1025 = vmatmul.f32.gmra.mxu0 %v809
        %v1026 = vpop.f32.mrf.mxu0
        %v1027 = vadd.f32 %v979, %v1026
        %1028 = vmatmul.f32.gmra.mxu0 %v812
        %v1029 = vpop.f32.mrf.mxu0
        %v1030 = vadd.f32 %v979, %v1029
        %1031 = vmatmul.f32.gmra.mxu0 %v815
        %v1032 = vpop.f32.mrf.mxu0
        %v1033 = vadd.f32 %v979, %v1032
        %1034 = vmatmul.f32.gmra.mxu0 %v818
        %v1035 = vpop.f32.mrf.mxu0
        %v1036 = vadd.f32 %v979, %v1035
        %1037 = vmatmul.f32.gmra.mxu0 %v821
        %v1038 = vpop.f32.mrf.mxu0
        %v1039 = vadd.f32 %v979, %v1038
        %1040 = vmatmul.f32.gmra.mxu0 %v824
        %v1041 = vpop.f32.mrf.mxu0
        %v1042 = vadd.f32 %v979, %v1041
        %1043 = vmatmul.f32.gmra.mxu0 %v827
        %v1044 = vpop.f32.mrf.mxu0
        %v1045 = vadd.f32 %v979, %v1044
        %1046 = vmatmul.f32.gmra.mxu0 %v830
        %v1047 = vpop.f32.mrf.mxu0
        %v1048 = vadd.f32 %v979, %v1047
        %1049 = vdwg.mxu0
        %1050 = vmatpush.msra.mxu0 %v926
        %1051 = vmatpush.msra.mxu0 %v923
        %1052 = vmatpush.msra.mxu0 %v920
        %1053 = vmatpush.msra.mxu0 %v917
        %1054 = vmatpush.msra.mxu0 %v914
        %1055 = vmatpush.msra.mxu0 %v911
        %1056 = vmatpush.msra.mxu0 %v908
        %1057 = vmatpush.msra.mxu0 %v905
        %1058 = vmatpush.msra.mxu0 %v902
        %1059 = vmatpush.msra.mxu0 %v899
        %1060 = vmatpush.msra.mxu0 %v896
        %1061 = vmatpush.msra.mxu0 %v893
        %1062 = vmatpush.msra.mxu0 %v890
        %1063 = vmatpush.msra.mxu0 %v887
        %1064 = vmatpush.msra.mxu0 %v884
        %1065 = vmatpush.msra.mxu0 %v881
        %1066 = vmatmul.f32.gmra.mxu0 %v786
        %v1067 = vpop.f32.mrf.mxu0
        %v1068 = vadd.f32 %v1003, %v1067
        %1069 = vmatmul.f32.gmra.mxu0 %v789
        %v1070 = vpop.f32.mrf.mxu0
        %v1071 = vadd.f32 %v1006, %v1070
        %1072 = vmatmul.f32.gmra.mxu0 %v792
        %v1073 = vpop.f32.mrf.mxu0
        %v1074 = vadd.f32 %v1009, %v1073
        %1075 = vmatmul.f32.gmra.mxu0 %v795
        %v1076 = vpop.f32.mrf.mxu0
        %v1077 = vadd.f32 %v1012, %v1076
        %1078 = vmatmul.f32.gmra.mxu0 %v798
        %v1079 = vpop.f32.mrf.mxu0
        %v1080 = vadd.f32 %v1015, %v1079
        %1081 = vmatmul.f32.gmra.mxu0 %v801
        %v1082 = vpop.f32.mrf.mxu0
        %v1083 = vadd.f32 %v1018, %v1082
        %1084 = vmatmul.f32.gmra.mxu0 %v804
        %v1085 = vpop.f32.mrf.mxu0
        %v1086 = vadd.f32 %v1021, %v1085
        %1087 = vmatmul.f32.gmra.mxu0 %v807
        %v1088 = vpop.f32.mrf.mxu0
        %v1089 = vadd.f32 %v1024, %v1088
        %1090 = vmatmul.f32.gmra.mxu0 %v810
        %v1091 = vpop.f32.mrf.mxu0
        %v1092 = vadd.f32 %v1027, %v1091
        %1093 = vmatmul.f32.gmra.mxu0 %v813
        %v1094 = vpop.f32.mrf.mxu0
        %v1095 = vadd.f32 %v1030, %v1094
        %1096 = vmatmul.f32.gmra.mxu0 %v816
        %v1097 = vpop.f32.mrf.mxu0
        %v1098 = vadd.f32 %v1033, %v1097
        %1099 = vmatmul.f32.gmra.mxu0 %v819
        %v1100 = vpop.f32.mrf.mxu0
        %v1101 = vadd.f32 %v1036, %v1100
        %1102 = vmatmul.f32.gmra.mxu0 %v822
        %v1103 = vpop.f32.mrf.mxu0
        %v1104 = vadd.f32 %v1039, %v1103
        %1105 = vmatmul.f32.gmra.mxu0 %v825
        %v1106 = vpop.f32.mrf.mxu0
        %v1107 = vadd.f32 %v1042, %v1106
        %1108 = vmatmul.f32.gmra.mxu0 %v828
        %v1109 = vpop.f32.mrf.mxu0
        %v1110 = vadd.f32 %v1045, %v1109
        %1111 = vmatmul.f32.gmra.mxu0 %v831
        %v1112 = vpop.f32.mrf.mxu0
        %v1113 = vadd.f32 %v1048, %v1112
        %1114 = vdwg.mxu0
        %1115 = vmatpush.msra.mxu0 %v974
        %1116 = vmatpush.msra.mxu0 %v971
        %1117 = vmatpush.msra.mxu0 %v968
        %1118 = vmatpush.msra.mxu0 %v965
        %1119 = vmatpush.msra.mxu0 %v962
        %1120 = vmatpush.msra.mxu0 %v959
        %1121 = vmatpush.msra.mxu0 %v956
        %1122 = vmatpush.msra.mxu0 %v953
        %1123 = vmatpush.msra.mxu0 %v950
        %1124 = vmatpush.msra.mxu0 %v947
        %1125 = vmatpush.msra.mxu0 %v944
        %1126 = vmatpush.msra.mxu0 %v941
        %1127 = vmatpush.msra.mxu0 %v938
        %1128 = vmatpush.msra.mxu0 %v935
        %1129 = vmatpush.msra.mxu0 %v932
        %1130 = vmatpush.msra.mxu0 %v929
        %1131 = vmatmul.f32.gmra.mxu0 %v787
        %v1132 = vpop.f32.mrf.mxu0
        %v1133 = vadd.f32 %v1068, %v1132
        %1134 = vmatmul.f32.gmra.mxu0 %v790
        %v1135 = vpop.f32.mrf.mxu0
        %v1136 = vadd.f32 %v1071, %v1135
        %1137 = vmatmul.f32.gmra.mxu0 %v793
        %v1138 = vpop.f32.mrf.mxu0
        %v1139 = vadd.f32 %v1074, %v1138
        %1140 = vmatmul.f32.gmra.mxu0 %v796
        %v1141 = vpop.f32.mrf.mxu0
        %v1142 = vadd.f32 %v1077, %v1141
        %1143 = vmatmul.f32.gmra.mxu0 %v799
        %v1144 = vpop.f32.mrf.mxu0
        %v1145 = vadd.f32 %v1080, %v1144
        %1146 = vmatmul.f32.gmra.mxu0 %v802
        %v1147 = vpop.f32.mrf.mxu0
        %v1148 = vadd.f32 %v1083, %v1147
        %1149 = vmatmul.f32.gmra.mxu0 %v805
        %v1150 = vpop.f32.mrf.mxu0
        %v1151 = vadd.f32 %v1086, %v1150
        %1152 = vmatmul.f32.gmra.mxu0 %v808
        %v1153 = vpop.f32.mrf.mxu0
        %v1154 = vadd.f32 %v1089, %v1153
        %1155 = vmatmul.f32.gmra.mxu0 %v811
        %v1156 = vpop.f32.mrf.mxu0
        %v1157 = vadd.f32 %v1092, %v1156
        %1158 = vmatmul.f32.gmra.mxu0 %v814
        %v1159 = vpop.f32.mrf.mxu0
        %v1160 = vadd.f32 %v1095, %v1159
        %1161 = vmatmul.f32.gmra.mxu0 %v817
        %v1162 = vpop.f32.mrf.mxu0
        %v1163 = vadd.f32 %v1098, %v1162
        %1164 = vmatmul.f32.gmra.mxu0 %v820
        %v1165 = vpop.f32.mrf.mxu0
        %v1166 = vadd.f32 %v1101, %v1165
        %1167 = vmatmul.f32.gmra.mxu0 %v823
        %v1168 = vpop.f32.mrf.mxu0
        %v1169 = vadd.f32 %v1104, %v1168
        %1170 = vmatmul.f32.gmra.mxu0 %v826
        %v1171 = vpop.f32.mrf.mxu0
        %v1172 = vadd.f32 %v1107, %v1171
        %1173 = vmatmul.f32.gmra.mxu0 %v829
        %v1174 = vpop.f32.mrf.mxu0
        %v1175 = vadd.f32 %v1110, %v1174
        %1176 = vmatmul.f32.gmra.mxu0 %v832
        %v1177 = vpop.f32.mrf.mxu0
        %v1178 = vadd.f32 %v1113, %v1177
        %1179 = vdwg.mxu0
        %1180 = vmatpush.msra.mxu0 %v879
        %1181 = vmatpush.msra.mxu0 %v876
        %1182 = vmatpush.msra.mxu0 %v873
        %1183 = vmatpush.msra.mxu0 %v870
        %1184 = vmatpush.msra.mxu0 %v867
        %1185 = vmatpush.msra.mxu0 %v864
        %1186 = vmatpush.msra.mxu0 %v861
        %1187 = vmatpush.msra.mxu0 %v858
        %1188 = vmatpush.msra.mxu0 %v855
        %1189 = vmatpush.msra.mxu0 %v852
        %1190 = vmatpush.msra.mxu0 %v849
        %1191 = vmatpush.msra.mxu0 %v846
        %1192 = vmatpush.msra.mxu0 %v843
        %1193 = vmatpush.msra.mxu0 %v840
        %1194 = vmatpush.msra.mxu0 %v837
        %1195 = vmatpush.msra.mxu0 %v834
        %1196 = vmatmul.f32.gmra.mxu0 %v785
        %v1197 = vpop.f32.mrf.mxu0
        %v1198 = vadd.f32 %v980, %v1197
        %1199 = vmatmul.f32.gmra.mxu0 %v788
        %v1200 = vpop.f32.mrf.mxu0
        %v1201 = vadd.f32 %v980, %v1200
        %1202 = vmatmul.f32.gmra.mxu0 %v791
        %v1203 = vpop.f32.mrf.mxu0
        %v1204 = vadd.f32 %v980, %v1203
        %1205 = vmatmul.f32.gmra.mxu0 %v794
        %v1206 = vpop.f32.mrf.mxu0
        %v1207 = vadd.f32 %v980, %v1206
        %1208 = vmatmul.f32.gmra.mxu0 %v797
        %v1209 = vpop.f32.mrf.mxu0
        %v1210 = vadd.f32 %v980, %v1209
        %1211 = vmatmul.f32.gmra.mxu0 %v800
        %v1212 = vpop.f32.mrf.mxu0
        %v1213 = vadd.f32 %v980, %v1212
        %1214 = vmatmul.f32.gmra.mxu0 %v803
        %v1215 = vpop.f32.mrf.mxu0
        %v1216 = vadd.f32 %v980, %v1215
        %1217 = vmatmul.f32.gmra.mxu0 %v806
        %v1218 = vpop.f32.mrf.mxu0
        %v1219 = vadd.f32 %v980, %v1218
        %1220 = vmatmul.f32.gmra.mxu0 %v809
        %v1221 = vpop.f32.mrf.mxu0
        %v1222 = vadd.f32 %v980, %v1221
        %1223 = vmatmul.f32.gmra.mxu0 %v812
        %v1224 = vpop.f32.mrf.mxu0
        %v1225 = vadd.f32 %v980, %v1224
        %1226 = vmatmul.f32.gmra.mxu0 %v815
        %v1227 = vpop.f32.mrf.mxu0
        %v1228 = vadd.f32 %v980, %v1227
        %1229 = vmatmul.f32.gmra.mxu0 %v818
        %v1230 = vpop.f32.mrf.mxu0
        %v1231 = vadd.f32 %v980, %v1230
        %1232 = vmatmul.f32.gmra.mxu0 %v821
        %v1233 = vpop.f32.mrf.mxu0
        %v1234 = vadd.f32 %v980, %v1233
        %1235 = vmatmul.f32.gmra.mxu0 %v824
        %v1236 = vpop.f32.mrf.mxu0
        %v1237 = vadd.f32 %v980, %v1236
        %1238 = vmatmul.f32.gmra.mxu0 %v827
        %v1239 = vpop.f32.mrf.mxu0
        %v1240 = vadd.f32 %v980, %v1239
        %1241 = vmatmul.f32.gmra.mxu0 %v830
        %v1242 = vpop.f32.mrf.mxu0
        %v1243 = vadd.f32 %v980, %v1242
        %1244 = vdwg.mxu0
        %1245 = vmatpush.msra.mxu0 %v927
        %1246 = vmatpush.msra.mxu0 %v924
        %1247 = vmatpush.msra.mxu0 %v921
        %1248 = vmatpush.msra.mxu0 %v918
        %1249 = vmatpush.msra.mxu0 %v915
        %1250 = vmatpush.msra.mxu0 %v912
        %1251 = vmatpush.msra.mxu0 %v909
        %1252 = vmatpush.msra.mxu0 %v906
        %1253 = vmatpush.msra.mxu0 %v903
        %1254 = vmatpush.msra.mxu0 %v900
        %1255 = vmatpush.msra.mxu0 %v897
        %1256 = vmatpush.msra.mxu0 %v894
        %1257 = vmatpush.msra.mxu0 %v891
        %1258 = vmatpush.msra.mxu0 %v888
        %1259 = vmatpush.msra.mxu0 %v885
        %1260 = vmatpush.msra.mxu0 %v882
        %1261 = vmatmul.f32.gmra.mxu0 %v786
        %v1262 = vpop.f32.mrf.mxu0
        %v1263 = vadd.f32 %v1198, %v1262
        %1264 = vmatmul.f32.gmra.mxu0 %v789
        %v1265 = vpop.f32.mrf.mxu0
        %v1266 = vadd.f32 %v1201, %v1265
        %1267 = vmatmul.f32.gmra.mxu0 %v792
        %v1268 = vpop.f32.mrf.mxu0
        %v1269 = vadd.f32 %v1204, %v1268
        %1270 = vmatmul.f32.gmra.mxu0 %v795
        %v1271 = vpop.f32.mrf.mxu0
        %v1272 = vadd.f32 %v1207, %v1271
        %1273 = vmatmul.f32.gmra.mxu0 %v798
        %v1274 = vpop.f32.mrf.mxu0
        %v1275 = vadd.f32 %v1210, %v1274
        %1276 = vmatmul.f32.gmra.mxu0 %v801
        %v1277 = vpop.f32.mrf.mxu0
        %v1278 = vadd.f32 %v1213, %v1277
        %1279 = vmatmul.f32.gmra.mxu0 %v804
        %v1280 = vpop.f32.mrf.mxu0
        %v1281 = vadd.f32 %v1216, %v1280
        %1282 = vmatmul.f32.gmra.mxu0 %v807
        %v1283 = vpop.f32.mrf.mxu0
        %v1284 = vadd.f32 %v1219, %v1283
        %1285 = vmatmul.f32.gmra.mxu0 %v810
        %v1286 = vpop.f32.mrf.mxu0
        %v1287 = vadd.f32 %v1222, %v1286
        %1288 = vmatmul.f32.gmra.mxu0 %v813
        %v1289 = vpop.f32.mrf.mxu0
        %v1290 = vadd.f32 %v1225, %v1289
        %1291 = vmatmul.f32.gmra.mxu0 %v816
        %v1292 = vpop.f32.mrf.mxu0
        %v1293 = vadd.f32 %v1228, %v1292
        %1294 = vmatmul.f32.gmra.mxu0 %v819
        %v1295 = vpop.f32.mrf.mxu0
        %v1296 = vadd.f32 %v1231, %v1295
        %1297 = vmatmul.f32.gmra.mxu0 %v822
        %v1298 = vpop.f32.mrf.mxu0
        %v1299 = vadd.f32 %v1234, %v1298
        %1300 = vmatmul.f32.gmra.mxu0 %v825
        %v1301 = vpop.f32.mrf.mxu0
        %v1302 = vadd.f32 %v1237, %v1301
        %1303 = vmatmul.f32.gmra.mxu0 %v828
        %v1304 = vpop.f32.mrf.mxu0
        %v1305 = vadd.f32 %v1240, %v1304
        %1306 = vmatmul.f32.gmra.mxu0 %v831
        %v1307 = vpop.f32.mrf.mxu0
        %v1308 = vadd.f32 %v1243, %v1307
        %1309 = vdwg.mxu0
        %1310 = vmatpush.msra.mxu0 %v975
        %1311 = vmatpush.msra.mxu0 %v972
        %1312 = vmatpush.msra.mxu0 %v969
        %1313 = vmatpush.msra.mxu0 %v966
        %1314 = vmatpush.msra.mxu0 %v963
        %1315 = vmatpush.msra.mxu0 %v960
        %1316 = vmatpush.msra.mxu0 %v957
        %1317 = vmatpush.msra.mxu0 %v954
        %1318 = vmatpush.msra.mxu0 %v951
        %1319 = vmatpush.msra.mxu0 %v948
        %1320 = vmatpush.msra.mxu0 %v945
        %1321 = vmatpush.msra.mxu0 %v942
        %1322 = vmatpush.msra.mxu0 %v939
        %1323 = vmatpush.msra.mxu0 %v936
        %1324 = vmatpush.msra.mxu0 %v933
        %1325 = vmatpush.msra.mxu0 %v930
        %1326 = vmatmul.f32.gmra.mxu0 %v787
        %v1327 = vpop.f32.mrf.mxu0
        %v1328 = vadd.f32 %v1263, %v1327
        %1329 = vmatmul.f32.gmra.mxu0 %v790
        %v1330 = vpop.f32.mrf.mxu0
        %v1331 = vadd.f32 %v1266, %v1330
        %1332 = vmatmul.f32.gmra.mxu0 %v793
        %v1333 = vpop.f32.mrf.mxu0
        %v1334 = vadd.f32 %v1269, %v1333
        %1335 = vmatmul.f32.gmra.mxu0 %v796
        %v1336 = vpop.f32.mrf.mxu0
        %v1337 = vadd.f32 %v1272, %v1336
        %1338 = vmatmul.f32.gmra.mxu0 %v799
        %v1339 = vpop.f32.mrf.mxu0
        %v1340 = vadd.f32 %v1275, %v1339
        %1341 = vmatmul.f32.gmra.mxu0 %v802
        %v1342 = vpop.f32.mrf.mxu0
        %v1343 = vadd.f32 %v1278, %v1342
        %1344 = vmatmul.f32.gmra.mxu0 %v805
        %v1345 = vpop.f32.mrf.mxu0
        %v1346 = vadd.f32 %v1281, %v1345
        %1347 = vmatmul.f32.gmra.mxu0 %v808
        %v1348 = vpop.f32.mrf.mxu0
        %v1349 = vadd.f32 %v1284, %v1348
        %1350 = vmatmul.f32.gmra.mxu0 %v811
        %v1351 = vpop.f32.mrf.mxu0
        %v1352 = vadd.f32 %v1287, %v1351
        %1353 = vmatmul.f32.gmra.mxu0 %v814
        %v1354 = vpop.f32.mrf.mxu0
        %v1355 = vadd.f32 %v1290, %v1354
        %1356 = vmatmul.f32.gmra.mxu0 %v817
        %v1357 = vpop.f32.mrf.mxu0
        %v1358 = vadd.f32 %v1293, %v1357
        %1359 = vmatmul.f32.gmra.mxu0 %v820
        %v1360 = vpop.f32.mrf.mxu0
        %v1361 = vadd.f32 %v1296, %v1360
        %1362 = vmatmul.f32.gmra.mxu0 %v823
        %v1363 = vpop.f32.mrf.mxu0
        %v1364 = vadd.f32 %v1299, %v1363
        %1365 = vmatmul.f32.gmra.mxu0 %v826
        %v1366 = vpop.f32.mrf.mxu0
        %v1367 = vadd.f32 %v1302, %v1366
        %1368 = vmatmul.f32.gmra.mxu0 %v829
        %v1369 = vpop.f32.mrf.mxu0
        %v1370 = vadd.f32 %v1305, %v1369
        %1371 = vmatmul.f32.gmra.mxu0 %v832
        %v1372 = vpop.f32.mrf.mxu0
        %v1373 = vadd.f32 %v1308, %v1372
        %1374 = vdwg.mxu0
        %1375 = vmatpush.msra.mxu0 %v880
        %1376 = vmatpush.msra.mxu0 %v877
        %1377 = vmatpush.msra.mxu0 %v874
        %1378 = vmatpush.msra.mxu0 %v871
        %1379 = vmatpush.msra.mxu0 %v868
        %1380 = vmatpush.msra.mxu0 %v865
        %1381 = vmatpush.msra.mxu0 %v862
        %1382 = vmatpush.msra.mxu0 %v859
        %1383 = vmatpush.msra.mxu0 %v856
        %1384 = vmatpush.msra.mxu0 %v853
        %1385 = vmatpush.msra.mxu0 %v850
        %1386 = vmatpush.msra.mxu0 %v847
        %1387 = vmatpush.msra.mxu0 %v844
        %1388 = vmatpush.msra.mxu0 %v841
        %1389 = vmatpush.msra.mxu0 %v838
        %1390 = vmatpush.msra.mxu0 %v835
        %1391 = vmatmul.f32.gmra.mxu0 %v785
        %v1392 = vpop.f32.mrf.mxu0
        %v1393 = vadd.f32 %v981, %v1392
        %1394 = vmatmul.f32.gmra.mxu0 %v788
        %v1395 = vpop.f32.mrf.mxu0
        %v1396 = vadd.f32 %v981, %v1395
        %1397 = vmatmul.f32.gmra.mxu0 %v791
        %v1398 = vpop.f32.mrf.mxu0
        %v1399 = vadd.f32 %v981, %v1398
        %1400 = vmatmul.f32.gmra.mxu0 %v794
        %v1401 = vpop.f32.mrf.mxu0
        %v1402 = vadd.f32 %v981, %v1401
        %1403 = vmatmul.f32.gmra.mxu0 %v797
        %v1404 = vpop.f32.mrf.mxu0
        %v1405 = vadd.f32 %v981, %v1404
        %1406 = vmatmul.f32.gmra.mxu0 %v800
        %v1407 = vpop.f32.mrf.mxu0
        %v1408 = vadd.f32 %v981, %v1407
        %1409 = vmatmul.f32.gmra.mxu0 %v803
        %v1410 = vpop.f32.mrf.mxu0
        %v1411 = vadd.f32 %v981, %v1410
        %1412 = vmatmul.f32.gmra.mxu0 %v806
        %v1413 = vpop.f32.mrf.mxu0
        %v1414 = vadd.f32 %v981, %v1413
        %1415 = vmatmul.f32.gmra.mxu0 %v809
        %v1416 = vpop.f32.mrf.mxu0
        %v1417 = vadd.f32 %v981, %v1416
        %1418 = vmatmul.f32.gmra.mxu0 %v812
        %v1419 = vpop.f32.mrf.mxu0
        %v1420 = vadd.f32 %v981, %v1419
        %1421 = vmatmul.f32.gmra.mxu0 %v815
        %v1422 = vpop.f32.mrf.mxu0
        %v1423 = vadd.f32 %v981, %v1422
        %1424 = vmatmul.f32.gmra.mxu0 %v818
        %v1425 = vpop.f32.mrf.mxu0
        %v1426 = vadd.f32 %v981, %v1425
        %1427 = vmatmul.f32.gmra.mxu0 %v821
        %v1428 = vpop.f32.mrf.mxu0
        %v1429 = vadd.f32 %v981, %v1428
        %1430 = vmatmul.f32.gmra.mxu0 %v824
        %v1431 = vpop.f32.mrf.mxu0
        %v1432 = vadd.f32 %v981, %v1431
        %1433 = vmatmul.f32.gmra.mxu0 %v827
        %v1434 = vpop.f32.mrf.mxu0
        %v1435 = vadd.f32 %v981, %v1434
        %1436 = vmatmul.f32.gmra.mxu0 %v830
        %v1437 = vpop.f32.mrf.mxu0
        %v1438 = vadd.f32 %v981, %v1437
        %1439 = vdwg.mxu0
        %1440 = vmatpush.msra.mxu0 %v928
        %1441 = vmatpush.msra.mxu0 %v925
        %1442 = vmatpush.msra.mxu0 %v922
        %1443 = vmatpush.msra.mxu0 %v919
        %1444 = vmatpush.msra.mxu0 %v916
        %1445 = vmatpush.msra.mxu0 %v913
        %1446 = vmatpush.msra.mxu0 %v910
        %1447 = vmatpush.msra.mxu0 %v907
        %1448 = vmatpush.msra.mxu0 %v904
        %1449 = vmatpush.msra.mxu0 %v901
        %1450 = vmatpush.msra.mxu0 %v898
        %1451 = vmatpush.msra.mxu0 %v895
        %1452 = vmatpush.msra.mxu0 %v892
        %1453 = vmatpush.msra.mxu0 %v889
        %1454 = vmatpush.msra.mxu0 %v886
        %1455 = vmatpush.msra.mxu0 %v883
        %1456 = vmatmul.f32.gmra.mxu0 %v786
        %v1457 = vpop.f32.mrf.mxu0
        %v1458 = vadd.f32 %v1393, %v1457
        %1459 = vmatmul.f32.gmra.mxu0 %v789
        %v1460 = vpop.f32.mrf.mxu0
        %v1461 = vadd.f32 %v1396, %v1460
        %1462 = vmatmul.f32.gmra.mxu0 %v792
        %v1463 = vpop.f32.mrf.mxu0
        %v1464 = vadd.f32 %v1399, %v1463
        %1465 = vmatmul.f32.gmra.mxu0 %v795
        %v1466 = vpop.f32.mrf.mxu0
        %v1467 = vadd.f32 %v1402, %v1466
        %1468 = vmatmul.f32.gmra.mxu0 %v798
        %v1469 = vpop.f32.mrf.mxu0
        %v1470 = vadd.f32 %v1405, %v1469
        %1471 = vmatmul.f32.gmra.mxu0 %v801
        %v1472 = vpop.f32.mrf.mxu0
        %v1473 = vadd.f32 %v1408, %v1472
        %1474 = vmatmul.f32.gmra.mxu0 %v804
        %v1475 = vpop.f32.mrf.mxu0
        %v1476 = vadd.f32 %v1411, %v1475
        %1477 = vmatmul.f32.gmra.mxu0 %v807
        %v1478 = vpop.f32.mrf.mxu0
        %v1479 = vadd.f32 %v1414, %v1478
        %1480 = vmatmul.f32.gmra.mxu0 %v810
        %v1481 = vpop.f32.mrf.mxu0
        %v1482 = vadd.f32 %v1417, %v1481
        %1483 = vmatmul.f32.gmra.mxu0 %v813
        %v1484 = vpop.f32.mrf.mxu0
        %v1485 = vadd.f32 %v1420, %v1484
        %1486 = vmatmul.f32.gmra.mxu0 %v816
        %v1487 = vpop.f32.mrf.mxu0
        %v1488 = vadd.f32 %v1423, %v1487
        %1489 = vmatmul.f32.gmra.mxu0 %v819
        %v1490 = vpop.f32.mrf.mxu0
        %v1491 = vadd.f32 %v1426, %v1490
        %1492 = vmatmul.f32.gmra.mxu0 %v822
        %v1493 = vpop.f32.mrf.mxu0
        %v1494 = vadd.f32 %v1429, %v1493
        %1495 = vmatmul.f32.gmra.mxu0 %v825
        %v1496 = vpop.f32.mrf.mxu0
        %v1497 = vadd.f32 %v1432, %v1496
        %1498 = vmatmul.f32.gmra.mxu0 %v828
        %v1499 = vpop.f32.mrf.mxu0
        %v1500 = vadd.f32 %v1435, %v1499
        %1501 = vmatmul.f32.gmra.mxu0 %v831
        %v1502 = vpop.f32.mrf.mxu0
        %v1503 = vadd.f32 %v1438, %v1502
        %1504 = vdwg.mxu0
        %1505 = vmatpush.msra.mxu0 %v976
        %1506 = vmatpush.msra.mxu0 %v973
        %1507 = vmatpush.msra.mxu0 %v970
        %1508 = vmatpush.msra.mxu0 %v967
        %1509 = vmatpush.msra.mxu0 %v964
        %1510 = vmatpush.msra.mxu0 %v961
        %1511 = vmatpush.msra.mxu0 %v958
        %1512 = vmatpush.msra.mxu0 %v955
        %1513 = vmatpush.msra.mxu0 %v952
        %1514 = vmatpush.msra.mxu0 %v949
        %1515 = vmatpush.msra.mxu0 %v946
        %1516 = vmatpush.msra.mxu0 %v943
        %1517 = vmatpush.msra.mxu0 %v940
        %1518 = vmatpush.msra.mxu0 %v937
        %1519 = vmatpush.msra.mxu0 %v934
        %1520 = vmatpush.msra.mxu0 %v931
        %1521 = vmatmul.f32.gmra.mxu0 %v787
        %v1522 = vpop.f32.mrf.mxu0
        %v1523 = vadd.f32 %v1458, %v1522
        %1524 = vmatmul.f32.gmra.mxu0 %v790
        %v1525 = vpop.f32.mrf.mxu0
        %v1526 = vadd.f32 %v1461, %v1525
        %1527 = vmatmul.f32.gmra.mxu0 %v793
        %v1528 = vpop.f32.mrf.mxu0
        %v1529 = vadd.f32 %v1464, %v1528
        %1530 = vmatmul.f32.gmra.mxu0 %v796
        %v1531 = vpop.f32.mrf.mxu0
        %v1532 = vadd.f32 %v1467, %v1531
        %1533 = vmatmul.f32.gmra.mxu0 %v799
        %v1534 = vpop.f32.mrf.mxu0
        %v1535 = vadd.f32 %v1470, %v1534
        %1536 = vmatmul.f32.gmra.mxu0 %v802
        %v1537 = vpop.f32.mrf.mxu0
        %v1538 = vadd.f32 %v1473, %v1537
        %1539 = vmatmul.f32.gmra.mxu0 %v805
        %v1540 = vpop.f32.mrf.mxu0
        %v1541 = vadd.f32 %v1476, %v1540
        %1542 = vmatmul.f32.gmra.mxu0 %v808
        %v1543 = vpop.f32.mrf.mxu0
        %v1544 = vadd.f32 %v1479, %v1543
        %1545 = vmatmul.f32.gmra.mxu0 %v811
        %v1546 = vpop.f32.mrf.mxu0
        %v1547 = vadd.f32 %v1482, %v1546
        %1548 = vmatmul.f32.gmra.mxu0 %v814
        %v1549 = vpop.f32.mrf.mxu0
        %v1550 = vadd.f32 %v1485, %v1549
        %1551 = vmatmul.f32.gmra.mxu0 %v817
        %v1552 = vpop.f32.mrf.mxu0
        %v1553 = vadd.f32 %v1488, %v1552
        %1554 = vmatmul.f32.gmra.mxu0 %v820
        %v1555 = vpop.f32.mrf.mxu0
        %v1556 = vadd.f32 %v1491, %v1555
        %1557 = vmatmul.f32.gmra.mxu0 %v823
        %v1558 = vpop.f32.mrf.mxu0
        %v1559 = vadd.f32 %v1494, %v1558
        %1560 = vmatmul.f32.gmra.mxu0 %v826
        %v1561 = vpop.f32.mrf.mxu0
        %v1562 = vadd.f32 %v1497, %v1561
        %1563 = vmatmul.f32.gmra.mxu0 %v829
        %v1564 = vpop.f32.mrf.mxu0
        %v1565 = vadd.f32 %v1500, %v1564
        %1566 = vmatmul.f32.gmra.mxu0 %v832
        %v1567 = vpop.f32.mrf.mxu0
        %v1568 = vadd.f32 %v1503, %v1567
        %1569 = vdwg.mxu0
        %v1570 = vmax.f32 %v1133, 0.0
        %v1571 = vmax.f32 %v1328, 0.0
        %v1572 = vmax.f32 %v1523, 0.0
        %v1573 = vmax.f32 %v1136, 0.0
        %v1574 = vmax.f32 %v1331, 0.0
        %v1575 = vmax.f32 %v1526, 0.0
        %v1576 = vmax.f32 %v1139, 0.0
        %v1577 = vmax.f32 %v1334, 0.0
        %v1578 = vmax.f32 %v1529, 0.0
        %v1579 = vmax.f32 %v1142, 0.0
        %v1580 = vmax.f32 %v1337, 0.0
        %v1581 = vmax.f32 %v1532, 0.0
        %v1582 = vmax.f32 %v1145, 0.0
        %v1583 = vmax.f32 %v1340, 0.0
        %v1584 = vmax.f32 %v1535, 0.0
        %v1585 = vmax.f32 %v1148, 0.0
        %v1586 = vmax.f32 %v1343, 0.0
        %v1587 = vmax.f32 %v1538, 0.0
        %v1588 = vmax.f32 %v1151, 0.0
        %v1589 = vmax.f32 %v1346, 0.0
        %v1590 = vmax.f32 %v1541, 0.0
        %v1591 = vmax.f32 %v1154, 0.0
        %v1592 = vmax.f32 %v1349, 0.0
        %v1593 = vmax.f32 %v1544, 0.0
        %v1594 = vmax.f32 %v1157, 0.0
        %v1595 = vmax.f32 %v1352, 0.0
        %v1596 = vmax.f32 %v1547, 0.0
        %v1597 = vmax.f32 %v1160, 0.0
        %v1598 = vmax.f32 %v1355, 0.0
        %v1599 = vmax.f32 %v1550, 0.0
        %v1600 = vmax.f32 %v1163, 0.0
        %v1601 = vmax.f32 %v1358, 0.0
        %v1602 = vmax.f32 %v1553, 0.0
        %v1603 = vmax.f32 %v1166, 0.0
        %v1604 = vmax.f32 %v1361, 0.0
        %v1605 = vmax.f32 %v1556, 0.0
        %v1606 = vmax.f32 %v1169, 0.0
        %v1607 = vmax.f32 %v1364, 0.0
        %v1608 = vmax.f32 %v1559, 0.0
        %v1609 = vmax.f32 %v1172, 0.0
        %v1610 = vmax.f32 %v1367, 0.0
        %v1611 = vmax.f32 %v1562, 0.0
        %v1612 = vmax.f32 %v1175, 0.0
        %v1613 = vmax.f32 %v1370, 0.0
        %v1614 = vmax.f32 %v1565, 0.0
        %v1615 = vmax.f32 %v1178, 0.0
        %v1616 = vmax.f32 %v1373, 0.0
        %v1617 = vmax.f32 %v1568, 0.0
        %v1618 = vld [vmem:[#allocation4] sm:$0xff]
        %v1619 = vld [vmem:[#allocation4 + $0x8] sm:$0xff]
        %v1620 = vld [vmem:[#allocation4 + $0x10] sm:$0xff]
        %v1621 = vld [vmem:[#allocation4 + $0x18] sm:$0xff]
        %v1622 = vld [vmem:[#allocation4 + $0x20] sm:$0xff]
        %v1623 = vld [vmem:[#allocation4 + $0x28] sm:$0xff]
        %v1624 = vld [vmem:[#allocation4 + $0x30] sm:$0xff]
        %v1625 = vld [vmem:[#allocation4 + $0x38] sm:$0xff]
        %v1626 = vld [vmem:[#allocation4 + $0x40] sm:$0xff]
        %v1627 = vld [vmem:[#allocation4 + $0x48] sm:$0xff]
        %v1628 = vld [vmem:[#allocation4 + $0x50] sm:$0xff]
        %v1629 = vld [vmem:[#allocation4 + $0x58] sm:$0xff]
        %v1630 = vld [vmem:[#allocation4 + $0x60] sm:$0xff]
        %v1631 = vld [vmem:[#allocation4 + $0x68] sm:$0xff]
        %v1632 = vld [vmem:[#allocation4 + $0x70] sm:$0xff]
        %v1633 = vld [vmem:[#allocation4 + $0x78] sm:$0xff]
        %v1634 = vld [vmem:[#allocation4 + $0x80] sm:$0xff]
        %v1635 = vld [vmem:[#allocation4 + $0x88] sm:$0xff]
        %v1636 = vld [vmem:[#allocation4 + $0x90] sm:$0xff]
        %v1637 = vld [vmem:[#allocation4 + $0x98] sm:$0xff]
        %v1638 = vld [vmem:[#allocation4 + $0xa0] sm:$0xff]
        %v1639 = vld [vmem:[#allocation4 + $0xa8] sm:$0xff]
        %v1640 = vld [vmem:[#allocation4 + $0xb0] sm:$0xff]
        %v1641 = vld [vmem:[#allocation4 + $0xb8] sm:$0xff]
        %v1642 = vld [vmem:[#allocation4 + $0xc0] sm:$0xff]
        %v1643 = vld [vmem:[#allocation4 + $0xc8] sm:$0xff]
        %v1644 = vld [vmem:[#allocation4 + $0xd0] sm:$0xff]
        %v1645 = vld [vmem:[#allocation4 + $0xd8] sm:$0xff]
        %v1646 = vld [vmem:[#allocation4 + $0xe0] sm:$0xff]
        %v1647 = vld [vmem:[#allocation4 + $0xe8] sm:$0xff]
        %v1648 = vld [vmem:[#allocation4 + $0xf0] sm:$0xff]
        %v1649 = vld [vmem:[#allocation4 + $0xf8] sm:$0xff]
        %v1650 = vld [vmem:[#allocation4 + $0x100] sm:$0xff]
        %v1651 = vld [vmem:[#allocation4 + $0x108] sm:$0xff]
        %v1652 = vld [vmem:[#allocation4 + $0x110] sm:$0xff]
        %v1653 = vld [vmem:[#allocation4 + $0x118] sm:$0xff]
        %v1654 = vld [vmem:[#allocation4 + $0x120] sm:$0xff]
        %v1655 = vld [vmem:[#allocation4 + $0x128] sm:$0xff]
        %v1656 = vld [vmem:[#allocation4 + $0x130] sm:$0xff]
        %v1657 = vld [vmem:[#allocation4 + $0x138] sm:$0xff]
        %v1658 = vld [vmem:[#allocation4 + $0x140] sm:$0xff]
        %v1659 = vld [vmem:[#allocation4 + $0x148] sm:$0xff]
        %v1660 = vld [vmem:[#allocation4 + $0x150] sm:$0xff]
        %v1661 = vld [vmem:[#allocation4 + $0x158] sm:$0xff]
        %v1662 = vld [vmem:[#allocation4 + $0x160] sm:$0xff]
        %v1663 = vld [vmem:[#allocation4 + $0x168] sm:$0xff]
        %v1664 = vld [vmem:[#allocation4 + $0x170] sm:$0xff]
        %v1665 = vld [vmem:[#allocation4 + $0x178] sm:$0xff]
        %v1666 = vld [vmem:[#allocation4 + $0x180] sm:$0xff]
        %v1667 = vld [vmem:[#allocation4 + $0x188] sm:$0xff]
        %v1668 = vld [vmem:[#allocation4 + $0x190] sm:$0xff]
        %v1669 = vld [vmem:[#allocation4 + $0x198] sm:$0xff]
        %v1670 = vld [vmem:[#allocation4 + $0x1a0] sm:$0xff]
        %v1671 = vld [vmem:[#allocation4 + $0x1a8] sm:$0xff]
        %v1672 = vld [vmem:[#allocation4 + $0x1b0] sm:$0xff]
        %v1673 = vld [vmem:[#allocation4 + $0x1b8] sm:$0xff]
        %v1674 = vld [vmem:[#allocation4 + $0x1c0] sm:$0xff]
        %v1675 = vld [vmem:[#allocation4 + $0x1c8] sm:$0xff]
        %v1676 = vld [vmem:[#allocation4 + $0x1d0] sm:$0xff]
        %v1677 = vld [vmem:[#allocation4 + $0x1d8] sm:$0xff]
        %v1678 = vld [vmem:[#allocation4 + $0x1e0] sm:$0xff]
        %v1679 = vld [vmem:[#allocation4 + $0x1e8] sm:$0xff]
        %v1680 = vld [vmem:[#allocation4 + $0x1f0] sm:$0xff]
        %v1681 = vld [vmem:[#allocation4 + $0x1f8] sm:$0xff]
        %v1682 = vld [vmem:[#allocation4 + $0x200] sm:$0xff]
        %v1683 = vld [vmem:[#allocation4 + $0x208] sm:$0xff]
        %v1684 = vld [vmem:[#allocation4 + $0x210] sm:$0xff]
        %v1685 = vld [vmem:[#allocation4 + $0x218] sm:$0xff]
        %v1686 = vld [vmem:[#allocation4 + $0x220] sm:$0xff]
        %v1687 = vld [vmem:[#allocation4 + $0x228] sm:$0xff]
        %v1688 = vld [vmem:[#allocation4 + $0x230] sm:$0xff]
        %v1689 = vld [vmem:[#allocation4 + $0x238] sm:$0xff]
        %v1690 = vld [vmem:[#allocation4 + $0x240] sm:$0xff]
        %v1691 = vld [vmem:[#allocation4 + $0x248] sm:$0xff]
        %v1692 = vld [vmem:[#allocation4 + $0x250] sm:$0xff]
        %v1693 = vld [vmem:[#allocation4 + $0x258] sm:$0xff]
        %v1694 = vld [vmem:[#allocation4 + $0x260] sm:$0xff]
        %v1695 = vld [vmem:[#allocation4 + $0x268] sm:$0xff]
        %v1696 = vld [vmem:[#allocation4 + $0x270] sm:$0xff]
        %v1697 = vld [vmem:[#allocation4 + $0x278] sm:$0xff]
        %v1698 = vld [vmem:[#allocation4 + $0x280] sm:$0xff]
        %v1699 = vld [vmem:[#allocation4 + $0x288] sm:$0xff]
        %v1700 = vld [vmem:[#allocation4 + $0x290] sm:$0xff]
        %v1701 = vld [vmem:[#allocation4 + $0x298] sm:$0xff]
        %v1702 = vld [vmem:[#allocation4 + $0x2a0] sm:$0xff]
        %v1703 = vld [vmem:[#allocation4 + $0x2a8] sm:$0xff]
        %v1704 = vld [vmem:[#allocation4 + $0x2b0] sm:$0xff]
        %v1705 = vld [vmem:[#allocation4 + $0x2b8] sm:$0xff]
        %v1706 = vld [vmem:[#allocation4 + $0x2c0] sm:$0xff]
        %v1707 = vld [vmem:[#allocation4 + $0x2c8] sm:$0xff]
        %v1708 = vld [vmem:[#allocation4 + $0x2d0] sm:$0xff]
        %v1709 = vld [vmem:[#allocation4 + $0x2d8] sm:$0xff]
        %v1710 = vld [vmem:[#allocation4 + $0x2e0] sm:$0xff]
        %v1711 = vld [vmem:[#allocation4 + $0x2e8] sm:$0xff]
        %v1712 = vld [vmem:[#allocation4 + $0x2f0] sm:$0xff]
        %v1713 = vld [vmem:[#allocation4 + $0x2f8] sm:$0xff]
        %v1714 = vld [vmem:[#allocation4 + $0x300] sm:$0xff]
        %v1715 = vld [vmem:[#allocation4 + $0x308] sm:$0xff]
        %v1716 = vld [vmem:[#allocation4 + $0x310] sm:$0xff]
        %v1717 = vld [vmem:[#allocation4 + $0x318] sm:$0xff]
        %v1718 = vld [vmem:[#allocation4 + $0x320] sm:$0xff]
        %v1719 = vld [vmem:[#allocation4 + $0x328] sm:$0xff]
        %v1720 = vld [vmem:[#allocation4 + $0x330] sm:$0xff]
        %v1721 = vld [vmem:[#allocation4 + $0x338] sm:$0xff]
        %v1722 = vld [vmem:[#allocation4 + $0x340] sm:$0xff]
        %v1723 = vld [vmem:[#allocation4 + $0x348] sm:$0xff]
        %v1724 = vld [vmem:[#allocation4 + $0x350] sm:$0xff]
        %v1725 = vld [vmem:[#allocation4 + $0x358] sm:$0xff]
        %v1726 = vld [vmem:[#allocation4 + $0x360] sm:$0xff]
        %v1727 = vld [vmem:[#allocation4 + $0x368] sm:$0xff]
        %v1728 = vld [vmem:[#allocation4 + $0x370] sm:$0xff]
        %v1729 = vld [vmem:[#allocation4 + $0x378] sm:$0xff]
        %v1730 = vld [vmem:[#allocation4 + $0x380] sm:$0xff]
        %v1731 = vld [vmem:[#allocation4 + $0x388] sm:$0xff]
        %v1732 = vld [vmem:[#allocation4 + $0x390] sm:$0xff]
        %v1733 = vld [vmem:[#allocation4 + $0x398] sm:$0xff]
        %v1734 = vld [vmem:[#allocation4 + $0x3a0] sm:$0xff]
        %v1735 = vld [vmem:[#allocation4 + $0x3a8] sm:$0xff]
        %v1736 = vld [vmem:[#allocation4 + $0x3b0] sm:$0xff]
        %v1737 = vld [vmem:[#allocation4 + $0x3b8] sm:$0xff]
        %v1738 = vld [vmem:[#allocation4 + $0x3c0] sm:$0xff]
        %v1739 = vld [vmem:[#allocation4 + $0x3c8] sm:$0xff]
        %v1740 = vld [vmem:[#allocation4 + $0x3d0] sm:$0xff]
        %v1741 = vld [vmem:[#allocation4 + $0x3d8] sm:$0xff]
        %v1742 = vld [vmem:[#allocation4 + $0x3e0] sm:$0xff]
        %v1743 = vld [vmem:[#allocation4 + $0x3e8] sm:$0xff]
        %v1744 = vld [vmem:[#allocation4 + $0x3f0] sm:$0xff]
        %v1745 = vld [vmem:[#allocation4 + $0x3f8] sm:$0xff]
        %v1746 = vld [vmem:[#allocation4 + $0x400] sm:$0xff]
        %v1747 = vld [vmem:[#allocation4 + $0x408] sm:$0xff]
        %v1748 = vld [vmem:[#allocation4 + $0x410] sm:$0xff]
        %v1749 = vld [vmem:[#allocation4 + $0x418] sm:$0xff]
        %v1750 = vld [vmem:[#allocation4 + $0x420] sm:$0xff]
        %v1751 = vld [vmem:[#allocation4 + $0x428] sm:$0xff]
        %v1752 = vld [vmem:[#allocation4 + $0x430] sm:$0xff]
        %v1753 = vld [vmem:[#allocation4 + $0x438] sm:$0xff]
        %v1754 = vld [vmem:[#allocation4 + $0x440] sm:$0xff]
        %v1755 = vld [vmem:[#allocation4 + $0x448] sm:$0xff]
        %v1756 = vld [vmem:[#allocation4 + $0x450] sm:$0xff]
        %v1757 = vld [vmem:[#allocation4 + $0x458] sm:$0xff]
        %v1758 = vld [vmem:[#allocation4 + $0x460] sm:$0xff]
        %v1759 = vld [vmem:[#allocation4 + $0x468] sm:$0xff]
        %v1760 = vld [vmem:[#allocation4 + $0x470] sm:$0xff]
        %v1761 = vld [vmem:[#allocation4 + $0x478] sm:$0xff]
        %v1762 = vld [vmem:[%s6] sm:$0x7]
        %v1764 = vperm.slane %v1762, 0
        %v1765 = vperm.slane %v1762, 1
        %v1766 = vperm.slane %v1762, 2
        %1770 = vmatpush.msra.mxu0 %v1663
        %1771 = vmatpush.msra.mxu0 %v1660
        %1772 = vmatpush.msra.mxu0 %v1657
        %1773 = vmatpush.msra.mxu0 %v1654
        %1774 = vmatpush.msra.mxu0 %v1651
        %1775 = vmatpush.msra.mxu0 %v1648
        %1776 = vmatpush.msra.mxu0 %v1645
        %1777 = vmatpush.msra.mxu0 %v1642
        %1778 = vmatpush.msra.mxu0 %v1639
        %1779 = vmatpush.msra.mxu0 %v1636
        %1780 = vmatpush.msra.mxu0 %v1633
        %1781 = vmatpush.msra.mxu0 %v1630
        %1782 = vmatpush.msra.mxu0 %v1627
        %1783 = vmatpush.msra.mxu0 %v1624
        %1784 = vmatpush.msra.mxu0 %v1621
        %1785 = vmatpush.msra.mxu0 %v1618
        %1786 = vmatmul.f32.gmra.mxu0 %v1570
        %v1787 = vpop.f32.mrf.mxu0
        %v1788 = vadd.f32 %v1764, %v1787
        %1789 = vmatmul.f32.gmra.mxu0 %v1573
        %v1790 = vpop.f32.mrf.mxu0
        %v1791 = vadd.f32 %v1764, %v1790
        %1792 = vmatmul.f32.gmra.mxu0 %v1576
        %v1793 = vpop.f32.mrf.mxu0
        %v1794 = vadd.f32 %v1764, %v1793
        %1795 = vmatmul.f32.gmra.mxu0 %v1579
        %v1796 = vpop.f32.mrf.mxu0
        %v1797 = vadd.f32 %v1764, %v1796
        %1798 = vmatmul.f32.gmra.mxu0 %v1582
        %v1799 = vpop.f32.mrf.mxu0
        %v1800 = vadd.f32 %v1764, %v1799
        %1801 = vmatmul.f32.gmra.mxu0 %v1585
        %v1802 = vpop.f32.mrf.mxu0
        %v1803 = vadd.f32 %v1764, %v1802
        %1804 = vmatmul.f32.gmra.mxu0 %v1588
        %v1805 = vpop.f32.mrf.mxu0
        %v1806 = vadd.f32 %v1764, %v1805
        %1807 = vmatmul.f32.gmra.mxu0 %v1591
        %v1808 = vpop.f32.mrf.mxu0
        %v1809 = vadd.f32 %v1764, %v1808
        %1810 = vmatmul.f32.gmra.mxu0 %v1594
        %v1811 = vpop.f32.mrf.mxu0
        %v1812 = vadd.f32 %v1764, %v1811
        %1813 = vmatmul.f32.gmra.mxu0 %v1597
        %v1814 = vpop.f32.mrf.mxu0
        %v1815 = vadd.f32 %v1764, %v1814
        %1816 = vmatmul.f32.gmra.mxu0 %v1600
        %v1817 = vpop.f32.mrf.mxu0
        %v1818 = vadd.f32 %v1764, %v1817
        %1819 = vmatmul.f32.gmra.mxu0 %v1603
        %v1820 = vpop.f32.mrf.mxu0
        %v1821 = vadd.f32 %v1764, %v1820
        %1822 = vmatmul.f32.gmra.mxu0 %v1606
        %v1823 = vpop.f32.mrf.mxu0
        %v1824 = vadd.f32 %v1764, %v1823
        %1825 = vmatmul.f32.gmra.mxu0 %v1609
        %v1826 = vpop.f32.mrf.mxu0
        %v1827 = vadd.f32 %v1764, %v1826
        %1828 = vmatmul.f32.gmra.mxu0 %v1612
        %v1829 = vpop.f32.mrf.mxu0
        %v1830 = vadd.f32 %v1764, %v1829
        %1831 = vmatmul.f32.gmra.mxu0 %v1615
        %v1832 = vpop.f32.mrf.mxu0
        %v1833 = vadd.f32 %v1764, %v1832
        %1834 = vdwg.mxu0
        %1835 = vmatpush.msra.mxu0 %v1711
        %1836 = vmatpush.msra.mxu0 %v1708
        %1837 = vmatpush.msra.mxu0 %v1705
        %1838 = vmatpush.msra.mxu0 %v1702
        %1839 = vmatpush.msra.mxu0 %v1699
        %1840 = vmatpush.msra.mxu0 %v1696
        %1841 = vmatpush.msra.mxu0 %v1693
        %1842 = vmatpush.msra.mxu0 %v1690
        %1843 = vmatpush.msra.mxu0 %v1687
        %1844 = vmatpush.msra.mxu0 %v1684
        %1845 = vmatpush.msra.mxu0 %v1681
        %1846 = vmatpush.msra.mxu0 %v1678
        %1847 = vmatpush.msra.mxu0 %v1675
        %1848 = vmatpush.msra.mxu0 %v1672
        %1849 = vmatpush.msra.mxu0 %v1669
        %1850 = vmatpush.msra.mxu0 %v1666
        %1851 = vmatmul.f32.gmra.mxu0 %v1571
        %v1852 = vpop.f32.mrf.mxu0
        %v1853 = vadd.f32 %v1788, %v1852
        %1854 = vmatmul.f32.gmra.mxu0 %v1574
        %v1855 = vpop.f32.mrf.mxu0
        %v1856 = vadd.f32 %v1791, %v1855
        %1857 = vmatmul.f32.gmra.mxu0 %v1577
        %v1858 = vpop.f32.mrf.mxu0
        %v1859 = vadd.f32 %v1794, %v1858
        %1860 = vmatmul.f32.gmra.mxu0 %v1580
        %v1861 = vpop.f32.mrf.mxu0
        %v1862 = vadd.f32 %v1797, %v1861
        %1863 = vmatmul.f32.gmra.mxu0 %v1583
        %v1864 = vpop.f32.mrf.mxu0
        %v1865 = vadd.f32 %v1800, %v1864
        %1866 = vmatmul.f32.gmra.mxu0 %v1586
        %v1867 = vpop.f32.mrf.mxu0
        %v1868 = vadd.f32 %v1803, %v1867
        %1869 = vmatmul.f32.gmra.mxu0 %v1589
        %v1870 = vpop.f32.mrf.mxu0
        %v1871 = vadd.f32 %v1806, %v1870
        %1872 = vmatmul.f32.gmra.mxu0 %v1592
        %v1873 = vpop.f32.mrf.mxu0
        %v1874 = vadd.f32 %v1809, %v1873
        %1875 = vmatmul.f32.gmra.mxu0 %v1595
        %v1876 = vpop.f32.mrf.mxu0
        %v1877 = vadd.f32 %v1812, %v1876
        %1878 = vmatmul.f32.gmra.mxu0 %v1598
        %v1879 = vpop.f32.mrf.mxu0
        %v1880 = vadd.f32 %v1815, %v1879
        %1881 = vmatmul.f32.gmra.mxu0 %v1601
        %v1882 = vpop.f32.mrf.mxu0
        %v1883 = vadd.f32 %v1818, %v1882
        %1884 = vmatmul.f32.gmra.mxu0 %v1604
        %v1885 = vpop.f32.mrf.mxu0
        %v1886 = vadd.f32 %v1821, %v1885
        %1887 = vmatmul.f32.gmra.mxu0 %v1607
        %v1888 = vpop.f32.mrf.mxu0
        %v1889 = vadd.f32 %v1824, %v1888
        %1890 = vmatmul.f32.gmra.mxu0 %v1610
        %v1891 = vpop.f32.mrf.mxu0
        %v1892 = vadd.f32 %v1827, %v1891
        %1893 = vmatmul.f32.gmra.mxu0 %v1613
        %v1894 = vpop.f32.mrf.mxu0
        %v1895 = vadd.f32 %v1830, %v1894
        %1896 = vmatmul.f32.gmra.mxu0 %v1616
        %v1897 = vpop.f32.mrf.mxu0
        %v1898 = vadd.f32 %v1833, %v1897
        %1899 = vdwg.mxu0
        %1900 = vmatpush.msra.mxu0 %v1759
        %1901 = vmatpush.msra.mxu0 %v1756
        %1902 = vmatpush.msra.mxu0 %v1753
        %1903 = vmatpush.msra.mxu0 %v1750
        %1904 = vmatpush.msra.mxu0 %v1747
        %1905 = vmatpush.msra.mxu0 %v1744
        %1906 = vmatpush.msra.mxu0 %v1741
        %1907 = vmatpush.msra.mxu0 %v1738
        %1908 = vmatpush.msra.mxu0 %v1735
        %1909 = vmatpush.msra.mxu0 %v1732
        %1910 = vmatpush.msra.mxu0 %v1729
        %1911 = vmatpush.msra.mxu0 %v1726
        %1912 = vmatpush.msra.mxu0 %v1723
        %1913 = vmatpush.msra.mxu0 %v1720
        %1914 = vmatpush.msra.mxu0 %v1717
        %1915 = vmatpush.msra.mxu0 %v1714
        %1916 = vmatmul.f32.gmra.mxu0 %v1572
        %v1917 = vpop.f32.mrf.mxu0
        %v1918 = vadd.f32 %v1853, %v1917
        %1919 = vmatmul.f32.gmra.mxu0 %v1575
        %v1920 = vpop.f32.mrf.mxu0
        %v1921 = vadd.f32 %v1856, %v1920
        %1922 = vmatmul.f32.gmra.mxu0 %v1578
        %v1923 = vpop.f32.mrf.mxu0
        %v1924 = vadd.f32 %v1859, %v1923
        %1925 = vmatmul.f32.gmra.mxu0 %v1581
        %v1926 = vpop.f32.mrf.mxu0
        %v1927 = vadd.f32 %v1862, %v1926
        %1928 = vmatmul.f32.gmra.mxu0 %v1584
        %v1929 = vpop.f32.mrf.mxu0
        %v1930 = vadd.f32 %v1865, %v1929
        %1931 = vmatmul.f32.gmra.mxu0 %v1587
        %v1932 = vpop.f32.mrf.mxu0
        %v1933 = vadd.f32 %v1868, %v1932
        %1934 = vmatmul.f32.gmra.mxu0 %v1590
        %v1935 = vpop.f32.mrf.mxu0
        %v1936 = vadd.f32 %v1871, %v1935
        %1937 = vmatmul.f32.gmra.mxu0 %v1593
        %v1938 = vpop.f32.mrf.mxu0
        %v1939 = vadd.f32 %v1874, %v1938
        %1940 = vmatmul.f32.gmra.mxu0 %v1596
        %v1941 = vpop.f32.mrf.mxu0
        %v1942 = vadd.f32 %v1877, %v1941
        %1943 = vmatmul.f32.gmra.mxu0 %v1599
        %v1944 = vpop.f32.mrf.mxu0
        %v1945 = vadd.f32 %v1880, %v1944
        %1946 = vmatmul.f32.gmra.mxu0 %v1602
        %v1947 = vpop.f32.mrf.mxu0
        %v1948 = vadd.f32 %v1883, %v1947
        %1949 = vmatmul.f32.gmra.mxu0 %v1605
        %v1950 = vpop.f32.mrf.mxu0
        %v1951 = vadd.f32 %v1886, %v1950
        %1952 = vmatmul.f32.gmra.mxu0 %v1608
        %v1953 = vpop.f32.mrf.mxu0
        %v1954 = vadd.f32 %v1889, %v1953
        %1955 = vmatmul.f32.gmra.mxu0 %v1611
        %v1956 = vpop.f32.mrf.mxu0
        %v1957 = vadd.f32 %v1892, %v1956
        %1958 = vmatmul.f32.gmra.mxu0 %v1614
        %v1959 = vpop.f32.mrf.mxu0
        %v1960 = vadd.f32 %v1895, %v1959
        %1961 = vmatmul.f32.gmra.mxu0 %v1617
        %v1962 = vpop.f32.mrf.mxu0
        %v1963 = vadd.f32 %v1898, %v1962
        %1964 = vdwg.mxu0
        %1965 = vmatpush.msra.mxu0 %v1664
        %1966 = vmatpush.msra.mxu0 %v1661
        %1967 = vmatpush.msra.mxu0 %v1658
        %1968 = vmatpush.msra.mxu0 %v1655
        %1969 = vmatpush.msra.mxu0 %v1652
        %1970 = vmatpush.msra.mxu0 %v1649
        %1971 = vmatpush.msra.mxu0 %v1646
        %1972 = vmatpush.msra.mxu0 %v1643
        %1973 = vmatpush.msra.mxu0 %v1640
        %1974 = vmatpush.msra.mxu0 %v1637
        %1975 = vmatpush.msra.mxu0 %v1634
        %1976 = vmatpush.msra.mxu0 %v1631
        %1977 = vmatpush.msra.mxu0 %v1628
        %1978 = vmatpush.msra.mxu0 %v1625
        %1979 = vmatpush.msra.mxu0 %v1622
        %1980 = vmatpush.msra.mxu0 %v1619
        %1981 = vmatmul.f32.gmra.mxu0 %v1570
        %v1982 = vpop.f32.mrf.mxu0
        %v1983 = vadd.f32 %v1765, %v1982
        %1984 = vmatmul.f32.gmra.mxu0 %v1573
        %v1985 = vpop.f32.mrf.mxu0
        %v1986 = vadd.f32 %v1765, %v1985
        %1987 = vmatmul.f32.gmra.mxu0 %v1576
        %v1988 = vpop.f32.mrf.mxu0
        %v1989 = vadd.f32 %v1765, %v1988
        %1990 = vmatmul.f32.gmra.mxu0 %v1579
        %v1991 = vpop.f32.mrf.mxu0
        %v1992 = vadd.f32 %v1765, %v1991
        %1993 = vmatmul.f32.gmra.mxu0 %v1582
        %v1994 = vpop.f32.mrf.mxu0
        %v1995 = vadd.f32 %v1765, %v1994
        %1996 = vmatmul.f32.gmra.mxu0 %v1585
        %v1997 = vpop.f32.mrf.mxu0
        %v1998 = vadd.f32 %v1765, %v1997
        %1999 = vmatmul.f32.gmra.mxu0 %v1588
        %v2000 = vpop.f32.mrf.mxu0
        %v2001 = vadd.f32 %v1765, %v2000
        %2002 = vmatmul.f32.gmra.mxu0 %v1591
        %v2003 = vpop.f32.mrf.mxu0
        %v2004 = vadd.f32 %v1765, %v2003
        %2005 = vmatmul.f32.gmra.mxu0 %v1594
        %v2006 = vpop.f32.mrf.mxu0
        %v2007 = vadd.f32 %v1765, %v2006
        %2008 = vmatmul.f32.gmra.mxu0 %v1597
        %v2009 = vpop.f32.mrf.mxu0
        %v2010 = vadd.f32 %v1765, %v2009
        %2011 = vmatmul.f32.gmra.mxu0 %v1600
        %v2012 = vpop.f32.mrf.mxu0
        %v2013 = vadd.f32 %v1765, %v2012
        %2014 = vmatmul.f32.gmra.mxu0 %v1603
        %v2015 = vpop.f32.mrf.mxu0
        %v2016 = vadd.f32 %v1765, %v2015
        %2017 = vmatmul.f32.gmra.mxu0 %v1606
        %v2018 = vpop.f32.mrf.mxu0
        %v2019 = vadd.f32 %v1765, %v2018
        %2020 = vmatmul.f32.gmra.mxu0 %v1609
        %v2021 = vpop.f32.mrf.mxu0
        %v2022 = vadd.f32 %v1765, %v2021
        %2023 = vmatmul.f32.gmra.mxu0 %v1612
        %v2024 = vpop.f32.mrf.mxu0
        %v2025 = vadd.f32 %v1765, %v2024
        %2026 = vmatmul.f32.gmra.mxu0 %v1615
        %v2027 = vpop.f32.mrf.mxu0
        %v2028 = vadd.f32 %v1765, %v2027
        %2029 = vdwg.mxu0
        %2030 = vmatpush.msra.mxu0 %v1712
        %2031 = vmatpush.msra.mxu0 %v1709
        %2032 = vmatpush.msra.mxu0 %v1706
        %2033 = vmatpush.msra.mxu0 %v1703
        %2034 = vmatpush.msra.mxu0 %v1700
        %2035 = vmatpush.msra.mxu0 %v1697
        %2036 = vmatpush.msra.mxu0 %v1694
        %2037 = vmatpush.msra.mxu0 %v1691
        %2038 = vmatpush.msra.mxu0 %v1688
        %2039 = vmatpush.msra.mxu0 %v1685
        %2040 = vmatpush.msra.mxu0 %v1682
        %2041 = vmatpush.msra.mxu0 %v1679
        %2042 = vmatpush.msra.mxu0 %v1676
        %2043 = vmatpush.msra.mxu0 %v1673
        %2044 = vmatpush.msra.mxu0 %v1670
        %2045 = vmatpush.msra.mxu0 %v1667
        %2046 = vmatmul.f32.gmra.mxu0 %v1571
        %v2047 = vpop.f32.mrf.mxu0
        %v2048 = vadd.f32 %v1983, %v2047
        %2049 = vmatmul.f32.gmra.mxu0 %v1574
        %v2050 = vpop.f32.mrf.mxu0
        %v2051 = vadd.f32 %v1986, %v2050
        %2052 = vmatmul.f32.gmra.mxu0 %v1577
        %v2053 = vpop.f32.mrf.mxu0
        %v2054 = vadd.f32 %v1989, %v2053
        %2055 = vmatmul.f32.gmra.mxu0 %v1580
        %v2056 = vpop.f32.mrf.mxu0
        %v2057 = vadd.f32 %v1992, %v2056
        %2058 = vmatmul.f32.gmra.mxu0 %v1583
        %v2059 = vpop.f32.mrf.mxu0
        %v2060 = vadd.f32 %v1995, %v2059
        %2061 = vmatmul.f32.gmra.mxu0 %v1586
        %v2062 = vpop.f32.mrf.mxu0
        %v2063 = vadd.f32 %v1998, %v2062
        %2064 = vmatmul.f32.gmra.mxu0 %v1589
        %v2065 = vpop.f32.mrf.mxu0
        %v2066 = vadd.f32 %v2001, %v2065
        %2067 = vmatmul.f32.gmra.mxu0 %v1592
        %v2068 = vpop.f32.mrf.mxu0
        %v2069 = vadd.f32 %v2004, %v2068
        %2070 = vmatmul.f32.gmra.mxu0 %v1595
        %v2071 = vpop.f32.mrf.mxu0
        %v2072 = vadd.f32 %v2007, %v2071
        %2073 = vmatmul.f32.gmra.mxu0 %v1598
        %v2074 = vpop.f32.mrf.mxu0
        %v2075 = vadd.f32 %v2010, %v2074
        %2076 = vmatmul.f32.gmra.mxu0 %v1601
        %v2077 = vpop.f32.mrf.mxu0
        %v2078 = vadd.f32 %v2013, %v2077
        %2079 = vmatmul.f32.gmra.mxu0 %v1604
        %v2080 = vpop.f32.mrf.mxu0
        %v2081 = vadd.f32 %v2016, %v2080
        %2082 = vmatmul.f32.gmra.mxu0 %v1607
        %v2083 = vpop.f32.mrf.mxu0
        %v2084 = vadd.f32 %v2019, %v2083
        %2085 = vmatmul.f32.gmra.mxu0 %v1610
        %v2086 = vpop.f32.mrf.mxu0
        %v2087 = vadd.f32 %v2022, %v2086
        %2088 = vmatmul.f32.gmra.mxu0 %v1613
        %v2089 = vpop.f32.mrf.mxu0
        %v2090 = vadd.f32 %v2025, %v2089
        %2091 = vmatmul.f32.gmra.mxu0 %v1616
        %v2092 = vpop.f32.mrf.mxu0
        %v2093 = vadd.f32 %v2028, %v2092
        %2094 = vdwg.mxu0
        %2095 = vmatpush.msra.mxu0 %v1760
        %2096 = vmatpush.msra.mxu0 %v1757
        %2097 = vmatpush.msra.mxu0 %v1754
        %2098 = vmatpush.msra.mxu0 %v1751
        %2099 = vmatpush.msra.mxu0 %v1748
        %2100 = vmatpush.msra.mxu0 %v1745
        %2101 = vmatpush.msra.mxu0 %v1742
        %2102 = vmatpush.msra.mxu0 %v1739
        %2103 = vmatpush.msra.mxu0 %v1736
        %2104 = vmatpush.msra.mxu0 %v1733
        %2105 = vmatpush.msra.mxu0 %v1730
        %2106 = vmatpush.msra.mxu0 %v1727
        %2107 = vmatpush.msra.mxu0 %v1724
        %2108 = vmatpush.msra.mxu0 %v1721
        %2109 = vmatpush.msra.mxu0 %v1718
        %2110 = vmatpush.msra.mxu0 %v1715
        %2111 = vmatmul.f32.gmra.mxu0 %v1572
        %v2112 = vpop.f32.mrf.mxu0
        %v2113 = vadd.f32 %v2048, %v2112
        %2114 = vmatmul.f32.gmra.mxu0 %v1575
        %v2115 = vpop.f32.mrf.mxu0
        %v2116 = vadd.f32 %v2051, %v2115
        %2117 = vmatmul.f32.gmra.mxu0 %v1578
        %v2118 = vpop.f32.mrf.mxu0
        %v2119 = vadd.f32 %v2054, %v2118
        %2120 = vmatmul.f32.gmra.mxu0 %v1581
        %v2121 = vpop.f32.mrf.mxu0
        %v2122 = vadd.f32 %v2057, %v2121
        %2123 = vmatmul.f32.gmra.mxu0 %v1584
        %v2124 = vpop.f32.mrf.mxu0
        %v2125 = vadd.f32 %v2060, %v2124
        %2126 = vmatmul.f32.gmra.mxu0 %v1587
        %v2127 = vpop.f32.mrf.mxu0
        %v2128 = vadd.f32 %v2063, %v2127
        %2129 = vmatmul.f32.gmra.mxu0 %v1590
        %v2130 = vpop.f32.mrf.mxu0
        %v2131 = vadd.f32 %v2066, %v2130
        %2132 = vmatmul.f32.gmra.mxu0 %v1593
        %v2133 = vpop.f32.mrf.mxu0
        %v2134 = vadd.f32 %v2069, %v2133
        %2135 = vmatmul.f32.gmra.mxu0 %v1596
        %v2136 = vpop.f32.mrf.mxu0
        %v2137 = vadd.f32 %v2072, %v2136
        %2138 = vmatmul.f32.gmra.mxu0 %v1599
        %v2139 = vpop.f32.mrf.mxu0
        %v2140 = vadd.f32 %v2075, %v2139
        %2141 = vmatmul.f32.gmra.mxu0 %v1602
        %v2142 = vpop.f32.mrf.mxu0
        %v2143 = vadd.f32 %v2078, %v2142
        %2144 = vmatmul.f32.gmra.mxu0 %v1605
        %v2145 = vpop.f32.mrf.mxu0
        %v2146 = vadd.f32 %v2081, %v2145
        %2147 = vmatmul.f32.gmra.mxu0 %v1608
        %v2148 = vpop.f32.mrf.mxu0
        %v2149 = vadd.f32 %v2084, %v2148
        %2150 = vmatmul.f32.gmra.mxu0 %v1611
        %v2151 = vpop.f32.mrf.mxu0
        %v2152 = vadd.f32 %v2087, %v2151
        %2153 = vmatmul.f32.gmra.mxu0 %v1614
        %v2154 = vpop.f32.mrf.mxu0
        %v2155 = vadd.f32 %v2090, %v2154
        %2156 = vmatmul.f32.gmra.mxu0 %v1617
        %v2157 = vpop.f32.mrf.mxu0
        %v2158 = vadd.f32 %v2093, %v2157
        %2159 = vdwg.mxu0
        %2160 = vmatpush.msra.mxu0 %v1665
        %2161 = vmatpush.msra.mxu0 %v1662
        %2162 = vmatpush.msra.mxu0 %v1659
        %2163 = vmatpush.msra.mxu0 %v1656
        %2164 = vmatpush.msra.mxu0 %v1653
        %2165 = vmatpush.msra.mxu0 %v1650
        %2166 = vmatpush.msra.mxu0 %v1647
        %2167 = vmatpush.msra.mxu0 %v1644
        %2168 = vmatpush.msra.mxu0 %v1641
        %2169 = vmatpush.msra.mxu0 %v1638
        %2170 = vmatpush.msra.mxu0 %v1635
        %2171 = vmatpush.msra.mxu0 %v1632
        %2172 = vmatpush.msra.mxu0 %v1629
        %2173 = vmatpush.msra.mxu0 %v1626
        %2174 = vmatpush.msra.mxu0 %v1623
        %2175 = vmatpush.msra.mxu0 %v1620
        %2176 = vmatmul.f32.gmra.mxu0 %v1570
        %v2177 = vpop.f32.mrf.mxu0
        %v2178 = vadd.f32 %v1766, %v2177
        %2179 = vmatmul.f32.gmra.mxu0 %v1573
        %v2180 = vpop.f32.mrf.mxu0
        %v2181 = vadd.f32 %v1766, %v2180
        %2182 = vmatmul.f32.gmra.mxu0 %v1576
        %v2183 = vpop.f32.mrf.mxu0
        %v2184 = vadd.f32 %v1766, %v2183
        %2185 = vmatmul.f32.gmra.mxu0 %v1579
        %v2186 = vpop.f32.mrf.mxu0
        %v2187 = vadd.f32 %v1766, %v2186
        %2188 = vmatmul.f32.gmra.mxu0 %v1582
        %v2189 = vpop.f32.mrf.mxu0
        %v2190 = vadd.f32 %v1766, %v2189
        %2191 = vmatmul.f32.gmra.mxu0 %v1585
        %v2192 = vpop.f32.mrf.mxu0
        %v2193 = vadd.f32 %v1766, %v2192
        %2194 = vmatmul.f32.gmra.mxu0 %v1588
        %v2195 = vpop.f32.mrf.mxu0
        %v2196 = vadd.f32 %v1766, %v2195
        %2197 = vmatmul.f32.gmra.mxu0 %v1591
        %v2198 = vpop.f32.mrf.mxu0
        %v2199 = vadd.f32 %v1766, %v2198
        %2200 = vmatmul.f32.gmra.mxu0 %v1594
        %v2201 = vpop.f32.mrf.mxu0
        %v2202 = vadd.f32 %v1766, %v2201
        %2203 = vmatmul.f32.gmra.mxu0 %v1597
        %v2204 = vpop.f32.mrf.mxu0
        %v2205 = vadd.f32 %v1766, %v2204
        %2206 = vmatmul.f32.gmra.mxu0 %v1600
        %v2207 = vpop.f32.mrf.mxu0
        %v2208 = vadd.f32 %v1766, %v2207
        %2209 = vmatmul.f32.gmra.mxu0 %v1603
        %v2210 = vpop.f32.mrf.mxu0
        %v2211 = vadd.f32 %v1766, %v2210
        %2212 = vmatmul.f32.gmra.mxu0 %v1606
        %v2213 = vpop.f32.mrf.mxu0
        %v2214 = vadd.f32 %v1766, %v2213
        %2215 = vmatmul.f32.gmra.mxu0 %v1609
        %v2216 = vpop.f32.mrf.mxu0
        %v2217 = vadd.f32 %v1766, %v2216
        %2218 = vmatmul.f32.gmra.mxu0 %v1612
        %v2219 = vpop.f32.mrf.mxu0
        %v2220 = vadd.f32 %v1766, %v2219
        %2221 = vmatmul.f32.gmra.mxu0 %v1615
        %v2222 = vpop.f32.mrf.mxu0
        %v2223 = vadd.f32 %v1766, %v2222
        %2224 = vdwg.mxu0
        %2225 = vmatpush.msra.mxu0 %v1713
        %2226 = vmatpush.msra.mxu0 %v1710
        %2227 = vmatpush.msra.mxu0 %v1707
        %2228 = vmatpush.msra.mxu0 %v1704
        %2229 = vmatpush.msra.mxu0 %v1701
        %2230 = vmatpush.msra.mxu0 %v1698
        %2231 = vmatpush.msra.mxu0 %v1695
        %2232 = vmatpush.msra.mxu0 %v1692
        %2233 = vmatpush.msra.mxu0 %v1689
        %2234 = vmatpush.msra.mxu0 %v1686
        %2235 = vmatpush.msra.mxu0 %v1683
        %2236 = vmatpush.msra.mxu0 %v1680
        %2237 = vmatpush.msra.mxu0 %v1677
        %2238 = vmatpush.msra.mxu0 %v1674
        %2239 = vmatpush.msra.mxu0 %v1671
        %2240 = vmatpush.msra.mxu0 %v1668
        %2241 = vmatmul.f32.gmra.mxu0 %v1571
        %v2242 = vpop.f32.mrf.mxu0
        %v2243 = vadd.f32 %v2178, %v2242
        %2244 = vmatmul.f32.gmra.mxu0 %v1574
        %v2245 = vpop.f32.mrf.mxu0
        %v2246 = vadd.f32 %v2181, %v2245
        %2247 = vmatmul.f32.gmra.mxu0 %v1577
        %v2248 = vpop.f32.mrf.mxu0
        %v2249 = vadd.f32 %v2184, %v2248
        %2250 = vmatmul.f32.gmra.mxu0 %v1580
        %v2251 = vpop.f32.mrf.mxu0
        %v2252 = vadd.f32 %v2187, %v2251
        %2253 = vmatmul.f32.gmra.mxu0 %v1583
        %v2254 = vpop.f32.mrf.mxu0
        %v2255 = vadd.f32 %v2190, %v2254
        %2256 = vmatmul.f32.gmra.mxu0 %v1586
        %v2257 = vpop.f32.mrf.mxu0
        %v2258 = vadd.f32 %v2193, %v2257
        %2259 = vmatmul.f32.gmra.mxu0 %v1589
        %v2260 = vpop.f32.mrf.mxu0
        %v2261 = vadd.f32 %v2196, %v2260
        %2262 = vmatmul.f32.gmra.mxu0 %v1592
        %v2263 = vpop.f32.mrf.mxu0
        %v2264 = vadd.f32 %v2199, %v2263
        %2265 = vmatmul.f32.gmra.mxu0 %v1595
        %v2266 = vpop.f32.mrf.mxu0
        %v2267 = vadd.f32 %v2202, %v2266
        %2268 = vmatmul.f32.gmra.mxu0 %v1598
        %v2269 = vpop.f32.mrf.mxu0
        %v2270 = vadd.f32 %v2205, %v2269
        %2271 = vmatmul.f32.gmra.mxu0 %v1601
        %v2272 = vpop.f32.mrf.mxu0
        %v2273 = vadd.f32 %v2208, %v2272
        %2274 = vmatmul.f32.gmra.mxu0 %v1604
        %v2275 = vpop.f32.mrf.mxu0
        %v2276 = vadd.f32 %v2211, %v2275
        %2277 = vmatmul.f32.gmra.mxu0 %v1607
        %v2278 = vpop.f32.mrf.mxu0
        %v2279 = vadd.f32 %v2214, %v2278
        %2280 = vmatmul.f32.gmra.mxu0 %v1610
        %v2281 = vpop.f32.mrf.mxu0
        %v2282 = vadd.f32 %v2217, %v2281
        %2283 = vmatmul.f32.gmra.mxu0 %v1613
        %v2284 = vpop.f32.mrf.mxu0
        %v2285 = vadd.f32 %v2220, %v2284
        %2286 = vmatmul.f32.gmra.mxu0 %v1616
        %v2287 = vpop.f32.mrf.mxu0
        %v2288 = vadd.f32 %v2223, %v2287
        %2289 = vdwg.mxu0
        %2290 = vmatpush.msra.mxu0 %v1761
        %2291 = vmatpush.msra.mxu0 %v1758
        %2292 = vmatpush.msra.mxu0 %v1755
        %2293 = vmatpush.msra.mxu0 %v1752
        %2294 = vmatpush.msra.mxu0 %v1749
        %2295 = vmatpush.msra.mxu0 %v1746
        %2296 = vmatpush.msra.mxu0 %v1743
        %2297 = vmatpush.msra.mxu0 %v1740
        %2298 = vmatpush.msra.mxu0 %v1737
        %2299 = vmatpush.msra.mxu0 %v1734
        %2300 = vmatpush.msra.mxu0 %v1731
        %2301 = vmatpush.msra.mxu0 %v1728
        %2302 = vmatpush.msra.mxu0 %v1725
        %2303 = vmatpush.msra.mxu0 %v1722
        %2304 = vmatpush.msra.mxu0 %v1719
        %2305 = vmatpush.msra.mxu0 %v1716
        %2306 = vmatmul.f32.gmra.mxu0 %v1572
        %v2307 = vpop.f32.mrf.mxu0
        %v2308 = vadd.f32 %v2243, %v2307
        %2309 = vmatmul.f32.gmra.mxu0 %v1575
        %v2310 = vpop.f32.mrf.mxu0
        %v2311 = vadd.f32 %v2246, %v2310
        %2312 = vmatmul.f32.gmra.mxu0 %v1578
        %v2313 = vpop.f32.mrf.mxu0
        %v2314 = vadd.f32 %v2249, %v2313
        %2315 = vmatmul.f32.gmra.mxu0 %v1581
        %v2316 = vpop.f32.mrf.mxu0
        %v2317 = vadd.f32 %v2252, %v2316
        %2318 = vmatmul.f32.gmra.mxu0 %v1584
        %v2319 = vpop.f32.mrf.mxu0
        %v2320 = vadd.f32 %v2255, %v2319
        %2321 = vmatmul.f32.gmra.mxu0 %v1587
        %v2322 = vpop.f32.mrf.mxu0
        %v2323 = vadd.f32 %v2258, %v2322
        %2324 = vmatmul.f32.gmra.mxu0 %v1590
        %v2325 = vpop.f32.mrf.mxu0
        %v2326 = vadd.f32 %v2261, %v2325
        %2327 = vmatmul.f32.gmra.mxu0 %v1593
        %v2328 = vpop.f32.mrf.mxu0
        %v2329 = vadd.f32 %v2264, %v2328
        %2330 = vmatmul.f32.gmra.mxu0 %v1596
        %v2331 = vpop.f32.mrf.mxu0
        %v2332 = vadd.f32 %v2267, %v2331
        %2333 = vmatmul.f32.gmra.mxu0 %v1599
        %v2334 = vpop.f32.mrf.mxu0
        %v2335 = vadd.f32 %v2270, %v2334
        %2336 = vmatmul.f32.gmra.mxu0 %v1602
        %v2337 = vpop.f32.mrf.mxu0
        %v2338 = vadd.f32 %v2273, %v2337
        %2339 = vmatmul.f32.gmra.mxu0 %v1605
        %v2340 = vpop.f32.mrf.mxu0
        %v2341 = vadd.f32 %v2276, %v2340
        %2342 = vmatmul.f32.gmra.mxu0 %v1608
        %v2343 = vpop.f32.mrf.mxu0
        %v2344 = vadd.f32 %v2279, %v2343
        %2345 = vmatmul.f32.gmra.mxu0 %v1611
        %v2346 = vpop.f32.mrf.mxu0
        %v2347 = vadd.f32 %v2282, %v2346
        %2348 = vmatmul.f32.gmra.mxu0 %v1614
        %v2349 = vpop.f32.mrf.mxu0
        %v2350 = vadd.f32 %v2285, %v2349
        %2351 = vmatmul.f32.gmra.mxu0 %v1617
        %v2352 = vpop.f32.mrf.mxu0
        %v2353 = vadd.f32 %v2288, %v2352
        %2354 = vdwg.mxu0
        %v2355 = vmax.f32 %v1918, 0.0
        %v2356 = vmax.f32 %v2113, 0.0
        %v2357 = vmax.f32 %v2308, 0.0
        %v2358 = vmax.f32 %v1921, 0.0
        %v2359 = vmax.f32 %v2116, 0.0
        %v2360 = vmax.f32 %v2311, 0.0
        %v2361 = vmax.f32 %v1924, 0.0
        %v2362 = vmax.f32 %v2119, 0.0
        %v2363 = vmax.f32 %v2314, 0.0
        %v2364 = vmax.f32 %v1927, 0.0
        %v2365 = vmax.f32 %v2122, 0.0
        %v2366 = vmax.f32 %v2317, 0.0
        %v2367 = vmax.f32 %v1930, 0.0
        %v2368 = vmax.f32 %v2125, 0.0
        %v2369 = vmax.f32 %v2320, 0.0
        %v2370 = vmax.f32 %v1933, 0.0
        %v2371 = vmax.f32 %v2128, 0.0
        %v2372 = vmax.f32 %v2323, 0.0
        %v2373 = vmax.f32 %v1936, 0.0
        %v2374 = vmax.f32 %v2131, 0.0
        %v2375 = vmax.f32 %v2326, 0.0
        %v2376 = vmax.f32 %v1939, 0.0
        %v2377 = vmax.f32 %v2134, 0.0
        %v2378 = vmax.f32 %v2329, 0.0
        %v2379 = vmax.f32 %v1942, 0.0
        %v2380 = vmax.f32 %v2137, 0.0
        %v2381 = vmax.f32 %v2332, 0.0
        %v2382 = vmax.f32 %v1945, 0.0
        %v2383 = vmax.f32 %v2140, 0.0
        %v2384 = vmax.f32 %v2335, 0.0
        %v2385 = vmax.f32 %v1948, 0.0
        %v2386 = vmax.f32 %v2143, 0.0
        %v2387 = vmax.f32 %v2338, 0.0
        %v2388 = vmax.f32 %v1951, 0.0
        %v2389 = vmax.f32 %v2146, 0.0
        %v2390 = vmax.f32 %v2341, 0.0
        %v2391 = vmax.f32 %v1954, 0.0
        %v2392 = vmax.f32 %v2149, 0.0
        %v2393 = vmax.f32 %v2344, 0.0
        %v2394 = vmax.f32 %v1957, 0.0
        %v2395 = vmax.f32 %v2152, 0.0
        %v2396 = vmax.f32 %v2347, 0.0
        %v2397 = vmax.f32 %v1960, 0.0
        %v2398 = vmax.f32 %v2155, 0.0
        %v2399 = vmax.f32 %v2350, 0.0
        %v2400 = vmax.f32 %v1963, 0.0
        %v2401 = vmax.f32 %v2158, 0.0
        %v2402 = vmax.f32 %v2353, 0.0
        %v2403 = vld [vmem:[#allocation6] sm:$0xff]
        %v2404 = vld [vmem:[#allocation6 + $0x8] sm:$0xff]
        %v2405 = vld [vmem:[#allocation6 + $0x10] sm:$0xff]
        %v2406 = vld [vmem:[#allocation6 + $0x18] sm:$0xff]
        %v2407 = vld [vmem:[#allocation6 + $0x20] sm:$0xff]
        %v2408 = vld [vmem:[#allocation6 + $0x28] sm:$0xff]
        %v2409 = vld [vmem:[#allocation6 + $0x30] sm:$0xff]
        %v2410 = vld [vmem:[#allocation6 + $0x38] sm:$0xff]
        %v2411 = vld [vmem:[#allocation6 + $0x40] sm:$0xff]
        %v2412 = vld [vmem:[#allocation6 + $0x48] sm:$0xff]
        %v2413 = vld [vmem:[#allocation6 + $0x50] sm:$0xff]
        %v2414 = vld [vmem:[#allocation6 + $0x58] sm:$0xff]
        %v2415 = vld [vmem:[#allocation6 + $0x60] sm:$0xff]
        %v2416 = vld [vmem:[#allocation6 + $0x68] sm:$0xff]
        %v2417 = vld [vmem:[#allocation6 + $0x70] sm:$0xff]
        %v2418 = vld [vmem:[#allocation6 + $0x78] sm:$0xff]
        %v2419 = vld [vmem:[#allocation6 + $0x80] sm:$0xff]
        %v2420 = vld [vmem:[#allocation6 + $0x88] sm:$0xff]
        %v2421 = vld [vmem:[#allocation6 + $0x90] sm:$0xff]
        %v2422 = vld [vmem:[#allocation6 + $0x98] sm:$0xff]
        %v2423 = vld [vmem:[#allocation6 + $0xa0] sm:$0xff]
        %v2424 = vld [vmem:[#allocation6 + $0xa8] sm:$0xff]
        %v2425 = vld [vmem:[#allocation6 + $0xb0] sm:$0xff]
        %v2426 = vld [vmem:[#allocation6 + $0xb8] sm:$0xff]
        %v2427 = vld [vmem:[#allocation6 + $0xc0] sm:$0xff]
        %v2428 = vld [vmem:[#allocation6 + $0xc8] sm:$0xff]
        %v2429 = vld [vmem:[#allocation6 + $0xd0] sm:$0xff]
        %v2430 = vld [vmem:[#allocation6 + $0xd8] sm:$0xff]
        %v2431 = vld [vmem:[#allocation6 + $0xe0] sm:$0xff]
        %v2432 = vld [vmem:[#allocation6 + $0xe8] sm:$0xff]
        %v2433 = vld [vmem:[#allocation6 + $0xf0] sm:$0xff]
        %v2434 = vld [vmem:[#allocation6 + $0xf8] sm:$0xff]
        %v2435 = vld [vmem:[#allocation6 + $0x100] sm:$0xff]
        %v2436 = vld [vmem:[#allocation6 + $0x108] sm:$0xff]
        %v2437 = vld [vmem:[#allocation6 + $0x110] sm:$0xff]
        %v2438 = vld [vmem:[#allocation6 + $0x118] sm:$0xff]
        %v2439 = vld [vmem:[#allocation6 + $0x120] sm:$0xff]
        %v2440 = vld [vmem:[#allocation6 + $0x128] sm:$0xff]
        %v2441 = vld [vmem:[#allocation6 + $0x130] sm:$0xff]
        %v2442 = vld [vmem:[#allocation6 + $0x138] sm:$0xff]
        %v2443 = vld [vmem:[#allocation6 + $0x140] sm:$0xff]
        %v2444 = vld [vmem:[#allocation6 + $0x148] sm:$0xff]
        %v2445 = vld [vmem:[#allocation6 + $0x150] sm:$0xff]
        %v2446 = vld [vmem:[#allocation6 + $0x158] sm:$0xff]
        %v2447 = vld [vmem:[#allocation6 + $0x160] sm:$0xff]
        %v2448 = vld [vmem:[#allocation6 + $0x168] sm:$0xff]
        %v2449 = vld [vmem:[#allocation6 + $0x170] sm:$0xff]
        %v2450 = vld [vmem:[#allocation6 + $0x178] sm:$0xff]
        %v2451 = vld [vmem:[#allocation6 + $0x180] sm:$0xff]
        %v2452 = vld [vmem:[#allocation6 + $0x188] sm:$0xff]
        %v2453 = vld [vmem:[#allocation6 + $0x190] sm:$0xff]
        %v2454 = vld [vmem:[#allocation6 + $0x198] sm:$0xff]
        %v2455 = vld [vmem:[#allocation6 + $0x1a0] sm:$0xff]
        %v2456 = vld [vmem:[#allocation6 + $0x1a8] sm:$0xff]
        %v2457 = vld [vmem:[#allocation6 + $0x1b0] sm:$0xff]
        %v2458 = vld [vmem:[#allocation6 + $0x1b8] sm:$0xff]
        %v2459 = vld [vmem:[#allocation6 + $0x1c0] sm:$0xff]
        %v2460 = vld [vmem:[#allocation6 + $0x1c8] sm:$0xff]
        %v2461 = vld [vmem:[#allocation6 + $0x1d0] sm:$0xff]
        %v2462 = vld [vmem:[#allocation6 + $0x1d8] sm:$0xff]
        %v2463 = vld [vmem:[#allocation6 + $0x1e0] sm:$0xff]
        %v2464 = vld [vmem:[#allocation6 + $0x1e8] sm:$0xff]
        %v2465 = vld [vmem:[#allocation6 + $0x1f0] sm:$0xff]
        %v2466 = vld [vmem:[#allocation6 + $0x1f8] sm:$0xff]
        %v2467 = vld [vmem:[#allocation6 + $0x200] sm:$0xff]
        %v2468 = vld [vmem:[#allocation6 + $0x208] sm:$0xff]
        %v2469 = vld [vmem:[#allocation6 + $0x210] sm:$0xff]
        %v2470 = vld [vmem:[#allocation6 + $0x218] sm:$0xff]
        %v2471 = vld [vmem:[#allocation6 + $0x220] sm:$0xff]
        %v2472 = vld [vmem:[#allocation6 + $0x228] sm:$0xff]
        %v2473 = vld [vmem:[#allocation6 + $0x230] sm:$0xff]
        %v2474 = vld [vmem:[#allocation6 + $0x238] sm:$0xff]
        %v2475 = vld [vmem:[#allocation6 + $0x240] sm:$0xff]
        %v2476 = vld [vmem:[#allocation6 + $0x248] sm:$0xff]
        %v2477 = vld [vmem:[#allocation6 + $0x250] sm:$0xff]
        %v2478 = vld [vmem:[#allocation6 + $0x258] sm:$0xff]
        %v2479 = vld [vmem:[#allocation6 + $0x260] sm:$0xff]
        %v2480 = vld [vmem:[#allocation6 + $0x268] sm:$0xff]
        %v2481 = vld [vmem:[#allocation6 + $0x270] sm:$0xff]
        %v2482 = vld [vmem:[#allocation6 + $0x278] sm:$0xff]
        %v2483 = vld [vmem:[#allocation6 + $0x280] sm:$0xff]
        %v2484 = vld [vmem:[#allocation6 + $0x288] sm:$0xff]
        %v2485 = vld [vmem:[#allocation6 + $0x290] sm:$0xff]
        %v2486 = vld [vmem:[#allocation6 + $0x298] sm:$0xff]
        %v2487 = vld [vmem:[#allocation6 + $0x2a0] sm:$0xff]
        %v2488 = vld [vmem:[#allocation6 + $0x2a8] sm:$0xff]
        %v2489 = vld [vmem:[#allocation6 + $0x2b0] sm:$0xff]
        %v2490 = vld [vmem:[#allocation6 + $0x2b8] sm:$0xff]
        %v2491 = vld [vmem:[#allocation6 + $0x2c0] sm:$0xff]
        %v2492 = vld [vmem:[#allocation6 + $0x2c8] sm:$0xff]
        %v2493 = vld [vmem:[#allocation6 + $0x2d0] sm:$0xff]
        %v2494 = vld [vmem:[#allocation6 + $0x2d8] sm:$0xff]
        %v2495 = vld [vmem:[#allocation6 + $0x2e0] sm:$0xff]
        %v2496 = vld [vmem:[#allocation6 + $0x2e8] sm:$0xff]
        %v2497 = vld [vmem:[#allocation6 + $0x2f0] sm:$0xff]
        %v2498 = vld [vmem:[#allocation6 + $0x2f8] sm:$0xff]
        %v2499 = vld [vmem:[#allocation6 + $0x300] sm:$0xff]
        %v2500 = vld [vmem:[#allocation6 + $0x308] sm:$0xff]
        %v2501 = vld [vmem:[#allocation6 + $0x310] sm:$0xff]
        %v2502 = vld [vmem:[#allocation6 + $0x318] sm:$0xff]
        %v2503 = vld [vmem:[#allocation6 + $0x320] sm:$0xff]
        %v2504 = vld [vmem:[#allocation6 + $0x328] sm:$0xff]
        %v2505 = vld [vmem:[#allocation6 + $0x330] sm:$0xff]
        %v2506 = vld [vmem:[#allocation6 + $0x338] sm:$0xff]
        %v2507 = vld [vmem:[#allocation6 + $0x340] sm:$0xff]
        %v2508 = vld [vmem:[#allocation6 + $0x348] sm:$0xff]
        %v2509 = vld [vmem:[#allocation6 + $0x350] sm:$0xff]
        %v2510 = vld [vmem:[#allocation6 + $0x358] sm:$0xff]
        %v2511 = vld [vmem:[#allocation6 + $0x360] sm:$0xff]
        %v2512 = vld [vmem:[#allocation6 + $0x368] sm:$0xff]
        %v2513 = vld [vmem:[#allocation6 + $0x370] sm:$0xff]
        %v2514 = vld [vmem:[#allocation6 + $0x378] sm:$0xff]
        %v2515 = vld [vmem:[#allocation6 + $0x380] sm:$0xff]
        %v2516 = vld [vmem:[#allocation6 + $0x388] sm:$0xff]
        %v2517 = vld [vmem:[#allocation6 + $0x390] sm:$0xff]
        %v2518 = vld [vmem:[#allocation6 + $0x398] sm:$0xff]
        %v2519 = vld [vmem:[#allocation6 + $0x3a0] sm:$0xff]
        %v2520 = vld [vmem:[#allocation6 + $0x3a8] sm:$0xff]
        %v2521 = vld [vmem:[#allocation6 + $0x3b0] sm:$0xff]
        %v2522 = vld [vmem:[#allocation6 + $0x3b8] sm:$0xff]
        %v2523 = vld [vmem:[#allocation6 + $0x3c0] sm:$0xff]
        %v2524 = vld [vmem:[#allocation6 + $0x3c8] sm:$0xff]
        %v2525 = vld [vmem:[#allocation6 + $0x3d0] sm:$0xff]
        %v2526 = vld [vmem:[#allocation6 + $0x3d8] sm:$0xff]
        %v2527 = vld [vmem:[#allocation6 + $0x3e0] sm:$0xff]
        %v2528 = vld [vmem:[#allocation6 + $0x3e8] sm:$0xff]
        %v2529 = vld [vmem:[#allocation6 + $0x3f0] sm:$0xff]
        %v2530 = vld [vmem:[#allocation6 + $0x3f8] sm:$0xff]
        %v2531 = vld [vmem:[#allocation6 + $0x400] sm:$0xff]
        %v2532 = vld [vmem:[#allocation6 + $0x408] sm:$0xff]
        %v2533 = vld [vmem:[#allocation6 + $0x410] sm:$0xff]
        %v2534 = vld [vmem:[#allocation6 + $0x418] sm:$0xff]
        %v2535 = vld [vmem:[#allocation6 + $0x420] sm:$0xff]
        %v2536 = vld [vmem:[#allocation6 + $0x428] sm:$0xff]
        %v2537 = vld [vmem:[#allocation6 + $0x430] sm:$0xff]
        %v2538 = vld [vmem:[#allocation6 + $0x438] sm:$0xff]
        %v2539 = vld [vmem:[#allocation6 + $0x440] sm:$0xff]
        %v2540 = vld [vmem:[#allocation6 + $0x448] sm:$0xff]
        %v2541 = vld [vmem:[#allocation6 + $0x450] sm:$0xff]
        %v2542 = vld [vmem:[#allocation6 + $0x458] sm:$0xff]
        %v2543 = vld [vmem:[#allocation6 + $0x460] sm:$0xff]
        %v2544 = vld [vmem:[#allocation6 + $0x468] sm:$0xff]
        %v2545 = vld [vmem:[#allocation6 + $0x470] sm:$0xff]
        %v2546 = vld [vmem:[#allocation6 + $0x478] sm:$0xff]
        %v2547 = vld [vmem:[%s8] sm:$0x7]
        %v2549 = vperm.slane %v2547, 0
        %v2550 = vperm.slane %v2547, 1
        %v2551 = vperm.slane %v2547, 2
        %2555 = vmatpush.msra.mxu0 %v2448
        %2556 = vmatpush.msra.mxu0 %v2445
        %2557 = vmatpush.msra.mxu0 %v2442
        %2558 = vmatpush.msra.mxu0 %v2439
        %2559 = vmatpush.msra.mxu0 %v2436
        %2560 = vmatpush.msra.mxu0 %v2433
        %2561 = vmatpush.msra.mxu0 %v2430
        %2562 = vmatpush.msra.mxu0 %v2427
        %2563 = vmatpush.msra.mxu0 %v2424
        %2564 = vmatpush.msra.mxu0 %v2421
        %2565 = vmatpush.msra.mxu0 %v2418
        %2566 = vmatpush.msra.mxu0 %v2415
        %2567 = vmatpush.msra.mxu0 %v2412
        %2568 = vmatpush.msra.mxu0 %v2409
        %2569 = vmatpush.msra.mxu0 %v2406
        %2570 = vmatpush.msra.mxu0 %v2403
        %2571 = vmatmul.f32.gmra.mxu0 %v2355
        %v2572 = vpop.f32.mrf.mxu0
        %v2573 = vadd.f32 %v2549, %v2572
        %2574 = vmatmul.f32.gmra.mxu0 %v2358
        %v2575 = vpop.f32.mrf.mxu0
        %v2576 = vadd.f32 %v2549, %v2575
        %2577 = vmatmul.f32.gmra.mxu0 %v2361
        %v2578 = vpop.f32.mrf.mxu0
        %v2579 = vadd.f32 %v2549, %v2578
        %2580 = vmatmul.f32.gmra.mxu0 %v2364
        %v2581 = vpop.f32.mrf.mxu0
        %v2582 = vadd.f32 %v2549, %v2581
        %2583 = vmatmul.f32.gmra.mxu0 %v2367
        %v2584 = vpop.f32.mrf.mxu0
        %v2585 = vadd.f32 %v2549, %v2584
        %2586 = vmatmul.f32.gmra.mxu0 %v2370
        %v2587 = vpop.f32.mrf.mxu0
        %v2588 = vadd.f32 %v2549, %v2587
        %2589 = vmatmul.f32.gmra.mxu0 %v2373
        %v2590 = vpop.f32.mrf.mxu0
        %v2591 = vadd.f32 %v2549, %v2590
        %2592 = vmatmul.f32.gmra.mxu0 %v2376
        %v2593 = vpop.f32.mrf.mxu0
        %v2594 = vadd.f32 %v2549, %v2593
        %2595 = vmatmul.f32.gmra.mxu0 %v2379
        %v2596 = vpop.f32.mrf.mxu0
        %v2597 = vadd.f32 %v2549, %v2596
        %2598 = vmatmul.f32.gmra.mxu0 %v2382
        %v2599 = vpop.f32.mrf.mxu0
        %v2600 = vadd.f32 %v2549, %v2599
        %2601 = vmatmul.f32.gmra.mxu0 %v2385
        %v2602 = vpop.f32.mrf.mxu0
        %v2603 = vadd.f32 %v2549, %v2602
        %2604 = vmatmul.f32.gmra.mxu0 %v2388
        %v2605 = vpop.f32.mrf.mxu0
        %v2606 = vadd.f32 %v2549, %v2605
        %2607 = vmatmul.f32.gmra.mxu0 %v2391
        %v2608 = vpop.f32.mrf.mxu0
        %v2609 = vadd.f32 %v2549, %v2608
        %2610 = vmatmul.f32.gmra.mxu0 %v2394
        %v2611 = vpop.f32.mrf.mxu0
        %v2612 = vadd.f32 %v2549, %v2611
        %2613 = vmatmul.f32.gmra.mxu0 %v2397
        %v2614 = vpop.f32.mrf.mxu0
        %v2615 = vadd.f32 %v2549, %v2614
        %2616 = vmatmul.f32.gmra.mxu0 %v2400
        %v2617 = vpop.f32.mrf.mxu0
        %v2618 = vadd.f32 %v2549, %v2617
        %2619 = vdwg.mxu0
        %2620 = vmatpush.msra.mxu0 %v2496
        %2621 = vmatpush.msra.mxu0 %v2493
        %2622 = vmatpush.msra.mxu0 %v2490
        %2623 = vmatpush.msra.mxu0 %v2487
        %2624 = vmatpush.msra.mxu0 %v2484
        %2625 = vmatpush.msra.mxu0 %v2481
        %2626 = vmatpush.msra.mxu0 %v2478
        %2627 = vmatpush.msra.mxu0 %v2475
        %2628 = vmatpush.msra.mxu0 %v2472
        %2629 = vmatpush.msra.mxu0 %v2469
        %2630 = vmatpush.msra.mxu0 %v2466
        %2631 = vmatpush.msra.mxu0 %v2463
        %2632 = vmatpush.msra.mxu0 %v2460
        %2633 = vmatpush.msra.mxu0 %v2457
        %2634 = vmatpush.msra.mxu0 %v2454
        %2635 = vmatpush.msra.mxu0 %v2451
        %2636 = vmatmul.f32.gmra.mxu0 %v2356
        %v2637 = vpop.f32.mrf.mxu0
        %v2638 = vadd.f32 %v2573, %v2637
        %2639 = vmatmul.f32.gmra.mxu0 %v2359
        %v2640 = vpop.f32.mrf.mxu0
        %v2641 = vadd.f32 %v2576, %v2640
        %2642 = vmatmul.f32.gmra.mxu0 %v2362
        %v2643 = vpop.f32.mrf.mxu0
        %v2644 = vadd.f32 %v2579, %v2643
        %2645 = vmatmul.f32.gmra.mxu0 %v2365
        %v2646 = vpop.f32.mrf.mxu0
        %v2647 = vadd.f32 %v2582, %v2646
        %2648 = vmatmul.f32.gmra.mxu0 %v2368
        %v2649 = vpop.f32.mrf.mxu0
        %v2650 = vadd.f32 %v2585, %v2649
        %2651 = vmatmul.f32.gmra.mxu0 %v2371
        %v2652 = vpop.f32.mrf.mxu0
        %v2653 = vadd.f32 %v2588, %v2652
        %2654 = vmatmul.f32.gmra.mxu0 %v2374
        %v2655 = vpop.f32.mrf.mxu0
        %v2656 = vadd.f32 %v2591, %v2655
        %2657 = vmatmul.f32.gmra.mxu0 %v2377
        %v2658 = vpop.f32.mrf.mxu0
        %v2659 = vadd.f32 %v2594, %v2658
        %2660 = vmatmul.f32.gmra.mxu0 %v2380
        %v2661 = vpop.f32.mrf.mxu0
        %v2662 = vadd.f32 %v2597, %v2661
        %2663 = vmatmul.f32.gmra.mxu0 %v2383
        %v2664 = vpop.f32.mrf.mxu0
        %v2665 = vadd.f32 %v2600, %v2664
        %2666 = vmatmul.f32.gmra.mxu0 %v2386
        %v2667 = vpop.f32.mrf.mxu0
        %v2668 = vadd.f32 %v2603, %v2667
        %2669 = vmatmul.f32.gmra.mxu0 %v2389
        %v2670 = vpop.f32.mrf.mxu0
        %v2671 = vadd.f32 %v2606, %v2670
        %2672 = vmatmul.f32.gmra.mxu0 %v2392
        %v2673 = vpop.f32.mrf.mxu0
        %v2674 = vadd.f32 %v2609, %v2673
        %2675 = vmatmul.f32.gmra.mxu0 %v2395
        %v2676 = vpop.f32.mrf.mxu0
        %v2677 = vadd.f32 %v2612, %v2676
        %2678 = vmatmul.f32.gmra.mxu0 %v2398
        %v2679 = vpop.f32.mrf.mxu0
        %v2680 = vadd.f32 %v2615, %v2679
        %2681 = vmatmul.f32.gmra.mxu0 %v2401
        %v2682 = vpop.f32.mrf.mxu0
        %v2683 = vadd.f32 %v2618, %v2682
        %2684 = vdwg.mxu0
        %2685 = vmatpush.msra.mxu0 %v2544
        %2686 = vmatpush.msra.mxu0 %v2541
        %2687 = vmatpush.msra.mxu0 %v2538
        %2688 = vmatpush.msra.mxu0 %v2535
        %2689 = vmatpush.msra.mxu0 %v2532
        %2690 = vmatpush.msra.mxu0 %v2529
        %2691 = vmatpush.msra.mxu0 %v2526
        %2692 = vmatpush.msra.mxu0 %v2523
        %2693 = vmatpush.msra.mxu0 %v2520
        %2694 = vmatpush.msra.mxu0 %v2517
        %2695 = vmatpush.msra.mxu0 %v2514
        %2696 = vmatpush.msra.mxu0 %v2511
        %2697 = vmatpush.msra.mxu0 %v2508
        %2698 = vmatpush.msra.mxu0 %v2505
        %2699 = vmatpush.msra.mxu0 %v2502
        %2700 = vmatpush.msra.mxu0 %v2499
        %2701 = vmatmul.f32.gmra.mxu0 %v2357
        %v2702 = vpop.f32.mrf.mxu0
        %v2703 = vadd.f32 %v2638, %v2702
        %2704 = vmatmul.f32.gmra.mxu0 %v2360
        %v2705 = vpop.f32.mrf.mxu0
        %v2706 = vadd.f32 %v2641, %v2705
        %2707 = vmatmul.f32.gmra.mxu0 %v2363
        %v2708 = vpop.f32.mrf.mxu0
        %v2709 = vadd.f32 %v2644, %v2708
        %2710 = vmatmul.f32.gmra.mxu0 %v2366
        %v2711 = vpop.f32.mrf.mxu0
        %v2712 = vadd.f32 %v2647, %v2711
        %2713 = vmatmul.f32.gmra.mxu0 %v2369
        %v2714 = vpop.f32.mrf.mxu0
        %v2715 = vadd.f32 %v2650, %v2714
        %2716 = vmatmul.f32.gmra.mxu0 %v2372
        %v2717 = vpop.f32.mrf.mxu0
        %v2718 = vadd.f32 %v2653, %v2717
        %2719 = vmatmul.f32.gmra.mxu0 %v2375
        %v2720 = vpop.f32.mrf.mxu0
        %v2721 = vadd.f32 %v2656, %v2720
        %2722 = vmatmul.f32.gmra.mxu0 %v2378
        %v2723 = vpop.f32.mrf.mxu0
        %v2724 = vadd.f32 %v2659, %v2723
        %2725 = vmatmul.f32.gmra.mxu0 %v2381
        %v2726 = vpop.f32.mrf.mxu0
        %v2727 = vadd.f32 %v2662, %v2726
        %2728 = vmatmul.f32.gmra.mxu0 %v2384
        %v2729 = vpop.f32.mrf.mxu0
        %v2730 = vadd.f32 %v2665, %v2729
        %2731 = vmatmul.f32.gmra.mxu0 %v2387
        %v2732 = vpop.f32.mrf.mxu0
        %v2733 = vadd.f32 %v2668, %v2732
        %2734 = vmatmul.f32.gmra.mxu0 %v2390
        %v2735 = vpop.f32.mrf.mxu0
        %v2736 = vadd.f32 %v2671, %v2735
        %2737 = vmatmul.f32.gmra.mxu0 %v2393
        %v2738 = vpop.f32.mrf.mxu0
        %v2739 = vadd.f32 %v2674, %v2738
        %2740 = vmatmul.f32.gmra.mxu0 %v2396
        %v2741 = vpop.f32.mrf.mxu0
        %v2742 = vadd.f32 %v2677, %v2741
        %2743 = vmatmul.f32.gmra.mxu0 %v2399
        %v2744 = vpop.f32.mrf.mxu0
        %v2745 = vadd.f32 %v2680, %v2744
        %2746 = vmatmul.f32.gmra.mxu0 %v2402
        %v2747 = vpop.f32.mrf.mxu0
        %v2748 = vadd.f32 %v2683, %v2747
        %2749 = vdwg.mxu0
        %2750 = vmatpush.msra.mxu0 %v2449
        %2751 = vmatpush.msra.mxu0 %v2446
        %2752 = vmatpush.msra.mxu0 %v2443
        %2753 = vmatpush.msra.mxu0 %v2440
        %2754 = vmatpush.msra.mxu0 %v2437
        %2755 = vmatpush.msra.mxu0 %v2434
        %2756 = vmatpush.msra.mxu0 %v2431
        %2757 = vmatpush.msra.mxu0 %v2428
        %2758 = vmatpush.msra.mxu0 %v2425
        %2759 = vmatpush.msra.mxu0 %v2422
        %2760 = vmatpush.msra.mxu0 %v2419
        %2761 = vmatpush.msra.mxu0 %v2416
        %2762 = vmatpush.msra.mxu0 %v2413
        %2763 = vmatpush.msra.mxu0 %v2410
        %2764 = vmatpush.msra.mxu0 %v2407
        %2765 = vmatpush.msra.mxu0 %v2404
        %2766 = vmatmul.f32.gmra.mxu0 %v2355
        %v2767 = vpop.f32.mrf.mxu0
        %v2768 = vadd.f32 %v2550, %v2767
        %2769 = vmatmul.f32.gmra.mxu0 %v2358
        %v2770 = vpop.f32.mrf.mxu0
        %v2771 = vadd.f32 %v2550, %v2770
        %2772 = vmatmul.f32.gmra.mxu0 %v2361
        %v2773 = vpop.f32.mrf.mxu0
        %v2774 = vadd.f32 %v2550, %v2773
        %2775 = vmatmul.f32.gmra.mxu0 %v2364
        %v2776 = vpop.f32.mrf.mxu0
        %v2777 = vadd.f32 %v2550, %v2776
        %2778 = vmatmul.f32.gmra.mxu0 %v2367
        %v2779 = vpop.f32.mrf.mxu0
        %v2780 = vadd.f32 %v2550, %v2779
        %2781 = vmatmul.f32.gmra.mxu0 %v2370
        %v2782 = vpop.f32.mrf.mxu0
        %v2783 = vadd.f32 %v2550, %v2782
        %2784 = vmatmul.f32.gmra.mxu0 %v2373
        %v2785 = vpop.f32.mrf.mxu0
        %v2786 = vadd.f32 %v2550, %v2785
        %2787 = vmatmul.f32.gmra.mxu0 %v2376
        %v2788 = vpop.f32.mrf.mxu0
        %v2789 = vadd.f32 %v2550, %v2788
        %2790 = vmatmul.f32.gmra.mxu0 %v2379
        %v2791 = vpop.f32.mrf.mxu0
        %v2792 = vadd.f32 %v2550, %v2791
        %2793 = vmatmul.f32.gmra.mxu0 %v2382
        %v2794 = vpop.f32.mrf.mxu0
        %v2795 = vadd.f32 %v2550, %v2794
        %2796 = vmatmul.f32.gmra.mxu0 %v2385
        %v2797 = vpop.f32.mrf.mxu0
        %v2798 = vadd.f32 %v2550, %v2797
        %2799 = vmatmul.f32.gmra.mxu0 %v2388
        %v2800 = vpop.f32.mrf.mxu0
        %v2801 = vadd.f32 %v2550, %v2800
        %2802 = vmatmul.f32.gmra.mxu0 %v2391
        %v2803 = vpop.f32.mrf.mxu0
        %v2804 = vadd.f32 %v2550, %v2803
        %2805 = vmatmul.f32.gmra.mxu0 %v2394
        %v2806 = vpop.f32.mrf.mxu0
        %v2807 = vadd.f32 %v2550, %v2806
        %2808 = vmatmul.f32.gmra.mxu0 %v2397
        %v2809 = vpop.f32.mrf.mxu0
        %v2810 = vadd.f32 %v2550, %v2809
        %2811 = vmatmul.f32.gmra.mxu0 %v2400
        %v2812 = vpop.f32.mrf.mxu0
        %v2813 = vadd.f32 %v2550, %v2812
        %2814 = vdwg.mxu0
        %2815 = vmatpush.msra.mxu0 %v2497
        %2816 = vmatpush.msra.mxu0 %v2494
        %2817 = vmatpush.msra.mxu0 %v2491
        %2818 = vmatpush.msra.mxu0 %v2488
        %2819 = vmatpush.msra.mxu0 %v2485
        %2820 = vmatpush.msra.mxu0 %v2482
        %2821 = vmatpush.msra.mxu0 %v2479
        %2822 = vmatpush.msra.mxu0 %v2476
        %2823 = vmatpush.msra.mxu0 %v2473
        %2824 = vmatpush.msra.mxu0 %v2470
        %2825 = vmatpush.msra.mxu0 %v2467
        %2826 = vmatpush.msra.mxu0 %v2464
        %2827 = vmatpush.msra.mxu0 %v2461
        %2828 = vmatpush.msra.mxu0 %v2458
        %2829 = vmatpush.msra.mxu0 %v2455
        %2830 = vmatpush.msra.mxu0 %v2452
        %2831 = vmatmul.f32.gmra.mxu0 %v2356
        %v2832 = vpop.f32.mrf.mxu0
        %v2833 = vadd.f32 %v2768, %v2832
        %2834 = vmatmul.f32.gmra.mxu0 %v2359
        %v2835 = vpop.f32.mrf.mxu0
        %v2836 = vadd.f32 %v2771, %v2835
        %2837 = vmatmul.f32.gmra.mxu0 %v2362
        %v2838 = vpop.f32.mrf.mxu0
        %v2839 = vadd.f32 %v2774, %v2838
        %2840 = vmatmul.f32.gmra.mxu0 %v2365
        %v2841 = vpop.f32.mrf.mxu0
        %v2842 = vadd.f32 %v2777, %v2841
        %2843 = vmatmul.f32.gmra.mxu0 %v2368
        %v2844 = vpop.f32.mrf.mxu0
        %v2845 = vadd.f32 %v2780, %v2844
        %2846 = vmatmul.f32.gmra.mxu0 %v2371
        %v2847 = vpop.f32.mrf.mxu0
        %v2848 = vadd.f32 %v2783, %v2847
        %2849 = vmatmul.f32.gmra.mxu0 %v2374
        %v2850 = vpop.f32.mrf.mxu0
        %v2851 = vadd.f32 %v2786, %v2850
        %2852 = vmatmul.f32.gmra.mxu0 %v2377
        %v2853 = vpop.f32.mrf.mxu0
        %v2854 = vadd.f32 %v2789, %v2853
        %2855 = vmatmul.f32.gmra.mxu0 %v2380
        %v2856 = vpop.f32.mrf.mxu0
        %v2857 = vadd.f32 %v2792, %v2856
        %2858 = vmatmul.f32.gmra.mxu0 %v2383
        %v2859 = vpop.f32.mrf.mxu0
        %v2860 = vadd.f32 %v2795, %v2859
        %2861 = vmatmul.f32.gmra.mxu0 %v2386
        %v2862 = vpop.f32.mrf.mxu0
        %v2863 = vadd.f32 %v2798, %v2862
        %2864 = vmatmul.f32.gmra.mxu0 %v2389
        %v2865 = vpop.f32.mrf.mxu0
        %v2866 = vadd.f32 %v2801, %v2865
        %2867 = vmatmul.f32.gmra.mxu0 %v2392
        %v2868 = vpop.f32.mrf.mxu0
        %v2869 = vadd.f32 %v2804, %v2868
        %2870 = vmatmul.f32.gmra.mxu0 %v2395
        %v2871 = vpop.f32.mrf.mxu0
        %v2872 = vadd.f32 %v2807, %v2871
        %2873 = vmatmul.f32.gmra.mxu0 %v2398
        %v2874 = vpop.f32.mrf.mxu0
        %v2875 = vadd.f32 %v2810, %v2874
        %2876 = vmatmul.f32.gmra.mxu0 %v2401
        %v2877 = vpop.f32.mrf.mxu0
        %v2878 = vadd.f32 %v2813, %v2877
        %2879 = vdwg.mxu0
        %2880 = vmatpush.msra.mxu0 %v2545
        %2881 = vmatpush.msra.mxu0 %v2542
        %2882 = vmatpush.msra.mxu0 %v2539
        %2883 = vmatpush.msra.mxu0 %v2536
        %2884 = vmatpush.msra.mxu0 %v2533
        %2885 = vmatpush.msra.mxu0 %v2530
        %2886 = vmatpush.msra.mxu0 %v2527
        %2887 = vmatpush.msra.mxu0 %v2524
        %2888 = vmatpush.msra.mxu0 %v2521
        %2889 = vmatpush.msra.mxu0 %v2518
        %2890 = vmatpush.msra.mxu0 %v2515
        %2891 = vmatpush.msra.mxu0 %v2512
        %2892 = vmatpush.msra.mxu0 %v2509
        %2893 = vmatpush.msra.mxu0 %v2506
        %2894 = vmatpush.msra.mxu0 %v2503
        %2895 = vmatpush.msra.mxu0 %v2500
        %2896 = vmatmul.f32.gmra.mxu0 %v2357
        %v2897 = vpop.f32.mrf.mxu0
        %v2898 = vadd.f32 %v2833, %v2897
        %2899 = vmatmul.f32.gmra.mxu0 %v2360
        %v2900 = vpop.f32.mrf.mxu0
        %v2901 = vadd.f32 %v2836, %v2900
        %2902 = vmatmul.f32.gmra.mxu0 %v2363
        %v2903 = vpop.f32.mrf.mxu0
        %v2904 = vadd.f32 %v2839, %v2903
        %2905 = vmatmul.f32.gmra.mxu0 %v2366
        %v2906 = vpop.f32.mrf.mxu0
        %v2907 = vadd.f32 %v2842, %v2906
        %2908 = vmatmul.f32.gmra.mxu0 %v2369
        %v2909 = vpop.f32.mrf.mxu0
        %v2910 = vadd.f32 %v2845, %v2909
        %2911 = vmatmul.f32.gmra.mxu0 %v2372
        %v2912 = vpop.f32.mrf.mxu0
        %v2913 = vadd.f32 %v2848, %v2912
        %2914 = vmatmul.f32.gmra.mxu0 %v2375
        %v2915 = vpop.f32.mrf.mxu0
        %v2916 = vadd.f32 %v2851, %v2915
        %2917 = vmatmul.f32.gmra.mxu0 %v2378
        %v2918 = vpop.f32.mrf.mxu0
        %v2919 = vadd.f32 %v2854, %v2918
        %2920 = vmatmul.f32.gmra.mxu0 %v2381
        %v2921 = vpop.f32.mrf.mxu0
        %v2922 = vadd.f32 %v2857, %v2921
        %2923 = vmatmul.f32.gmra.mxu0 %v2384
        %v2924 = vpop.f32.mrf.mxu0
        %v2925 = vadd.f32 %v2860, %v2924
        %2926 = vmatmul.f32.gmra.mxu0 %v2387
        %v2927 = vpop.f32.mrf.mxu0
        %v2928 = vadd.f32 %v2863, %v2927
        %2929 = vmatmul.f32.gmra.mxu0 %v2390
        %v2930 = vpop.f32.mrf.mxu0
        %v2931 = vadd.f32 %v2866, %v2930
        %2932 = vmatmul.f32.gmra.mxu0 %v2393
        %v2933 = vpop.f32.mrf.mxu0
        %v2934 = vadd.f32 %v2869, %v2933
        %2935 = vmatmul.f32.gmra.mxu0 %v2396
        %v2936 = vpop.f32.mrf.mxu0
        %v2937 = vadd.f32 %v2872, %v2936
        %2938 = vmatmul.f32.gmra.mxu0 %v2399
        %v2939 = vpop.f32.mrf.mxu0
        %v2940 = vadd.f32 %v2875, %v2939
        %2941 = vmatmul.f32.gmra.mxu0 %v2402
        %v2942 = vpop.f32.mrf.mxu0
        %v2943 = vadd.f32 %v2878, %v2942
        %2944 = vdwg.mxu0
        %2945 = vmatpush.msra.mxu0 %v2450
        %2946 = vmatpush.msra.mxu0 %v2447
        %2947 = vmatpush.msra.mxu0 %v2444
        %2948 = vmatpush.msra.mxu0 %v2441
        %2949 = vmatpush.msra.mxu0 %v2438
        %2950 = vmatpush.msra.mxu0 %v2435
        %2951 = vmatpush.msra.mxu0 %v2432
        %2952 = vmatpush.msra.mxu0 %v2429
        %2953 = vmatpush.msra.mxu0 %v2426
        %2954 = vmatpush.msra.mxu0 %v2423
        %2955 = vmatpush.msra.mxu0 %v2420
        %2956 = vmatpush.msra.mxu0 %v2417
        %2957 = vmatpush.msra.mxu0 %v2414
        %2958 = vmatpush.msra.mxu0 %v2411
        %2959 = vmatpush.msra.mxu0 %v2408
        %2960 = vmatpush.msra.mxu0 %v2405
        %2961 = vmatmul.f32.gmra.mxu0 %v2355
        %v2962 = vpop.f32.mrf.mxu0
        %v2963 = vadd.f32 %v2551, %v2962
        %2964 = vmatmul.f32.gmra.mxu0 %v2358
        %v2965 = vpop.f32.mrf.mxu0
        %v2966 = vadd.f32 %v2551, %v2965
        %2967 = vmatmul.f32.gmra.mxu0 %v2361
        %v2968 = vpop.f32.mrf.mxu0
        %v2969 = vadd.f32 %v2551, %v2968
        %2970 = vmatmul.f32.gmra.mxu0 %v2364
        %v2971 = vpop.f32.mrf.mxu0
        %v2972 = vadd.f32 %v2551, %v2971
        %2973 = vmatmul.f32.gmra.mxu0 %v2367
        %v2974 = vpop.f32.mrf.mxu0
        %v2975 = vadd.f32 %v2551, %v2974
        %2976 = vmatmul.f32.gmra.mxu0 %v2370
        %v2977 = vpop.f32.mrf.mxu0
        %v2978 = vadd.f32 %v2551, %v2977
        %2979 = vmatmul.f32.gmra.mxu0 %v2373
        %v2980 = vpop.f32.mrf.mxu0
        %v2981 = vadd.f32 %v2551, %v2980
        %2982 = vmatmul.f32.gmra.mxu0 %v2376
        %v2983 = vpop.f32.mrf.mxu0
        %v2984 = vadd.f32 %v2551, %v2983
        %2985 = vmatmul.f32.gmra.mxu0 %v2379
        %v2986 = vpop.f32.mrf.mxu0
        %v2987 = vadd.f32 %v2551, %v2986
        %2988 = vmatmul.f32.gmra.mxu0 %v2382
        %v2989 = vpop.f32.mrf.mxu0
        %v2990 = vadd.f32 %v2551, %v2989
        %2991 = vmatmul.f32.gmra.mxu0 %v2385
        %v2992 = vpop.f32.mrf.mxu0
        %v2993 = vadd.f32 %v2551, %v2992
        %2994 = vmatmul.f32.gmra.mxu0 %v2388
        %v2995 = vpop.f32.mrf.mxu0
        %v2996 = vadd.f32 %v2551, %v2995
        %2997 = vmatmul.f32.gmra.mxu0 %v2391
        %v2998 = vpop.f32.mrf.mxu0
        %v2999 = vadd.f32 %v2551, %v2998
        %3000 = vmatmul.f32.gmra.mxu0 %v2394
        %v3001 = vpop.f32.mrf.mxu0
        %v3002 = vadd.f32 %v2551, %v3001
        %3003 = vmatmul.f32.gmra.mxu0 %v2397
        %v3004 = vpop.f32.mrf.mxu0
        %v3005 = vadd.f32 %v2551, %v3004
        %3006 = vmatmul.f32.gmra.mxu0 %v2400
        %v3007 = vpop.f32.mrf.mxu0
        %v3008 = vadd.f32 %v2551, %v3007
        %3009 = vdwg.mxu0
        %3010 = vmatpush.msra.mxu0 %v2498
        %3011 = vmatpush.msra.mxu0 %v2495
        %3012 = vmatpush.msra.mxu0 %v2492
        %3013 = vmatpush.msra.mxu0 %v2489
        %3014 = vmatpush.msra.mxu0 %v2486
        %3015 = vmatpush.msra.mxu0 %v2483
        %3016 = vmatpush.msra.mxu0 %v2480
        %3017 = vmatpush.msra.mxu0 %v2477
        %3018 = vmatpush.msra.mxu0 %v2474
        %3019 = vmatpush.msra.mxu0 %v2471
        %3020 = vmatpush.msra.mxu0 %v2468
        %3021 = vmatpush.msra.mxu0 %v2465
        %3022 = vmatpush.msra.mxu0 %v2462
        %3023 = vmatpush.msra.mxu0 %v2459
        %3024 = vmatpush.msra.mxu0 %v2456
        %3025 = vmatpush.msra.mxu0 %v2453
        %3026 = vmatmul.f32.gmra.mxu0 %v2356
        %v3027 = vpop.f32.mrf.mxu0
        %v3028 = vadd.f32 %v2963, %v3027
        %3029 = vmatmul.f32.gmra.mxu0 %v2359
        %v3030 = vpop.f32.mrf.mxu0
        %v3031 = vadd.f32 %v2966, %v3030
        %3032 = vmatmul.f32.gmra.mxu0 %v2362
        %v3033 = vpop.f32.mrf.mxu0
        %v3034 = vadd.f32 %v2969, %v3033
        %3035 = vmatmul.f32.gmra.mxu0 %v2365
        %v3036 = vpop.f32.mrf.mxu0
        %v3037 = vadd.f32 %v2972, %v3036
        %3038 = vmatmul.f32.gmra.mxu0 %v2368
        %v3039 = vpop.f32.mrf.mxu0
        %v3040 = vadd.f32 %v2975, %v3039
        %3041 = vmatmul.f32.gmra.mxu0 %v2371
        %v3042 = vpop.f32.mrf.mxu0
        %v3043 = vadd.f32 %v2978, %v3042
        %3044 = vmatmul.f32.gmra.mxu0 %v2374
        %v3045 = vpop.f32.mrf.mxu0
        %v3046 = vadd.f32 %v2981, %v3045
        %3047 = vmatmul.f32.gmra.mxu0 %v2377
        %v3048 = vpop.f32.mrf.mxu0
        %v3049 = vadd.f32 %v2984, %v3048
        %3050 = vmatmul.f32.gmra.mxu0 %v2380
        %v3051 = vpop.f32.mrf.mxu0
        %v3052 = vadd.f32 %v2987, %v3051
        %3053 = vmatmul.f32.gmra.mxu0 %v2383
        %v3054 = vpop.f32.mrf.mxu0
        %v3055 = vadd.f32 %v2990, %v3054
        %3056 = vmatmul.f32.gmra.mxu0 %v2386
        %v3057 = vpop.f32.mrf.mxu0
        %v3058 = vadd.f32 %v2993, %v3057
        %3059 = vmatmul.f32.gmra.mxu0 %v2389
        %v3060 = vpop.f32.mrf.mxu0
        %v3061 = vadd.f32 %v2996, %v3060
        %3062 = vmatmul.f32.gmra.mxu0 %v2392
        %v3063 = vpop.f32.mrf.mxu0
        %v3064 = vadd.f32 %v2999, %v3063
        %3065 = vmatmul.f32.gmra.mxu0 %v2395
        %v3066 = vpop.f32.mrf.mxu0
        %v3067 = vadd.f32 %v3002, %v3066
        %3068 = vmatmul.f32.gmra.mxu0 %v2398
        %v3069 = vpop.f32.mrf.mxu0
        %v3070 = vadd.f32 %v3005, %v3069
        %3071 = vmatmul.f32.gmra.mxu0 %v2401
        %v3072 = vpop.f32.mrf.mxu0
        %v3073 = vadd.f32 %v3008, %v3072
        %3074 = vdwg.mxu0
        %3075 = vmatpush.msra.mxu0 %v2546
        %3076 = vmatpush.msra.mxu0 %v2543
        %3077 = vmatpush.msra.mxu0 %v2540
        %3078 = vmatpush.msra.mxu0 %v2537
        %3079 = vmatpush.msra.mxu0 %v2534
        %3080 = vmatpush.msra.mxu0 %v2531
        %3081 = vmatpush.msra.mxu0 %v2528
        %3082 = vmatpush.msra.mxu0 %v2525
        %3083 = vmatpush.msra.mxu0 %v2522
        %3084 = vmatpush.msra.mxu0 %v2519
        %3085 = vmatpush.msra.mxu0 %v2516
        %3086 = vmatpush.msra.mxu0 %v2513
        %3087 = vmatpush.msra.mxu0 %v2510
        %3088 = vmatpush.msra.mxu0 %v2507
        %3089 = vmatpush.msra.mxu0 %v2504
        %3090 = vmatpush.msra.mxu0 %v2501
        %3091 = vmatmul.f32.gmra.mxu0 %v2357
        %v3092 = vpop.f32.mrf.mxu0
        %v3093 = vadd.f32 %v3028, %v3092
        %3094 = vmatmul.f32.gmra.mxu0 %v2360
        %v3095 = vpop.f32.mrf.mxu0
        %v3096 = vadd.f32 %v3031, %v3095
        %3097 = vmatmul.f32.gmra.mxu0 %v2363
        %v3098 = vpop.f32.mrf.mxu0
        %v3099 = vadd.f32 %v3034, %v3098
        %3100 = vmatmul.f32.gmra.mxu0 %v2366
        %v3101 = vpop.f32.mrf.mxu0
        %v3102 = vadd.f32 %v3037, %v3101
        %3103 = vmatmul.f32.gmra.mxu0 %v2369
        %v3104 = vpop.f32.mrf.mxu0
        %v3105 = vadd.f32 %v3040, %v3104
        %3106 = vmatmul.f32.gmra.mxu0 %v2372
        %v3107 = vpop.f32.mrf.mxu0
        %v3108 = vadd.f32 %v3043, %v3107
        %3109 = vmatmul.f32.gmra.mxu0 %v2375
        %v3110 = vpop.f32.mrf.mxu0
        %v3111 = vadd.f32 %v3046, %v3110
        %3112 = vmatmul.f32.gmra.mxu0 %v2378
        %v3113 = vpop.f32.mrf.mxu0
        %v3114 = vadd.f32 %v3049, %v3113
        %3115 = vmatmul.f32.gmra.mxu0 %v2381
        %v3116 = vpop.f32.mrf.mxu0
        %v3117 = vadd.f32 %v3052, %v3116
        %3118 = vmatmul.f32.gmra.mxu0 %v2384
        %v3119 = vpop.f32.mrf.mxu0
        %v3120 = vadd.f32 %v3055, %v3119
        %3121 = vmatmul.f32.gmra.mxu0 %v2387
        %v3122 = vpop.f32.mrf.mxu0
        %v3123 = vadd.f32 %v3058, %v3122
        %3124 = vmatmul.f32.gmra.mxu0 %v2390
        %v3125 = vpop.f32.mrf.mxu0
        %v3126 = vadd.f32 %v3061, %v3125
        %3127 = vmatmul.f32.gmra.mxu0 %v2393
        %v3128 = vpop.f32.mrf.mxu0
        %v3129 = vadd.f32 %v3064, %v3128
        %3130 = vmatmul.f32.gmra.mxu0 %v2396
        %v3131 = vpop.f32.mrf.mxu0
        %v3132 = vadd.f32 %v3067, %v3131
        %3133 = vmatmul.f32.gmra.mxu0 %v2399
        %v3134 = vpop.f32.mrf.mxu0
        %v3135 = vadd.f32 %v3070, %v3134
        %3136 = vmatmul.f32.gmra.mxu0 %v2402
        %v3137 = vpop.f32.mrf.mxu0
        %v3138 = vadd.f32 %v3073, %v3137
        %3139 = vdwg.mxu0
        %v3140 = vmax.f32 %v2703, 0.0
        %v3141 = vmax.f32 %v2898, 0.0
        %v3142 = vmax.f32 %v3093, 0.0
        %v3143 = vmax.f32 %v2706, 0.0
        %v3144 = vmax.f32 %v2901, 0.0
        %v3145 = vmax.f32 %v3096, 0.0
        %v3146 = vmax.f32 %v2709, 0.0
        %v3147 = vmax.f32 %v2904, 0.0
        %v3148 = vmax.f32 %v3099, 0.0
        %v3149 = vmax.f32 %v2712, 0.0
        %v3150 = vmax.f32 %v2907, 0.0
        %v3151 = vmax.f32 %v3102, 0.0
        %v3152 = vmax.f32 %v2715, 0.0
        %v3153 = vmax.f32 %v2910, 0.0
        %v3154 = vmax.f32 %v3105, 0.0
        %v3155 = vmax.f32 %v2718, 0.0
        %v3156 = vmax.f32 %v2913, 0.0
        %v3157 = vmax.f32 %v3108, 0.0
        %v3158 = vmax.f32 %v2721, 0.0
        %v3159 = vmax.f32 %v2916, 0.0
        %v3160 = vmax.f32 %v3111, 0.0
        %v3161 = vmax.f32 %v2724, 0.0
        %v3162 = vmax.f32 %v2919, 0.0
        %v3163 = vmax.f32 %v3114, 0.0
        %v3164 = vmax.f32 %v2727, 0.0
        %v3165 = vmax.f32 %v2922, 0.0
        %v3166 = vmax.f32 %v3117, 0.0
        %v3167 = vmax.f32 %v2730, 0.0
        %v3168 = vmax.f32 %v2925, 0.0
        %v3169 = vmax.f32 %v3120, 0.0
        %v3170 = vmax.f32 %v2733, 0.0
        %v3171 = vmax.f32 %v2928, 0.0
        %v3172 = vmax.f32 %v3123, 0.0
        %v3173 = vmax.f32 %v2736, 0.0
        %v3174 = vmax.f32 %v2931, 0.0
        %v3175 = vmax.f32 %v3126, 0.0
        %v3176 = vmax.f32 %v2739, 0.0
        %v3177 = vmax.f32 %v2934, 0.0
        %v3178 = vmax.f32 %v3129, 0.0
        %v3179 = vmax.f32 %v2742, 0.0
        %v3180 = vmax.f32 %v2937, 0.0
        %v3181 = vmax.f32 %v3132, 0.0
        %v3182 = vmax.f32 %v2745, 0.0
        %v3183 = vmax.f32 %v2940, 0.0
        %v3184 = vmax.f32 %v3135, 0.0
        %v3185 = vmax.f32 %v2748, 0.0
        %v3186 = vmax.f32 %v2943, 0.0
        %v3187 = vmax.f32 %v3138, 0.0
        %v3188 = vld [vmem:[#allocation7] sm:$0xff]
        %v3189 = vld [vmem:[#allocation7 + $0x8] sm:$0xff]
        %v3190 = vld [vmem:[#allocation7 + $0x10] sm:$0xff]
        %v3191 = vld [vmem:[#allocation7 + $0x18] sm:$0xff]
        %v3192 = vld [vmem:[#allocation7 + $0x20] sm:$0xff]
        %v3193 = vld [vmem:[#allocation7 + $0x28] sm:$0xff]
        %v3194 = vld [vmem:[#allocation7 + $0x30] sm:$0xff]
        %v3195 = vld [vmem:[#allocation7 + $0x38] sm:$0xff]
        %v3196 = vld [vmem:[#allocation7 + $0x40] sm:$0xff]
        %v3197 = vld [vmem:[#allocation7 + $0x48] sm:$0xff]
        %v3198 = vld [vmem:[#allocation7 + $0x50] sm:$0xff]
        %v3199 = vld [vmem:[#allocation7 + $0x58] sm:$0xff]
        %v3200 = vld [vmem:[#allocation7 + $0x60] sm:$0xff]
        %v3201 = vld [vmem:[#allocation7 + $0x68] sm:$0xff]
        %v3202 = vld [vmem:[#allocation7 + $0x70] sm:$0xff]
        %v3203 = vld [vmem:[#allocation7 + $0x78] sm:$0xff]
        %v3204 = vld [vmem:[#allocation7 + $0x80] sm:$0xff]
        %v3205 = vld [vmem:[#allocation7 + $0x88] sm:$0xff]
        %v3206 = vld [vmem:[#allocation7 + $0x90] sm:$0xff]
        %v3207 = vld [vmem:[#allocation7 + $0x98] sm:$0xff]
        %v3208 = vld [vmem:[#allocation7 + $0xa0] sm:$0xff]
        %v3209 = vld [vmem:[#allocation7 + $0xa8] sm:$0xff]
        %v3210 = vld [vmem:[#allocation7 + $0xb0] sm:$0xff]
        %v3211 = vld [vmem:[#allocation7 + $0xb8] sm:$0xff]
        %v3212 = vld [vmem:[#allocation7 + $0xc0] sm:$0xff]
        %v3213 = vld [vmem:[#allocation7 + $0xc8] sm:$0xff]
        %v3214 = vld [vmem:[#allocation7 + $0xd0] sm:$0xff]
        %v3215 = vld [vmem:[#allocation7 + $0xd8] sm:$0xff]
        %v3216 = vld [vmem:[#allocation7 + $0xe0] sm:$0xff]
        %v3217 = vld [vmem:[#allocation7 + $0xe8] sm:$0xff]
        %v3218 = vld [vmem:[#allocation7 + $0xf0] sm:$0xff]
        %v3219 = vld [vmem:[#allocation7 + $0xf8] sm:$0xff]
        %v3220 = vld [vmem:[#allocation7 + $0x100] sm:$0xff]
        %v3221 = vld [vmem:[#allocation7 + $0x108] sm:$0xff]
        %v3222 = vld [vmem:[#allocation7 + $0x110] sm:$0xff]
        %v3223 = vld [vmem:[#allocation7 + $0x118] sm:$0xff]
        %v3224 = vld [vmem:[#allocation7 + $0x120] sm:$0xff]
        %v3225 = vld [vmem:[#allocation7 + $0x128] sm:$0xff]
        %v3226 = vld [vmem:[#allocation7 + $0x130] sm:$0xff]
        %v3227 = vld [vmem:[#allocation7 + $0x138] sm:$0xff]
        %v3228 = vld [vmem:[#allocation7 + $0x140] sm:$0xff]
        %v3229 = vld [vmem:[#allocation7 + $0x148] sm:$0xff]
        %v3230 = vld [vmem:[#allocation7 + $0x150] sm:$0xff]
        %v3231 = vld [vmem:[#allocation7 + $0x158] sm:$0xff]
        %v3232 = vld [vmem:[#allocation7 + $0x160] sm:$0xff]
        %v3233 = vld [vmem:[#allocation7 + $0x168] sm:$0xff]
        %v3234 = vld [vmem:[#allocation7 + $0x170] sm:$0xff]
        %v3235 = vld [vmem:[#allocation7 + $0x178] sm:$0xff]
        %v3236 = vld [vmem:[#allocation7 + $0x180] sm:$0xff]
        %v3237 = vld [vmem:[#allocation7 + $0x188] sm:$0xff]
        %v3238 = vld [vmem:[#allocation7 + $0x190] sm:$0xff]
        %v3239 = vld [vmem:[#allocation7 + $0x198] sm:$0xff]
        %v3240 = vld [vmem:[#allocation7 + $0x1a0] sm:$0xff]
        %v3241 = vld [vmem:[#allocation7 + $0x1a8] sm:$0xff]
        %v3242 = vld [vmem:[#allocation7 + $0x1b0] sm:$0xff]
        %v3243 = vld [vmem:[#allocation7 + $0x1b8] sm:$0xff]
        %v3244 = vld [vmem:[#allocation7 + $0x1c0] sm:$0xff]
        %v3245 = vld [vmem:[#allocation7 + $0x1c8] sm:$0xff]
        %v3246 = vld [vmem:[#allocation7 + $0x1d0] sm:$0xff]
        %v3247 = vld [vmem:[#allocation7 + $0x1d8] sm:$0xff]
        %v3248 = vld [vmem:[#allocation7 + $0x1e0] sm:$0xff]
        %v3249 = vld [vmem:[#allocation7 + $0x1e8] sm:$0xff]
        %v3250 = vld [vmem:[#allocation7 + $0x1f0] sm:$0xff]
        %v3251 = vld [vmem:[#allocation7 + $0x1f8] sm:$0xff]
        %v3252 = vld [vmem:[#allocation7 + $0x200] sm:$0xff]
        %v3253 = vld [vmem:[#allocation7 + $0x208] sm:$0xff]
        %v3254 = vld [vmem:[#allocation7 + $0x210] sm:$0xff]
        %v3255 = vld [vmem:[#allocation7 + $0x218] sm:$0xff]
        %v3256 = vld [vmem:[#allocation7 + $0x220] sm:$0xff]
        %v3257 = vld [vmem:[#allocation7 + $0x228] sm:$0xff]
        %v3258 = vld [vmem:[#allocation7 + $0x230] sm:$0xff]
        %v3259 = vld [vmem:[#allocation7 + $0x238] sm:$0xff]
        %v3260 = vld [vmem:[#allocation7 + $0x240] sm:$0xff]
        %v3261 = vld [vmem:[#allocation7 + $0x248] sm:$0xff]
        %v3262 = vld [vmem:[#allocation7 + $0x250] sm:$0xff]
        %v3263 = vld [vmem:[#allocation7 + $0x258] sm:$0xff]
        %v3264 = vld [vmem:[#allocation7 + $0x260] sm:$0xff]
        %v3265 = vld [vmem:[#allocation7 + $0x268] sm:$0xff]
        %v3266 = vld [vmem:[#allocation7 + $0x270] sm:$0xff]
        %v3267 = vld [vmem:[#allocation7 + $0x278] sm:$0xff]
        %v3268 = vld [vmem:[#allocation7 + $0x280] sm:$0xff]
        %v3269 = vld [vmem:[#allocation7 + $0x288] sm:$0xff]
        %v3270 = vld [vmem:[#allocation7 + $0x290] sm:$0xff]
        %v3271 = vld [vmem:[#allocation7 + $0x298] sm:$0xff]
        %v3272 = vld [vmem:[#allocation7 + $0x2a0] sm:$0xff]
        %v3273 = vld [vmem:[#allocation7 + $0x2a8] sm:$0xff]
        %v3274 = vld [vmem:[#allocation7 + $0x2b0] sm:$0xff]
        %v3275 = vld [vmem:[#allocation7 + $0x2b8] sm:$0xff]
        %v3276 = vld [vmem:[#allocation7 + $0x2c0] sm:$0xff]
        %v3277 = vld [vmem:[#allocation7 + $0x2c8] sm:$0xff]
        %v3278 = vld [vmem:[#allocation7 + $0x2d0] sm:$0xff]
        %v3279 = vld [vmem:[#allocation7 + $0x2d8] sm:$0xff]
        %v3280 = vld [vmem:[#allocation7 + $0x2e0] sm:$0xff]
        %v3281 = vld [vmem:[#allocation7 + $0x2e8] sm:$0xff]
        %v3282 = vld [vmem:[#allocation7 + $0x2f0] sm:$0xff]
        %v3283 = vld [vmem:[#allocation7 + $0x2f8] sm:$0xff]
        %v3284 = vld [vmem:[#allocation7 + $0x300] sm:$0xff]
        %v3285 = vld [vmem:[#allocation7 + $0x308] sm:$0xff]
        %v3286 = vld [vmem:[#allocation7 + $0x310] sm:$0xff]
        %v3287 = vld [vmem:[#allocation7 + $0x318] sm:$0xff]
        %v3288 = vld [vmem:[#allocation7 + $0x320] sm:$0xff]
        %v3289 = vld [vmem:[#allocation7 + $0x328] sm:$0xff]
        %v3290 = vld [vmem:[#allocation7 + $0x330] sm:$0xff]
        %v3291 = vld [vmem:[#allocation7 + $0x338] sm:$0xff]
        %v3292 = vld [vmem:[#allocation7 + $0x340] sm:$0xff]
        %v3293 = vld [vmem:[#allocation7 + $0x348] sm:$0xff]
        %v3294 = vld [vmem:[#allocation7 + $0x350] sm:$0xff]
        %v3295 = vld [vmem:[#allocation7 + $0x358] sm:$0xff]
        %v3296 = vld [vmem:[#allocation7 + $0x360] sm:$0xff]
        %v3297 = vld [vmem:[#allocation7 + $0x368] sm:$0xff]
        %v3298 = vld [vmem:[#allocation7 + $0x370] sm:$0xff]
        %v3299 = vld [vmem:[#allocation7 + $0x378] sm:$0xff]
        %v3300 = vld [vmem:[#allocation7 + $0x380] sm:$0xff]
        %v3301 = vld [vmem:[#allocation7 + $0x388] sm:$0xff]
        %v3302 = vld [vmem:[#allocation7 + $0x390] sm:$0xff]
        %v3303 = vld [vmem:[#allocation7 + $0x398] sm:$0xff]
        %v3304 = vld [vmem:[#allocation7 + $0x3a0] sm:$0xff]
        %v3305 = vld [vmem:[#allocation7 + $0x3a8] sm:$0xff]
        %v3306 = vld [vmem:[#allocation7 + $0x3b0] sm:$0xff]
        %v3307 = vld [vmem:[#allocation7 + $0x3b8] sm:$0xff]
        %v3308 = vld [vmem:[#allocation7 + $0x3c0] sm:$0xff]
        %v3309 = vld [vmem:[#allocation7 + $0x3c8] sm:$0xff]
        %v3310 = vld [vmem:[#allocation7 + $0x3d0] sm:$0xff]
        %v3311 = vld [vmem:[#allocation7 + $0x3d8] sm:$0xff]
        %v3312 = vld [vmem:[#allocation7 + $0x3e0] sm:$0xff]
        %v3313 = vld [vmem:[#allocation7 + $0x3e8] sm:$0xff]
        %v3314 = vld [vmem:[#allocation7 + $0x3f0] sm:$0xff]
        %v3315 = vld [vmem:[#allocation7 + $0x3f8] sm:$0xff]
        %v3316 = vld [vmem:[#allocation7 + $0x400] sm:$0xff]
        %v3317 = vld [vmem:[#allocation7 + $0x408] sm:$0xff]
        %v3318 = vld [vmem:[#allocation7 + $0x410] sm:$0xff]
        %v3319 = vld [vmem:[#allocation7 + $0x418] sm:$0xff]
        %v3320 = vld [vmem:[#allocation7 + $0x420] sm:$0xff]
        %v3321 = vld [vmem:[#allocation7 + $0x428] sm:$0xff]
        %v3322 = vld [vmem:[#allocation7 + $0x430] sm:$0xff]
        %v3323 = vld [vmem:[#allocation7 + $0x438] sm:$0xff]
        %v3324 = vld [vmem:[#allocation7 + $0x440] sm:$0xff]
        %v3325 = vld [vmem:[#allocation7 + $0x448] sm:$0xff]
        %v3326 = vld [vmem:[#allocation7 + $0x450] sm:$0xff]
        %v3327 = vld [vmem:[#allocation7 + $0x458] sm:$0xff]
        %v3328 = vld [vmem:[#allocation7 + $0x460] sm:$0xff]
        %v3329 = vld [vmem:[#allocation7 + $0x468] sm:$0xff]
        %v3330 = vld [vmem:[#allocation7 + $0x470] sm:$0xff]
        %v3331 = vld [vmem:[#allocation7 + $0x478] sm:$0xff]
        %v3332 = vld [vmem:[%s10] sm:$0x7]
        %v3334 = vperm.slane %v3332, 0
        %v3335 = vperm.slane %v3332, 1
        %v3336 = vperm.slane %v3332, 2
        %3340 = vmatpush.msra.mxu0 %v3233
        %3341 = vmatpush.msra.mxu0 %v3230
        %3342 = vmatpush.msra.mxu0 %v3227
        %3343 = vmatpush.msra.mxu0 %v3224
        %3344 = vmatpush.msra.mxu0 %v3221
        %3345 = vmatpush.msra.mxu0 %v3218
        %3346 = vmatpush.msra.mxu0 %v3215
        %3347 = vmatpush.msra.mxu0 %v3212
        %3348 = vmatpush.msra.mxu0 %v3209
        %3349 = vmatpush.msra.mxu0 %v3206
        %3350 = vmatpush.msra.mxu0 %v3203
        %3351 = vmatpush.msra.mxu0 %v3200
        %3352 = vmatpush.msra.mxu0 %v3197
        %3353 = vmatpush.msra.mxu0 %v3194
        %3354 = vmatpush.msra.mxu0 %v3191
        %3355 = vmatpush.msra.mxu0 %v3188
        %3356 = vmatmul.f32.gmra.mxu0 %v3140
        %v3357 = vpop.f32.mrf.mxu0
        %v3358 = vadd.f32 %v3334, %v3357
        %3359 = vmatmul.f32.gmra.mxu0 %v3143
        %v3360 = vpop.f32.mrf.mxu0
        %v3361 = vadd.f32 %v3334, %v3360
        %3362 = vmatmul.f32.gmra.mxu0 %v3146
        %v3363 = vpop.f32.mrf.mxu0
        %v3364 = vadd.f32 %v3334, %v3363
        %3365 = vmatmul.f32.gmra.mxu0 %v3149
        %v3366 = vpop.f32.mrf.mxu0
        %v3367 = vadd.f32 %v3334, %v3366
        %3368 = vmatmul.f32.gmra.mxu0 %v3152
        %v3369 = vpop.f32.mrf.mxu0
        %v3370 = vadd.f32 %v3334, %v3369
        %3371 = vmatmul.f32.gmra.mxu0 %v3155
        %v3372 = vpop.f32.mrf.mxu0
        %v3373 = vadd.f32 %v3334, %v3372
        %3374 = vmatmul.f32.gmra.mxu0 %v3158
        %v3375 = vpop.f32.mrf.mxu0
        %v3376 = vadd.f32 %v3334, %v3375
        %3377 = vmatmul.f32.gmra.mxu0 %v3161
        %v3378 = vpop.f32.mrf.mxu0
        %v3379 = vadd.f32 %v3334, %v3378
        %3380 = vmatmul.f32.gmra.mxu0 %v3164
        %v3381 = vpop.f32.mrf.mxu0
        %v3382 = vadd.f32 %v3334, %v3381
        %3383 = vmatmul.f32.gmra.mxu0 %v3167
        %v3384 = vpop.f32.mrf.mxu0
        %v3385 = vadd.f32 %v3334, %v3384
        %3386 = vmatmul.f32.gmra.mxu0 %v3170
        %v3387 = vpop.f32.mrf.mxu0
        %v3388 = vadd.f32 %v3334, %v3387
        %3389 = vmatmul.f32.gmra.mxu0 %v3173
        %v3390 = vpop.f32.mrf.mxu0
        %v3391 = vadd.f32 %v3334, %v3390
        %3392 = vmatmul.f32.gmra.mxu0 %v3176
        %v3393 = vpop.f32.mrf.mxu0
        %v3394 = vadd.f32 %v3334, %v3393
        %3395 = vmatmul.f32.gmra.mxu0 %v3179
        %v3396 = vpop.f32.mrf.mxu0
        %v3397 = vadd.f32 %v3334, %v3396
        %3398 = vmatmul.f32.gmra.mxu0 %v3182
        %v3399 = vpop.f32.mrf.mxu0
        %v3400 = vadd.f32 %v3334, %v3399
        %3401 = vmatmul.f32.gmra.mxu0 %v3185
        %v3402 = vpop.f32.mrf.mxu0
        %v3403 = vadd.f32 %v3334, %v3402
        %3404 = vdwg.mxu0
        %3405 = vmatpush.msra.mxu0 %v3281
        %3406 = vmatpush.msra.mxu0 %v3278
        %3407 = vmatpush.msra.mxu0 %v3275
        %3408 = vmatpush.msra.mxu0 %v3272
        %3409 = vmatpush.msra.mxu0 %v3269
        %3410 = vmatpush.msra.mxu0 %v3266
        %3411 = vmatpush.msra.mxu0 %v3263
        %3412 = vmatpush.msra.mxu0 %v3260
        %3413 = vmatpush.msra.mxu0 %v3257
        %3414 = vmatpush.msra.mxu0 %v3254
        %3415 = vmatpush.msra.mxu0 %v3251
        %3416 = vmatpush.msra.mxu0 %v3248
        %3417 = vmatpush.msra.mxu0 %v3245
        %3418 = vmatpush.msra.mxu0 %v3242
        %3419 = vmatpush.msra.mxu0 %v3239
        %3420 = vmatpush.msra.mxu0 %v3236
        %3421 = vmatmul.f32.gmra.mxu0 %v3141
        %v3422 = vpop.f32.mrf.mxu0
        %v3423 = vadd.f32 %v3358, %v3422
        %3424 = vmatmul.f32.gmra.mxu0 %v3144
        %v3425 = vpop.f32.mrf.mxu0
        %v3426 = vadd.f32 %v3361, %v3425
        %3427 = vmatmul.f32.gmra.mxu0 %v3147
        %v3428 = vpop.f32.mrf.mxu0
        %v3429 = vadd.f32 %v3364, %v3428
        %3430 = vmatmul.f32.gmra.mxu0 %v3150
        %v3431 = vpop.f32.mrf.mxu0
        %v3432 = vadd.f32 %v3367, %v3431
        %3433 = vmatmul.f32.gmra.mxu0 %v3153
        %v3434 = vpop.f32.mrf.mxu0
        %v3435 = vadd.f32 %v3370, %v3434
        %3436 = vmatmul.f32.gmra.mxu0 %v3156
        %v3437 = vpop.f32.mrf.mxu0
        %v3438 = vadd.f32 %v3373, %v3437
        %3439 = vmatmul.f32.gmra.mxu0 %v3159
        %v3440 = vpop.f32.mrf.mxu0
        %v3441 = vadd.f32 %v3376, %v3440
        %3442 = vmatmul.f32.gmra.mxu0 %v3162
        %v3443 = vpop.f32.mrf.mxu0
        %v3444 = vadd.f32 %v3379, %v3443
        %3445 = vmatmul.f32.gmra.mxu0 %v3165
        %v3446 = vpop.f32.mrf.mxu0
        %v3447 = vadd.f32 %v3382, %v3446
        %3448 = vmatmul.f32.gmra.mxu0 %v3168
        %v3449 = vpop.f32.mrf.mxu0
        %v3450 = vadd.f32 %v3385, %v3449
        %3451 = vmatmul.f32.gmra.mxu0 %v3171
        %v3452 = vpop.f32.mrf.mxu0
        %v3453 = vadd.f32 %v3388, %v3452
        %3454 = vmatmul.f32.gmra.mxu0 %v3174
        %v3455 = vpop.f32.mrf.mxu0
        %v3456 = vadd.f32 %v3391, %v3455
        %3457 = vmatmul.f32.gmra.mxu0 %v3177
        %v3458 = vpop.f32.mrf.mxu0
        %v3459 = vadd.f32 %v3394, %v3458
        %3460 = vmatmul.f32.gmra.mxu0 %v3180
        %v3461 = vpop.f32.mrf.mxu0
        %v3462 = vadd.f32 %v3397, %v3461
        %3463 = vmatmul.f32.gmra.mxu0 %v3183
        %v3464 = vpop.f32.mrf.mxu0
        %v3465 = vadd.f32 %v3400, %v3464
        %3466 = vmatmul.f32.gmra.mxu0 %v3186
        %v3467 = vpop.f32.mrf.mxu0
        %v3468 = vadd.f32 %v3403, %v3467
        %3469 = vdwg.mxu0
        %3470 = vmatpush.msra.mxu0 %v3329
        %3471 = vmatpush.msra.mxu0 %v3326
        %3472 = vmatpush.msra.mxu0 %v3323
        %3473 = vmatpush.msra.mxu0 %v3320
        %3474 = vmatpush.msra.mxu0 %v3317
        %3475 = vmatpush.msra.mxu0 %v3314
        %3476 = vmatpush.msra.mxu0 %v3311
        %3477 = vmatpush.msra.mxu0 %v3308
        %3478 = vmatpush.msra.mxu0 %v3305
        %3479 = vmatpush.msra.mxu0 %v3302
        %3480 = vmatpush.msra.mxu0 %v3299
        %3481 = vmatpush.msra.mxu0 %v3296
        %3482 = vmatpush.msra.mxu0 %v3293
        %3483 = vmatpush.msra.mxu0 %v3290
        %3484 = vmatpush.msra.mxu0 %v3287
        %3485 = vmatpush.msra.mxu0 %v3284
        %3486 = vmatmul.f32.gmra.mxu0 %v3142
        %v3487 = vpop.f32.mrf.mxu0
        %v3488 = vadd.f32 %v3423, %v3487
        %3489 = vmatmul.f32.gmra.mxu0 %v3145
        %v3490 = vpop.f32.mrf.mxu0
        %v3491 = vadd.f32 %v3426, %v3490
        %3492 = vmatmul.f32.gmra.mxu0 %v3148
        %v3493 = vpop.f32.mrf.mxu0
        %v3494 = vadd.f32 %v3429, %v3493
        %3495 = vmatmul.f32.gmra.mxu0 %v3151
        %v3496 = vpop.f32.mrf.mxu0
        %v3497 = vadd.f32 %v3432, %v3496
        %3498 = vmatmul.f32.gmra.mxu0 %v3154
        %v3499 = vpop.f32.mrf.mxu0
        %v3500 = vadd.f32 %v3435, %v3499
        %3501 = vmatmul.f32.gmra.mxu0 %v3157
        %v3502 = vpop.f32.mrf.mxu0
        %v3503 = vadd.f32 %v3438, %v3502
        %3504 = vmatmul.f32.gmra.mxu0 %v3160
        %v3505 = vpop.f32.mrf.mxu0
        %v3506 = vadd.f32 %v3441, %v3505
        %3507 = vmatmul.f32.gmra.mxu0 %v3163
        %v3508 = vpop.f32.mrf.mxu0
        %v3509 = vadd.f32 %v3444, %v3508
        %3510 = vmatmul.f32.gmra.mxu0 %v3166
        %v3511 = vpop.f32.mrf.mxu0
        %v3512 = vadd.f32 %v3447, %v3511
        %3513 = vmatmul.f32.gmra.mxu0 %v3169
        %v3514 = vpop.f32.mrf.mxu0
        %v3515 = vadd.f32 %v3450, %v3514
        %3516 = vmatmul.f32.gmra.mxu0 %v3172
        %v3517 = vpop.f32.mrf.mxu0
        %v3518 = vadd.f32 %v3453, %v3517
        %3519 = vmatmul.f32.gmra.mxu0 %v3175
        %v3520 = vpop.f32.mrf.mxu0
        %v3521 = vadd.f32 %v3456, %v3520
        %3522 = vmatmul.f32.gmra.mxu0 %v3178
        %v3523 = vpop.f32.mrf.mxu0
        %v3524 = vadd.f32 %v3459, %v3523
        %3525 = vmatmul.f32.gmra.mxu0 %v3181
        %v3526 = vpop.f32.mrf.mxu0
        %v3527 = vadd.f32 %v3462, %v3526
        %3528 = vmatmul.f32.gmra.mxu0 %v3184
        %v3529 = vpop.f32.mrf.mxu0
        %v3530 = vadd.f32 %v3465, %v3529
        %3531 = vmatmul.f32.gmra.mxu0 %v3187
        %v3532 = vpop.f32.mrf.mxu0
        %v3533 = vadd.f32 %v3468, %v3532
        %3534 = vdwg.mxu0
        %3535 = vmatpush.msra.mxu0 %v3234
        %3536 = vmatpush.msra.mxu0 %v3231
        %3537 = vmatpush.msra.mxu0 %v3228
        %3538 = vmatpush.msra.mxu0 %v3225
        %3539 = vmatpush.msra.mxu0 %v3222
        %3540 = vmatpush.msra.mxu0 %v3219
        %3541 = vmatpush.msra.mxu0 %v3216
        %3542 = vmatpush.msra.mxu0 %v3213
        %3543 = vmatpush.msra.mxu0 %v3210
        %3544 = vmatpush.msra.mxu0 %v3207
        %3545 = vmatpush.msra.mxu0 %v3204
        %3546 = vmatpush.msra.mxu0 %v3201
        %3547 = vmatpush.msra.mxu0 %v3198
        %3548 = vmatpush.msra.mxu0 %v3195
        %3549 = vmatpush.msra.mxu0 %v3192
        %3550 = vmatpush.msra.mxu0 %v3189
        %3551 = vmatmul.f32.gmra.mxu0 %v3140
        %v3552 = vpop.f32.mrf.mxu0
        %v3553 = vadd.f32 %v3335, %v3552
        %3554 = vmatmul.f32.gmra.mxu0 %v3143
        %v3555 = vpop.f32.mrf.mxu0
        %v3556 = vadd.f32 %v3335, %v3555
        %3557 = vmatmul.f32.gmra.mxu0 %v3146
        %v3558 = vpop.f32.mrf.mxu0
        %v3559 = vadd.f32 %v3335, %v3558
        %3560 = vmatmul.f32.gmra.mxu0 %v3149
        %v3561 = vpop.f32.mrf.mxu0
        %v3562 = vadd.f32 %v3335, %v3561
        %3563 = vmatmul.f32.gmra.mxu0 %v3152
        %v3564 = vpop.f32.mrf.mxu0
        %v3565 = vadd.f32 %v3335, %v3564
        %3566 = vmatmul.f32.gmra.mxu0 %v3155
        %v3567 = vpop.f32.mrf.mxu0
        %v3568 = vadd.f32 %v3335, %v3567
        %3569 = vmatmul.f32.gmra.mxu0 %v3158
        %v3570 = vpop.f32.mrf.mxu0
        %v3571 = vadd.f32 %v3335, %v3570
        %3572 = vmatmul.f32.gmra.mxu0 %v3161
        %v3573 = vpop.f32.mrf.mxu0
        %v3574 = vadd.f32 %v3335, %v3573
        %3575 = vmatmul.f32.gmra.mxu0 %v3164
        %v3576 = vpop.f32.mrf.mxu0
        %v3577 = vadd.f32 %v3335, %v3576
        %3578 = vmatmul.f32.gmra.mxu0 %v3167
        %v3579 = vpop.f32.mrf.mxu0
        %v3580 = vadd.f32 %v3335, %v3579
        %3581 = vmatmul.f32.gmra.mxu0 %v3170
        %v3582 = vpop.f32.mrf.mxu0
        %v3583 = vadd.f32 %v3335, %v3582
        %3584 = vmatmul.f32.gmra.mxu0 %v3173
        %v3585 = vpop.f32.mrf.mxu0
        %v3586 = vadd.f32 %v3335, %v3585
        %3587 = vmatmul.f32.gmra.mxu0 %v3176
        %v3588 = vpop.f32.mrf.mxu0
        %v3589 = vadd.f32 %v3335, %v3588
        %3590 = vmatmul.f32.gmra.mxu0 %v3179
        %v3591 = vpop.f32.mrf.mxu0
        %v3592 = vadd.f32 %v3335, %v3591
        %3593 = vmatmul.f32.gmra.mxu0 %v3182
        %v3594 = vpop.f32.mrf.mxu0
        %v3595 = vadd.f32 %v3335, %v3594
        %3596 = vmatmul.f32.gmra.mxu0 %v3185
        %v3597 = vpop.f32.mrf.mxu0
        %v3598 = vadd.f32 %v3335, %v3597
        %3599 = vdwg.mxu0
        %3600 = vmatpush.msra.mxu0 %v3282
        %3601 = vmatpush.msra.mxu0 %v3279
        %3602 = vmatpush.msra.mxu0 %v3276
        %3603 = vmatpush.msra.mxu0 %v3273
        %3604 = vmatpush.msra.mxu0 %v3270
        %3605 = vmatpush.msra.mxu0 %v3267
        %3606 = vmatpush.msra.mxu0 %v3264
        %3607 = vmatpush.msra.mxu0 %v3261
        %3608 = vmatpush.msra.mxu0 %v3258
        %3609 = vmatpush.msra.mxu0 %v3255
        %3610 = vmatpush.msra.mxu0 %v3252
        %3611 = vmatpush.msra.mxu0 %v3249
        %3612 = vmatpush.msra.mxu0 %v3246
        %3613 = vmatpush.msra.mxu0 %v3243
        %3614 = vmatpush.msra.mxu0 %v3240
        %3615 = vmatpush.msra.mxu0 %v3237
        %3616 = vmatmul.f32.gmra.mxu0 %v3141
        %v3617 = vpop.f32.mrf.mxu0
        %v3618 = vadd.f32 %v3553, %v3617
        %3619 = vmatmul.f32.gmra.mxu0 %v3144
        %v3620 = vpop.f32.mrf.mxu0
        %v3621 = vadd.f32 %v3556, %v3620
        %3622 = vmatmul.f32.gmra.mxu0 %v3147
        %v3623 = vpop.f32.mrf.mxu0
        %v3624 = vadd.f32 %v3559, %v3623
        %3625 = vmatmul.f32.gmra.mxu0 %v3150
        %v3626 = vpop.f32.mrf.mxu0
        %v3627 = vadd.f32 %v3562, %v3626
        %3628 = vmatmul.f32.gmra.mxu0 %v3153
        %v3629 = vpop.f32.mrf.mxu0
        %v3630 = vadd.f32 %v3565, %v3629
        %3631 = vmatmul.f32.gmra.mxu0 %v3156
        %v3632 = vpop.f32.mrf.mxu0
        %v3633 = vadd.f32 %v3568, %v3632
        %3634 = vmatmul.f32.gmra.mxu0 %v3159
        %v3635 = vpop.f32.mrf.mxu0
        %v3636 = vadd.f32 %v3571, %v3635
        %3637 = vmatmul.f32.gmra.mxu0 %v3162
        %v3638 = vpop.f32.mrf.mxu0
        %v3639 = vadd.f32 %v3574, %v3638
        %3640 = vmatmul.f32.gmra.mxu0 %v3165
        %v3641 = vpop.f32.mrf.mxu0
        %v3642 = vadd.f32 %v3577, %v3641
        %3643 = vmatmul.f32.gmra.mxu0 %v3168
        %v3644 = vpop.f32.mrf.mxu0
        %v3645 = vadd.f32 %v3580, %v3644
        %3646 = vmatmul.f32.gmra.mxu0 %v3171
        %v3647 = vpop.f32.mrf.mxu0
        %v3648 = vadd.f32 %v3583, %v3647
        %3649 = vmatmul.f32.gmra.mxu0 %v3174
        %v3650 = vpop.f32.mrf.mxu0
        %v3651 = vadd.f32 %v3586, %v3650
        %3652 = vmatmul.f32.gmra.mxu0 %v3177
        %v3653 = vpop.f32.mrf.mxu0
        %v3654 = vadd.f32 %v3589, %v3653
        %3655 = vmatmul.f32.gmra.mxu0 %v3180
        %v3656 = vpop.f32.mrf.mxu0
        %v3657 = vadd.f32 %v3592, %v3656
        %3658 = vmatmul.f32.gmra.mxu0 %v3183
        %v3659 = vpop.f32.mrf.mxu0
        %v3660 = vadd.f32 %v3595, %v3659
        %3661 = vmatmul.f32.gmra.mxu0 %v3186
        %v3662 = vpop.f32.mrf.mxu0
        %v3663 = vadd.f32 %v3598, %v3662
        %3664 = vdwg.mxu0
        %3665 = vmatpush.msra.mxu0 %v3330
        %3666 = vmatpush.msra.mxu0 %v3327
        %3667 = vmatpush.msra.mxu0 %v3324
        %3668 = vmatpush.msra.mxu0 %v3321
        %3669 = vmatpush.msra.mxu0 %v3318
        %3670 = vmatpush.msra.mxu0 %v3315
        %3671 = vmatpush.msra.mxu0 %v3312
        %3672 = vmatpush.msra.mxu0 %v3309
        %3673 = vmatpush.msra.mxu0 %v3306
        %3674 = vmatpush.msra.mxu0 %v3303
        %3675 = vmatpush.msra.mxu0 %v3300
        %3676 = vmatpush.msra.mxu0 %v3297
        %3677 = vmatpush.msra.mxu0 %v3294
        %3678 = vmatpush.msra.mxu0 %v3291
        %3679 = vmatpush.msra.mxu0 %v3288
        %3680 = vmatpush.msra.mxu0 %v3285
        %3681 = vmatmul.f32.gmra.mxu0 %v3142
        %v3682 = vpop.f32.mrf.mxu0
        %v3683 = vadd.f32 %v3618, %v3682
        %3684 = vmatmul.f32.gmra.mxu0 %v3145
        %v3685 = vpop.f32.mrf.mxu0
        %v3686 = vadd.f32 %v3621, %v3685
        %3687 = vmatmul.f32.gmra.mxu0 %v3148
        %v3688 = vpop.f32.mrf.mxu0
        %v3689 = vadd.f32 %v3624, %v3688
        %3690 = vmatmul.f32.gmra.mxu0 %v3151
        %v3691 = vpop.f32.mrf.mxu0
        %v3692 = vadd.f32 %v3627, %v3691
        %3693 = vmatmul.f32.gmra.mxu0 %v3154
        %v3694 = vpop.f32.mrf.mxu0
        %v3695 = vadd.f32 %v3630, %v3694
        %3696 = vmatmul.f32.gmra.mxu0 %v3157
        %v3697 = vpop.f32.mrf.mxu0
        %v3698 = vadd.f32 %v3633, %v3697
        %3699 = vmatmul.f32.gmra.mxu0 %v3160
        %v3700 = vpop.f32.mrf.mxu0
        %v3701 = vadd.f32 %v3636, %v3700
        %3702 = vmatmul.f32.gmra.mxu0 %v3163
        %v3703 = vpop.f32.mrf.mxu0
        %v3704 = vadd.f32 %v3639, %v3703
        %3705 = vmatmul.f32.gmra.mxu0 %v3166
        %v3706 = vpop.f32.mrf.mxu0
        %v3707 = vadd.f32 %v3642, %v3706
        %3708 = vmatmul.f32.gmra.mxu0 %v3169
        %v3709 = vpop.f32.mrf.mxu0
        %v3710 = vadd.f32 %v3645, %v3709
        %3711 = vmatmul.f32.gmra.mxu0 %v3172
        %v3712 = vpop.f32.mrf.mxu0
        %v3713 = vadd.f32 %v3648, %v3712
        %3714 = vmatmul.f32.gmra.mxu0 %v3175
        %v3715 = vpop.f32.mrf.mxu0
        %v3716 = vadd.f32 %v3651, %v3715
        %3717 = vmatmul.f32.gmra.mxu0 %v3178
        %v3718 = vpop.f32.mrf.mxu0
        %v3719 = vadd.f32 %v3654, %v3718
        %3720 = vmatmul.f32.gmra.mxu0 %v3181
        %v3721 = vpop.f32.mrf.mxu0
        %v3722 = vadd.f32 %v3657, %v3721
        %3723 = vmatmul.f32.gmra.mxu0 %v3184
        %v3724 = vpop.f32.mrf.mxu0
        %v3725 = vadd.f32 %v3660, %v3724
        %3726 = vmatmul.f32.gmra.mxu0 %v3187
        %v3727 = vpop.f32.mrf.mxu0
        %v3728 = vadd.f32 %v3663, %v3727
        %3729 = vdwg.mxu0
        %3730 = vmatpush.msra.mxu0 %v3235
        %3731 = vmatpush.msra.mxu0 %v3232
        %3732 = vmatpush.msra.mxu0 %v3229
        %3733 = vmatpush.msra.mxu0 %v3226
        %3734 = vmatpush.msra.mxu0 %v3223
        %3735 = vmatpush.msra.mxu0 %v3220
        %3736 = vmatpush.msra.mxu0 %v3217
        %3737 = vmatpush.msra.mxu0 %v3214
        %3738 = vmatpush.msra.mxu0 %v3211
        %3739 = vmatpush.msra.mxu0 %v3208
        %3740 = vmatpush.msra.mxu0 %v3205
        %3741 = vmatpush.msra.mxu0 %v3202
        %3742 = vmatpush.msra.mxu0 %v3199
        %3743 = vmatpush.msra.mxu0 %v3196
        %3744 = vmatpush.msra.mxu0 %v3193
        %3745 = vmatpush.msra.mxu0 %v3190
        %3746 = vmatmul.f32.gmra.mxu0 %v3140
        %v3747 = vpop.f32.mrf.mxu0
        %v3748 = vadd.f32 %v3336, %v3747
        %3749 = vmatmul.f32.gmra.mxu0 %v3143
        %v3750 = vpop.f32.mrf.mxu0
        %v3751 = vadd.f32 %v3336, %v3750
        %3752 = vmatmul.f32.gmra.mxu0 %v3146
        %v3753 = vpop.f32.mrf.mxu0
        %v3754 = vadd.f32 %v3336, %v3753
        %3755 = vmatmul.f32.gmra.mxu0 %v3149
        %v3756 = vpop.f32.mrf.mxu0
        %v3757 = vadd.f32 %v3336, %v3756
        %3758 = vmatmul.f32.gmra.mxu0 %v3152
        %v3759 = vpop.f32.mrf.mxu0
        %v3760 = vadd.f32 %v3336, %v3759
        %3761 = vmatmul.f32.gmra.mxu0 %v3155
        %v3762 = vpop.f32.mrf.mxu0
        %v3763 = vadd.f32 %v3336, %v3762
        %3764 = vmatmul.f32.gmra.mxu0 %v3158
        %v3765 = vpop.f32.mrf.mxu0
        %v3766 = vadd.f32 %v3336, %v3765
        %3767 = vmatmul.f32.gmra.mxu0 %v3161
        %v3768 = vpop.f32.mrf.mxu0
        %v3769 = vadd.f32 %v3336, %v3768
        %3770 = vmatmul.f32.gmra.mxu0 %v3164
        %v3771 = vpop.f32.mrf.mxu0
        %v3772 = vadd.f32 %v3336, %v3771
        %3773 = vmatmul.f32.gmra.mxu0 %v3167
        %v3774 = vpop.f32.mrf.mxu0
        %v3775 = vadd.f32 %v3336, %v3774
        %3776 = vmatmul.f32.gmra.mxu0 %v3170
        %v3777 = vpop.f32.mrf.mxu0
        %v3778 = vadd.f32 %v3336, %v3777
        %3779 = vmatmul.f32.gmra.mxu0 %v3173
        %v3780 = vpop.f32.mrf.mxu0
        %v3781 = vadd.f32 %v3336, %v3780
        %3782 = vmatmul.f32.gmra.mxu0 %v3176
        %v3783 = vpop.f32.mrf.mxu0
        %v3784 = vadd.f32 %v3336, %v3783
        %3785 = vmatmul.f32.gmra.mxu0 %v3179
        %v3786 = vpop.f32.mrf.mxu0
        %v3787 = vadd.f32 %v3336, %v3786
        %3788 = vmatmul.f32.gmra.mxu0 %v3182
        %v3789 = vpop.f32.mrf.mxu0
        %v3790 = vadd.f32 %v3336, %v3789
        %3791 = vmatmul.f32.gmra.mxu0 %v3185
        %v3792 = vpop.f32.mrf.mxu0
        %v3793 = vadd.f32 %v3336, %v3792
        %3794 = vdwg.mxu0
        %3795 = vmatpush.msra.mxu0 %v3283
        %3796 = vmatpush.msra.mxu0 %v3280
        %3797 = vmatpush.msra.mxu0 %v3277
        %3798 = vmatpush.msra.mxu0 %v3274
        %3799 = vmatpush.msra.mxu0 %v3271
        %3800 = vmatpush.msra.mxu0 %v3268
        %3801 = vmatpush.msra.mxu0 %v3265
        %3802 = vmatpush.msra.mxu0 %v3262
        %3803 = vmatpush.msra.mxu0 %v3259
        %3804 = vmatpush.msra.mxu0 %v3256
        %3805 = vmatpush.msra.mxu0 %v3253
        %3806 = vmatpush.msra.mxu0 %v3250
        %3807 = vmatpush.msra.mxu0 %v3247
        %3808 = vmatpush.msra.mxu0 %v3244
        %3809 = vmatpush.msra.mxu0 %v3241
        %3810 = vmatpush.msra.mxu0 %v3238
        %3811 = vmatmul.f32.gmra.mxu0 %v3141
        %v3812 = vpop.f32.mrf.mxu0
        %v3813 = vadd.f32 %v3748, %v3812
        %3814 = vmatmul.f32.gmra.mxu0 %v3144
        %v3815 = vpop.f32.mrf.mxu0
        %v3816 = vadd.f32 %v3751, %v3815
        %3817 = vmatmul.f32.gmra.mxu0 %v3147
        %v3818 = vpop.f32.mrf.mxu0
        %v3819 = vadd.f32 %v3754, %v3818
        %3820 = vmatmul.f32.gmra.mxu0 %v3150
        %v3821 = vpop.f32.mrf.mxu0
        %v3822 = vadd.f32 %v3757, %v3821
        %3823 = vmatmul.f32.gmra.mxu0 %v3153
        %v3824 = vpop.f32.mrf.mxu0
        %v3825 = vadd.f32 %v3760, %v3824
        %3826 = vmatmul.f32.gmra.mxu0 %v3156
        %v3827 = vpop.f32.mrf.mxu0
        %v3828 = vadd.f32 %v3763, %v3827
        %3829 = vmatmul.f32.gmra.mxu0 %v3159
        %v3830 = vpop.f32.mrf.mxu0
        %v3831 = vadd.f32 %v3766, %v3830
        %3832 = vmatmul.f32.gmra.mxu0 %v3162
        %v3833 = vpop.f32.mrf.mxu0
        %v3834 = vadd.f32 %v3769, %v3833
        %3835 = vmatmul.f32.gmra.mxu0 %v3165
        %v3836 = vpop.f32.mrf.mxu0
        %v3837 = vadd.f32 %v3772, %v3836
        %3838 = vmatmul.f32.gmra.mxu0 %v3168
        %v3839 = vpop.f32.mrf.mxu0
        %v3840 = vadd.f32 %v3775, %v3839
        %3841 = vmatmul.f32.gmra.mxu0 %v3171
        %v3842 = vpop.f32.mrf.mxu0
        %v3843 = vadd.f32 %v3778, %v3842
        %3844 = vmatmul.f32.gmra.mxu0 %v3174
        %v3845 = vpop.f32.mrf.mxu0
        %v3846 = vadd.f32 %v3781, %v3845
        %3847 = vmatmul.f32.gmra.mxu0 %v3177
        %v3848 = vpop.f32.mrf.mxu0
        %v3849 = vadd.f32 %v3784, %v3848
        %3850 = vmatmul.f32.gmra.mxu0 %v3180
        %v3851 = vpop.f32.mrf.mxu0
        %v3852 = vadd.f32 %v3787, %v3851
        %3853 = vmatmul.f32.gmra.mxu0 %v3183
        %v3854 = vpop.f32.mrf.mxu0
        %v3855 = vadd.f32 %v3790, %v3854
        %3856 = vmatmul.f32.gmra.mxu0 %v3186
        %v3857 = vpop.f32.mrf.mxu0
        %v3858 = vadd.f32 %v3793, %v3857
        %3859 = vdwg.mxu0
        %3860 = vmatpush.msra.mxu0 %v3331
        %3861 = vmatpush.msra.mxu0 %v3328
        %3862 = vmatpush.msra.mxu0 %v3325
        %3863 = vmatpush.msra.mxu0 %v3322
        %3864 = vmatpush.msra.mxu0 %v3319
        %3865 = vmatpush.msra.mxu0 %v3316
        %3866 = vmatpush.msra.mxu0 %v3313
        %3867 = vmatpush.msra.mxu0 %v3310
        %3868 = vmatpush.msra.mxu0 %v3307
        %3869 = vmatpush.msra.mxu0 %v3304
        %3870 = vmatpush.msra.mxu0 %v3301
        %3871 = vmatpush.msra.mxu0 %v3298
        %3872 = vmatpush.msra.mxu0 %v3295
        %3873 = vmatpush.msra.mxu0 %v3292
        %3874 = vmatpush.msra.mxu0 %v3289
        %3875 = vmatpush.msra.mxu0 %v3286
        %3876 = vmatmul.f32.gmra.mxu0 %v3142
        %v3877 = vpop.f32.mrf.mxu0
        %v3878 = vadd.f32 %v3813, %v3877
        %3879 = vmatmul.f32.gmra.mxu0 %v3145
        %v3880 = vpop.f32.mrf.mxu0
        %v3881 = vadd.f32 %v3816, %v3880
        %3882 = vmatmul.f32.gmra.mxu0 %v3148
        %v3883 = vpop.f32.mrf.mxu0
        %v3884 = vadd.f32 %v3819, %v3883
        %3885 = vmatmul.f32.gmra.mxu0 %v3151
        %v3886 = vpop.f32.mrf.mxu0
        %v3887 = vadd.f32 %v3822, %v3886
        %3888 = vmatmul.f32.gmra.mxu0 %v3154
        %v3889 = vpop.f32.mrf.mxu0
        %v3890 = vadd.f32 %v3825, %v3889
        %3891 = vmatmul.f32.gmra.mxu0 %v3157
        %v3892 = vpop.f32.mrf.mxu0
        %v3893 = vadd.f32 %v3828, %v3892
        %3894 = vmatmul.f32.gmra.mxu0 %v3160
        %v3895 = vpop.f32.mrf.mxu0
        %v3896 = vadd.f32 %v3831, %v3895
        %3897 = vmatmul.f32.gmra.mxu0 %v3163
        %v3898 = vpop.f32.mrf.mxu0
        %v3899 = vadd.f32 %v3834, %v3898
        %3900 = vmatmul.f32.gmra.mxu0 %v3166
        %v3901 = vpop.f32.mrf.mxu0
        %v3902 = vadd.f32 %v3837, %v3901
        %3903 = vmatmul.f32.gmra.mxu0 %v3169
        %v3904 = vpop.f32.mrf.mxu0
        %v3905 = vadd.f32 %v3840, %v3904
        %3906 = vmatmul.f32.gmra.mxu0 %v3172
        %v3907 = vpop.f32.mrf.mxu0
        %v3908 = vadd.f32 %v3843, %v3907
        %3909 = vmatmul.f32.gmra.mxu0 %v3175
        %v3910 = vpop.f32.mrf.mxu0
        %v3911 = vadd.f32 %v3846, %v3910
        %3912 = vmatmul.f32.gmra.mxu0 %v3178
        %v3913 = vpop.f32.mrf.mxu0
        %v3914 = vadd.f32 %v3849, %v3913
        %3915 = vmatmul.f32.gmra.mxu0 %v3181
        %v3916 = vpop.f32.mrf.mxu0
        %v3917 = vadd.f32 %v3852, %v3916
        %3918 = vmatmul.f32.gmra.mxu0 %v3184
        %v3919 = vpop.f32.mrf.mxu0
        %v3920 = vadd.f32 %v3855, %v3919
        %3921 = vmatmul.f32.gmra.mxu0 %v3187
        %v3922 = vpop.f32.mrf.mxu0
        %v3923 = vadd.f32 %v3858, %v3922
        %3924 = vdwg.mxu0
        %v3925 = vmax.f32 %v3488, 0.0
        %v3926 = vmax.f32 %v3683, 0.0
        %v3927 = vmax.f32 %v3878, 0.0
        %v3928 = vmax.f32 %v3491, 0.0
        %v3929 = vmax.f32 %v3686, 0.0
        %v3930 = vmax.f32 %v3881, 0.0
        %v3931 = vmax.f32 %v3494, 0.0
        %v3932 = vmax.f32 %v3689, 0.0
        %v3933 = vmax.f32 %v3884, 0.0
        %v3934 = vmax.f32 %v3497, 0.0
        %v3935 = vmax.f32 %v3692, 0.0
        %v3936 = vmax.f32 %v3887, 0.0
        %v3937 = vmax.f32 %v3500, 0.0
        %v3938 = vmax.f32 %v3695, 0.0
        %v3939 = vmax.f32 %v3890, 0.0
        %v3940 = vmax.f32 %v3503, 0.0
        %v3941 = vmax.f32 %v3698, 0.0
        %v3942 = vmax.f32 %v3893, 0.0
        %v3943 = vmax.f32 %v3506, 0.0
        %v3944 = vmax.f32 %v3701, 0.0
        %v3945 = vmax.f32 %v3896, 0.0
        %v3946 = vmax.f32 %v3509, 0.0
        %v3947 = vmax.f32 %v3704, 0.0
        %v3948 = vmax.f32 %v3899, 0.0
        %v3949 = vmax.f32 %v3512, 0.0
        %v3950 = vmax.f32 %v3707, 0.0
        %v3951 = vmax.f32 %v3902, 0.0
        %v3952 = vmax.f32 %v3515, 0.0
        %v3953 = vmax.f32 %v3710, 0.0
        %v3954 = vmax.f32 %v3905, 0.0
        %v3955 = vmax.f32 %v3518, 0.0
        %v3956 = vmax.f32 %v3713, 0.0
        %v3957 = vmax.f32 %v3908, 0.0
        %v3958 = vmax.f32 %v3521, 0.0
        %v3959 = vmax.f32 %v3716, 0.0
        %v3960 = vmax.f32 %v3911, 0.0
        %v3961 = vmax.f32 %v3524, 0.0
        %v3962 = vmax.f32 %v3719, 0.0
        %v3963 = vmax.f32 %v3914, 0.0
        %v3964 = vmax.f32 %v3527, 0.0
        %v3965 = vmax.f32 %v3722, 0.0
        %v3966 = vmax.f32 %v3917, 0.0
        %v3967 = vmax.f32 %v3530, 0.0
        %v3968 = vmax.f32 %v3725, 0.0
        %v3969 = vmax.f32 %v3920, 0.0
        %v3970 = vmax.f32 %v3533, 0.0
        %v3971 = vmax.f32 %v3728, 0.0
        %v3972 = vmax.f32 %v3923, 0.0
        %v3973 = vld [vmem:[%s11] sm:$0xff]
        %v3974 = vld [vmem:[%s11 + $0x8] sm:$0xff]
        %v3975 = vld [vmem:[%s11 + $0x10] sm:$0xff]
        %v3976 = vld [vmem:[%s11 + $0x18] sm:$0xff]
        %v3977 = vld [vmem:[%s11 + $0x20] sm:$0xff]
        %v3978 = vld [vmem:[%s11 + $0x28] sm:$0xff]
        %v3979 = vld [vmem:[%s11 + $0x30] sm:$0xff]
        %v3980 = vld [vmem:[%s11 + $0x38] sm:$0xff]
        %v3981 = vld [vmem:[%s11 + $0x40] sm:$0xff]
        %v3982 = vld [vmem:[%s11 + $0x48] sm:$0xff]
        %v3983 = vld [vmem:[%s11 + $0x50] sm:$0xff]
        %v3984 = vld [vmem:[%s11 + $0x58] sm:$0xff]
        %v3985 = vld [vmem:[%s11 + $0x60] sm:$0xff]
        %v3986 = vld [vmem:[%s11 + $0x68] sm:$0xff]
        %v3987 = vld [vmem:[%s11 + $0x70] sm:$0xff]
        %v3988 = vld [vmem:[%s11 + $0x78] sm:$0xff]
        %v3989 = vld [vmem:[%s11 + $0x80] sm:$0xff]
        %v3990 = vld [vmem:[%s11 + $0x88] sm:$0xff]
        %v3991 = vld [vmem:[%s11 + $0x90] sm:$0xff]
        %v3992 = vld [vmem:[%s11 + $0x98] sm:$0xff]
        %v3993 = vld [vmem:[%s11 + $0xa0] sm:$0xff]
        %v3994 = vld [vmem:[%s11 + $0xa8] sm:$0xff]
        %v3995 = vld [vmem:[%s11 + $0xb0] sm:$0xff]
        %v3996 = vld [vmem:[%s11 + $0xb8] sm:$0xff]
        %v3997 = vld [vmem:[%s11 + $0xc0] sm:$0xff]
        %v3998 = vld [vmem:[%s11 + $0xc8] sm:$0xff]
        %v3999 = vld [vmem:[%s11 + $0xd0] sm:$0xff]
        %v4000 = vld [vmem:[%s11 + $0xd8] sm:$0xff]
        %v4001 = vld [vmem:[%s11 + $0xe0] sm:$0xff]
        %v4002 = vld [vmem:[%s11 + $0xe8] sm:$0xff]
        %v4003 = vld [vmem:[%s11 + $0xf0] sm:$0xff]
        %v4004 = vld [vmem:[%s11 + $0xf8] sm:$0xff]
        %v4005 = vld [vmem:[%s11 + $0x100] sm:$0xff]
        %v4006 = vld [vmem:[%s11 + $0x108] sm:$0xff]
        %v4007 = vld [vmem:[%s11 + $0x110] sm:$0xff]
        %v4008 = vld [vmem:[%s11 + $0x118] sm:$0xff]
        %v4009 = vld [vmem:[%s11 + $0x120] sm:$0xff]
        %v4010 = vld [vmem:[%s11 + $0x128] sm:$0xff]
        %v4011 = vld [vmem:[%s11 + $0x130] sm:$0xff]
        %v4012 = vld [vmem:[%s11 + $0x138] sm:$0xff]
        %v4013 = vld [vmem:[%s11 + $0x140] sm:$0xff]
        %v4014 = vld [vmem:[%s11 + $0x148] sm:$0xff]
        %v4015 = vld [vmem:[%s11 + $0x150] sm:$0xff]
        %v4016 = vld [vmem:[%s11 + $0x158] sm:$0xff]
        %v4017 = vld [vmem:[%s11 + $0x160] sm:$0xff]
        %v4018 = vld [vmem:[%s11 + $0x168] sm:$0xff]
        %v4019 = vld [vmem:[%s11 + $0x170] sm:$0xff]
        %v4020 = vld [vmem:[%s11 + $0x178] sm:$0xff]
        %v4021 = vld [vmem:[%s12] sm:$0x1]
        %v4023 = vperm.slane %v4021, 0
        %4025 = vmatpush.msra.mxu0 %v3988
        %4026 = vmatpush.msra.mxu0 %v3987
        %4027 = vmatpush.msra.mxu0 %v3986
        %4028 = vmatpush.msra.mxu0 %v3985
        %4029 = vmatpush.msra.mxu0 %v3984
        %4030 = vmatpush.msra.mxu0 %v3983
        %4031 = vmatpush.msra.mxu0 %v3982
        %4032 = vmatpush.msra.mxu0 %v3981
        %4033 = vmatpush.msra.mxu0 %v3980
        %4034 = vmatpush.msra.mxu0 %v3979
        %4035 = vmatpush.msra.mxu0 %v3978
        %4036 = vmatpush.msra.mxu0 %v3977
        %4037 = vmatpush.msra.mxu0 %v3976
        %4038 = vmatpush.msra.mxu0 %v3975
        %4039 = vmatpush.msra.mxu0 %v3974
        %4040 = vmatpush.msra.mxu0 %v3973
        %4041 = vmatmul.f32.gmra.mxu0 %v3925
        %v4042 = vpop.f32.mrf.mxu0
        %v4043 = vadd.f32 %v4023, %v4042
        %4044 = vmatmul.f32.gmra.mxu0 %v3928
        %v4045 = vpop.f32.mrf.mxu0
        %v4046 = vadd.f32 %v4023, %v4045
        %4047 = vmatmul.f32.gmra.mxu0 %v3931
        %v4048 = vpop.f32.mrf.mxu0
        %v4049 = vadd.f32 %v4023, %v4048
        %4050 = vmatmul.f32.gmra.mxu0 %v3934
        %v4051 = vpop.f32.mrf.mxu0
        %v4052 = vadd.f32 %v4023, %v4051
        %4053 = vmatmul.f32.gmra.mxu0 %v3937
        %v4054 = vpop.f32.mrf.mxu0
        %v4055 = vadd.f32 %v4023, %v4054
        %4056 = vmatmul.f32.gmra.mxu0 %v3940
        %v4057 = vpop.f32.mrf.mxu0
        %v4058 = vadd.f32 %v4023, %v4057
        %4059 = vmatmul.f32.gmra.mxu0 %v3943
        %v4060 = vpop.f32.mrf.mxu0
        %v4061 = vadd.f32 %v4023, %v4060
        %4062 = vmatmul.f32.gmra.mxu0 %v3946
        %v4063 = vpop.f32.mrf.mxu0
        %v4064 = vadd.f32 %v4023, %v4063
        %4065 = vmatmul.f32.gmra.mxu0 %v3949
        %v4066 = vpop.f32.mrf.mxu0
        %v4067 = vadd.f32 %v4023, %v4066
        %4068 = vmatmul.f32.gmra.mxu0 %v3952
        %v4069 = vpop.f32.mrf.mxu0
        %v4070 = vadd.f32 %v4023, %v4069
        %4071 = vmatmul.f32.gmra.mxu0 %v3955
        %v4072 = vpop.f32.mrf.mxu0
        %v4073 = vadd.f32 %v4023, %v4072
        %4074 = vmatmul.f32.gmra.mxu0 %v3958
        %v4075 = vpop.f32.mrf.mxu0
        %v4076 = vadd.f32 %v4023, %v4075
        %4077 = vmatmul.f32.gmra.mxu0 %v3961
        %v4078 = vpop.f32.mrf.mxu0
        %v4079 = vadd.f32 %v4023, %v4078
        %4080 = vmatmul.f32.gmra.mxu0 %v3964
        %v4081 = vpop.f32.mrf.mxu0
        %v4082 = vadd.f32 %v4023, %v4081
        %4083 = vmatmul.f32.gmra.mxu0 %v3967
        %v4084 = vpop.f32.mrf.mxu0
        %v4085 = vadd.f32 %v4023, %v4084
        %4086 = vmatmul.f32.gmra.mxu0 %v3970
        %v4087 = vpop.f32.mrf.mxu0
        %v4088 = vadd.f32 %v4023, %v4087
        %4089 = vdwg.mxu0
        %4090 = vmatpush.msra.mxu0 %v4004
        %4091 = vmatpush.msra.mxu0 %v4003
        %4092 = vmatpush.msra.mxu0 %v4002
        %4093 = vmatpush.msra.mxu0 %v4001
        %4094 = vmatpush.msra.mxu0 %v4000
        %4095 = vmatpush.msra.mxu0 %v3999
        %4096 = vmatpush.msra.mxu0 %v3998
        %4097 = vmatpush.msra.mxu0 %v3997
        %4098 = vmatpush.msra.mxu0 %v3996
        %4099 = vmatpush.msra.mxu0 %v3995
        %4100 = vmatpush.msra.mxu0 %v3994
        %4101 = vmatpush.msra.mxu0 %v3993
        %4102 = vmatpush.msra.mxu0 %v3992
        %4103 = vmatpush.msra.mxu0 %v3991
        %4104 = vmatpush.msra.mxu0 %v3990
        %4105 = vmatpush.msra.mxu0 %v3989
        %4106 = vmatmul.f32.gmra.mxu0 %v3926
        %v4107 = vpop.f32.mrf.mxu0
        %v4108 = vadd.f32 %v4043, %v4107
        %4109 = vmatmul.f32.gmra.mxu0 %v3929
        %v4110 = vpop.f32.mrf.mxu0
        %v4111 = vadd.f32 %v4046, %v4110
        %4112 = vmatmul.f32.gmra.mxu0 %v3932
        %v4113 = vpop.f32.mrf.mxu0
        %v4114 = vadd.f32 %v4049, %v4113
        %4115 = vmatmul.f32.gmra.mxu0 %v3935
        %v4116 = vpop.f32.mrf.mxu0
        %v4117 = vadd.f32 %v4052, %v4116
        %4118 = vmatmul.f32.gmra.mxu0 %v3938
        %v4119 = vpop.f32.mrf.mxu0
        %v4120 = vadd.f32 %v4055, %v4119
        %4121 = vmatmul.f32.gmra.mxu0 %v3941
        %v4122 = vpop.f32.mrf.mxu0
        %v4123 = vadd.f32 %v4058, %v4122
        %4124 = vmatmul.f32.gmra.mxu0 %v3944
        %v4125 = vpop.f32.mrf.mxu0
        %v4126 = vadd.f32 %v4061, %v4125
        %4127 = vmatmul.f32.gmra.mxu0 %v3947
        %v4128 = vpop.f32.mrf.mxu0
        %v4129 = vadd.f32 %v4064, %v4128
        %4130 = vmatmul.f32.gmra.mxu0 %v3950
        %v4131 = vpop.f32.mrf.mxu0
        %v4132 = vadd.f32 %v4067, %v4131
        %4133 = vmatmul.f32.gmra.mxu0 %v3953
        %v4134 = vpop.f32.mrf.mxu0
        %v4135 = vadd.f32 %v4070, %v4134
        %4136 = vmatmul.f32.gmra.mxu0 %v3956
        %v4137 = vpop.f32.mrf.mxu0
        %v4138 = vadd.f32 %v4073, %v4137
        %4139 = vmatmul.f32.gmra.mxu0 %v3959
        %v4140 = vpop.f32.mrf.mxu0
        %v4141 = vadd.f32 %v4076, %v4140
        %4142 = vmatmul.f32.gmra.mxu0 %v3962
        %v4143 = vpop.f32.mrf.mxu0
        %v4144 = vadd.f32 %v4079, %v4143
        %4145 = vmatmul.f32.gmra.mxu0 %v3965
        %v4146 = vpop.f32.mrf.mxu0
        %v4147 = vadd.f32 %v4082, %v4146
        %4148 = vmatmul.f32.gmra.mxu0 %v3968
        %v4149 = vpop.f32.mrf.mxu0
        %v4150 = vadd.f32 %v4085, %v4149
        %4151 = vmatmul.f32.gmra.mxu0 %v3971
        %v4152 = vpop.f32.mrf.mxu0
        %v4153 = vadd.f32 %v4088, %v4152
        %4154 = vdwg.mxu0
        %4155 = vmatpush.msra.mxu0 %v4020
        %4156 = vmatpush.msra.mxu0 %v4019
        %4157 = vmatpush.msra.mxu0 %v4018
        %4158 = vmatpush.msra.mxu0 %v4017
        %4159 = vmatpush.msra.mxu0 %v4016
        %4160 = vmatpush.msra.mxu0 %v4015
        %4161 = vmatpush.msra.mxu0 %v4014
        %4162 = vmatpush.msra.mxu0 %v4013
        %4163 = vmatpush.msra.mxu0 %v4012
        %4164 = vmatpush.msra.mxu0 %v4011
        %4165 = vmatpush.msra.mxu0 %v4010
        %4166 = vmatpush.msra.mxu0 %v4009
        %4167 = vmatpush.msra.mxu0 %v4008
        %4168 = vmatpush.msra.mxu0 %v4007
        %4169 = vmatpush.msra.mxu0 %v4006
        %4170 = vmatpush.msra.mxu0 %v4005
        %4171 = vmatmul.f32.gmra.mxu0 %v3927
        %v4172 = vpop.f32.mrf.mxu0
        %v4173 = vadd.f32 %v4108, %v4172
        %4174 = vmatmul.f32.gmra.mxu0 %v3930
        %v4175 = vpop.f32.mrf.mxu0
        %v4176 = vadd.f32 %v4111, %v4175
        %4177 = vmatmul.f32.gmra.mxu0 %v3933
        %v4178 = vpop.f32.mrf.mxu0
        %v4179 = vadd.f32 %v4114, %v4178
        %4180 = vmatmul.f32.gmra.mxu0 %v3936
        %v4181 = vpop.f32.mrf.mxu0
        %v4182 = vadd.f32 %v4117, %v4181
        %4183 = vmatmul.f32.gmra.mxu0 %v3939
        %v4184 = vpop.f32.mrf.mxu0
        %v4185 = vadd.f32 %v4120, %v4184
        %4186 = vmatmul.f32.gmra.mxu0 %v3942
        %v4187 = vpop.f32.mrf.mxu0
        %v4188 = vadd.f32 %v4123, %v4187
        %4189 = vmatmul.f32.gmra.mxu0 %v3945
        %v4190 = vpop.f32.mrf.mxu0
        %v4191 = vadd.f32 %v4126, %v4190
        %4192 = vmatmul.f32.gmra.mxu0 %v3948
        %v4193 = vpop.f32.mrf.mxu0
        %v4194 = vadd.f32 %v4129, %v4193
        %4195 = vmatmul.f32.gmra.mxu0 %v3951
        %v4196 = vpop.f32.mrf.mxu0
        %v4197 = vadd.f32 %v4132, %v4196
        %4198 = vmatmul.f32.gmra.mxu0 %v3954
        %v4199 = vpop.f32.mrf.mxu0
        %v4200 = vadd.f32 %v4135, %v4199
        %4201 = vmatmul.f32.gmra.mxu0 %v3957
        %v4202 = vpop.f32.mrf.mxu0
        %v4203 = vadd.f32 %v4138, %v4202
        %4204 = vmatmul.f32.gmra.mxu0 %v3960
        %v4205 = vpop.f32.mrf.mxu0
        %v4206 = vadd.f32 %v4141, %v4205
        %4207 = vmatmul.f32.gmra.mxu0 %v3963
        %v4208 = vpop.f32.mrf.mxu0
        %v4209 = vadd.f32 %v4144, %v4208
        %4210 = vmatmul.f32.gmra.mxu0 %v3966
        %v4211 = vpop.f32.mrf.mxu0
        %v4212 = vadd.f32 %v4147, %v4211
        %4213 = vmatmul.f32.gmra.mxu0 %v3969
        %v4214 = vpop.f32.mrf.mxu0
        %v4215 = vadd.f32 %v4150, %v4214
        %4216 = vmatmul.f32.gmra.mxu0 %v3972
        %v4217 = vpop.f32.mrf.mxu0
        %v4218 = vadd.f32 %v4153, %v4217
        %4219 = vdwg.mxu0
        %4220 = vst [vmem:[%s509] sm:$0xff] %v4173
        %4221 = vst [vmem:[%s509 + $0x8] sm:$0xff] %v4176
        %4222 = vst [vmem:[%s509 + $0x10] sm:$0xff] %v4179
        %4223 = vst [vmem:[%s509 + $0x18] sm:$0xff] %v4182
        %4224 = vst [vmem:[%s509 + $0x20] sm:$0xff] %v4185
        %4225 = vst [vmem:[%s509 + $0x28] sm:$0xff] %v4188
        %4226 = vst [vmem:[%s509 + $0x30] sm:$0xff] %v4191
        %4227 = vst [vmem:[%s509 + $0x38] sm:$0xff] %v4194
        %4228 = vst [vmem:[%s509 + $0x40] sm:$0xff] %v4197
        %4229 = vst [vmem:[%s509 + $0x48] sm:$0xff] %v4200
        %4230 = vst [vmem:[%s509 + $0x50] sm:$0xff] %v4203
        %4231 = vst [vmem:[%s509 + $0x58] sm:$0xff] %v4206
        %4232 = vst [vmem:[%s509 + $0x60] sm:$0xff] %v4209
        %4233 = vst [vmem:[%s509 + $0x68] sm:$0xff] %v4212
        %4234 = vst [vmem:[%s509 + $0x70] sm:$0xff] %v4215
        %4235 = vst [vmem:[%s509 + $0x78] sm:$0xff] %v4218
        %s4236 = smul.u32 16, %s27
        %p4237 = scmp.lt.s32.totalorder %s4236, 31
        %s4238 = scalar_select %p4237, %s4236, 31
        %s4239 = smul.addr %s4238, 8
        %s4240 = scalar_lea.vmem %s13, %s4239
        // Predicated region
        $region89: #{mlp_forward.1} parent=71 // pred_check
          %p4241 = pneg %p323
        $region90: #{mlp_forward.1} parent=71 // pred_check_branch
          %4243 = sbr.rel (%p4241) target = $region92
        $region91: #{mlp_forward.1} parent=71 // pred_region
          %s4244 = smul.u32 16, %s27
        $region92: #{mlp_forward.1} parent=71 // pred_fallthru
          _
      $region72: #{mlp_forward.1} parent=5 // pred_fallthru
        _
      %p4245 = scmp.le.s32.totalorder 2, %s22
      // Predicated region
      $region93: #{mlp_forward.1} parent=5 // pred_check
        %p4246 = pneg %p4245
      $region94: #{mlp_forward.1} parent=5 // pred_check_branch
        %4248 = sbr.rel (%p4246) target = $region96
      $region95: #{mlp_forward.1} parent=5 // pred_region
        %s4249 = ssub.s32 %s22, 2
        // Predicated region
        $region97: #{mlp_forward.1} parent=95 // pred_check
          %p4250 = pneg %p329
        $region98: #{mlp_forward.1} parent=95 // pred_check_branch
          %4252 = sbr.rel (%p4250) target = $region100
        $region99: #{mlp_forward.1} parent=95 // pred_region
          %s4253 = smul.u32 16, %s28
          %p4254 = scmp.lt.s32.totalorder %s4253, 31
          %s4255 = scalar_select %p4254, %s4253, 31
          %s4256 = smul.addr %s4255, 8
          %s4257 = scalar_lea.vmem %s13, %s4256
        $region100: #{mlp_forward.1} parent=95 // pred_fallthru
          _
      $region96: #{mlp_forward.1} parent=5 // pred_fallthru
        _
    $region6: #{mlp_forward.1} parent=1 // loop_footer
      %s26 = sadd.s32 1, %s22
    $region7: #{mlp_forward.1} parent=1 // loop_footer_branch
      %21 = sbr.rel target = $region3
    $region8: #{mlp_forward.1} parent=1 // loop_exit
      _
    %4258 = vsyncpa [#allocation3], 1
    %s4259 = scalar_lea.sflag [#allocation3], 1
    %4260 = vsyncpa %s4259, 1
    %4261 = vsyncpa [#allocation5], 1
    %4262 = vsyncpa [#allocation8], 1

</llo_original>
